<compile_context>
chip_gen: v7x
topology: tpu7x:2x2x1
jax: 0.10.0
libtpu: 0.0.40
codegen_flags: <defaults>
</compile_context>

<pallas_src>
import functools

import jax
import jax.numpy as jnp
from jax.experimental import pallas as pl
from jax.experimental.pallas import tpu as pltpu


# ----------------------------------------------------------------------------
# Pallas kernel (single invocation; time recurrence unrolled inside)
# ----------------------------------------------------------------------------
def _make_critic_kernel(seq_len: int, batch: int, num_layers: int,
                        hidden_dim: int):
    T, B, L, H = seq_len, batch, num_layers, hidden_dim
    f32 = jnp.float32

    def kernel(fc_in_ref, lstm_in_ref, h0_ref, c0_ref,
               w1_ref, b1_ref, w2_ref, b2_ref,
               wih_ref, whh_ref, bl_ref,
               w3a_ref, w3b_ref, b3_ref, w4_ref, b4_ref,
               q_ref, h_out_ref, c_out_ref,
               lstm_out_sc):
        # --- batched non-recurrent linears over all T*B rows ------------------
        fc = jnp.dot(fc_in_ref[...], w1_ref[...],
                     preferred_element_type=f32) + b1_ref[...]
        fc = jnp.maximum(fc, 0.0)                                  # (T*B, H)

        x_all = jnp.dot(lstm_in_ref[...], w2_ref[...],
                        preferred_element_type=f32) + b2_ref[...]
        x_all = jnp.maximum(x_all, 0.0)                            # (T*B, H)

        # layer-0 input-gate contribution for all timesteps (independent of h/c)
        gates0_all = jnp.dot(x_all, wih_ref[0],
                             preferred_element_type=f32) + bl_ref[0]  # (T*B, 4H)

        # recurrent state carried as values (tiny: L * (B, H))
        h = [h0_ref[l] for l in range(L)]
        c = [c0_ref[l] for l in range(L)]
        whh = [whh_ref[l] for l in range(L)]
        wih = [wih_ref[l] for l in range(L)]
        bl = [bl_ref[l] for l in range(L)]

        def cell(gates, c_prev):
            # full-vreg transcendentals (EUP), then static lane slices
            sg = jax.nn.sigmoid(gates)                # (B, 4H)
            tg = jnp.tanh(gates)                      # (B, 4H)
            i_g = sg[:, 0 * H:1 * H]
            f_g = sg[:, 1 * H:2 * H]
            g_g = tg[:, 2 * H:3 * H]
            o_g = sg[:, 3 * H:4 * H]
            c_new = f_g * c_prev + i_g * g_g
            h_new = o_g * jnp.tanh(c_new)
            return h_new, c_new

        # TODO(synk): nn.LSTM inter-layer dropout is training-only; this matches
        # eval-mode semantics.
        for t in range(T):
            r0 = t * B
            # layer 0: only the recurrent h @ Whh term remains in the loop
            g0 = gates0_all[r0:r0 + B, :] + jnp.dot(
                h[0], whh[0], preferred_element_type=f32)
            h[0], c[0] = cell(g0, c[0])
            xt = h[0]
            for l in range(1, L):
                g = (jnp.dot(xt, wih[l], preferred_element_type=f32) +
                     jnp.dot(h[l], whh[l], preferred_element_type=f32) +
                     bl[l])
                h[l], c[l] = cell(g, c[l])
                xt = h[l]
            lstm_out_sc[r0:r0 + B, :] = xt

        # --- batched merge + linear3 + linear4 over all T*B rows --------------
        y = (jnp.dot(fc, w3a_ref[...], preferred_element_type=f32) +
             jnp.dot(lstm_out_sc[...], w3b_ref[...], preferred_element_type=f32) +
             b3_ref[...])
        y = jnp.maximum(y, 0.0)                                    # (T*B, H)
        q_ref[...] = jnp.dot(y, w4_ref[...],
                             preferred_element_type=f32) + b4_ref[...]  # (T*B, 1)

        # --- final hidden state written directly to resident outputs ----------
        for l in range(L):
            h_out_ref[l] = h[l]
            c_out_ref[l] = c[l]

    return kernel


# ----------------------------------------------------------------------------
# Wrapper
# ----------------------------------------------------------------------------
def critic_forward(state, action, last_action, hidden_in, params,
                   *, num_layers, hidden_dim):
    """state/action/last_action: (batch, seq, feat); hidden_in: (h0, c0) each
    (num_layers, batch, hidden). Returns (q, (h_n, c_n)) with q (batch, seq, 1)."""
    h0, c0 = hidden_in
    B, T, S = state.shape
    A = action.shape[-1]
    H = hidden_dim
    L = num_layers

    # permute(1, 0, 2) -> time-major, concatenate, flatten to (T*B, feat).
    state_t = jnp.transpose(state, (1, 0, 2))
    action_t = jnp.transpose(action, (1, 0, 2))
    last_action_t = jnp.transpose(last_action, (1, 0, 2))
    fc_in = jnp.concatenate([state_t, action_t], axis=-1).reshape(T * B, S + A)
    lstm_in = jnp.concatenate([state_t, last_action_t],
                              axis=-1).reshape(T * B, S + A)

    # pack per-layer LSTM weights; pre-sum bih + bhh.
    wih = jnp.stack([params["lstm"][l][0] for l in range(L)], axis=0)  # (L, H, 4H)
    whh = jnp.stack([params["lstm"][l][1] for l in range(L)], axis=0)  # (L, H, 4H)
    bl = jnp.stack([params["lstm"][l][2] + params["lstm"][l][3]
                    for l in range(L)], axis=0)                        # (L, 1, 4H)

    inputs = [fc_in, lstm_in, h0, c0,
              params["w1"], params["b1"], params["w2"], params["b2"],
              wih, whh, bl,
              params["w3a"], params["w3b"], params["b3"],
              params["w4"], params["b4"]]

    def full_spec(shape):
        nd = len(shape)
        return pl.BlockSpec(shape, lambda i, _nd=nd: (0,) * _nd)

    in_specs = [full_spec(x.shape) for x in inputs]

    out_shape = (
        jax.ShapeDtypeStruct((T * B, 1), jnp.float32),   # q (time-major, flat)
        jax.ShapeDtypeStruct((L, B, H), jnp.float32),    # h_n
        jax.ShapeDtypeStruct((L, B, H), jnp.float32),    # c_n
    )
    out_specs = (
        full_spec((T * B, 1)),
        full_spec((L, B, H)),
        full_spec((L, B, H)),
    )

    kernel = _make_critic_kernel(T, B, L, H)
    q_flat, h_n, c_n = pl.pallas_call(
        kernel,
        out_shape=out_shape,
        grid_spec=pltpu.PrefetchScalarGridSpec(
            num_scalar_prefetch=0,
            grid=(1,),                       # single invocation; loop is in-kernel
            in_specs=in_specs,
            out_specs=out_specs,
            scratch_shapes=[pltpu.VMEM((T * B, H), jnp.float32)],
        ),
        compiler_params=pltpu.CompilerParams(
            dimension_semantics=("arbitrary",)),
    )(*inputs)

    q = jnp.transpose(q_flat.reshape(T, B, 1), (1, 0, 2))  # back to (batch, seq, 1)
    return q, (h_n, c_n)


# ----------------------------------------------------------------------------
# Deterministic parameter construction (matches Critic.__init__ shapes)
# ----------------------------------------------------------------------------
def init_params(key, state_dim, action_dim, hidden_dim, num_layers):
    H = hidden_dim
    in_dim = state_dim + action_dim

    def xavier(key, fan_in, fan_out):
        limit = (6.0 / (fan_in + fan_out)) ** 0.5
        # stored transposed (in, out) so the kernel right-multiplies
        return jax.random.uniform(key, (fan_in, fan_out), jnp.float32,
                                  -limit, limit)

    keys = jax.random.split(key, 4 + 4 * num_layers)
    params = {
        "w1": xavier(keys[0], in_dim, H), "b1": jnp.zeros((1, H), jnp.float32),
        "w2": xavier(keys[1], in_dim, H), "b2": jnp.zeros((1, H), jnp.float32),
        "b3": jnp.zeros((1, H), jnp.float32),
        "b4": jnp.zeros((1, 1), jnp.float32),
    }
    # linear3: (2H -> H), split into the fc-half and lstm-half of the weight
    w3_full = xavier(keys[2], 2 * H, H)
    params["w3a"] = w3_full[:H, :]
    params["w3b"] = w3_full[H:, :]
    params["w4"] = xavier(keys[3], H, 1)

    k = 1.0 / (H ** 0.5)
    lstm = []
    for layer in range(num_layers):
        inp = H  # lstm input size == hidden_dim for every layer here
        kk = keys[4 + 4 * layer:8 + 4 * layer]
        wih = jax.random.uniform(kk[0], (inp, 4 * H), jnp.float32, -k, k)
        whh = jax.random.uniform(kk[1], (H, 4 * H), jnp.float32, -k, k)
        bih = jax.random.uniform(kk[2], (1, 4 * H), jnp.float32, -k, k)
        bhh = jax.random.uniform(kk[3], (1, 4 * H), jnp.float32, -k, k)
        lstm.append((wih, whh, bih, bhh))
    params["lstm"] = lstm
    return params


# ----------------------------------------------------------------------------
# Pure-JAX reference (for a correctness check)
# ----------------------------------------------------------------------------
def critic_reference(state, action, last_action, hidden_in, params,
                     *, num_layers, hidden_dim):
    H = hidden_dim
    h0, c0 = hidden_in
    s = jnp.transpose(state, (1, 0, 2))
    a = jnp.transpose(action, (1, 0, 2))
    la = jnp.transpose(last_action, (1, 0, 2))
    fc = jax.nn.relu(jnp.concatenate([s, a], -1) @ params["w1"] + params["b1"])
    x = jax.nn.relu(jnp.concatenate([s, la], -1) @ params["w2"] + params["b2"])

    T = s.shape[0]
    h = [h0[l] for l in range(num_layers)]
    c = [c0[l] for l in range(num_layers)]
    outs = []
    for t in range(T):
        xt = x[t]
        for l in range(num_layers):
            wih, whh, bih, bhh = params["lstm"][l]
            g = xt @ wih + h[l] @ whh + bih + bhh
            i = jax.nn.sigmoid(g[:, 0 * H:1 * H])
            f = jax.nn.sigmoid(g[:, 1 * H:2 * H])
            gg = jnp.tanh(g[:, 2 * H:3 * H])
            o = jax.nn.sigmoid(g[:, 3 * H:4 * H])
            c[l] = f * c[l] + i * gg
            h[l] = o * jnp.tanh(c[l])
            xt = h[l]
        outs.append(xt)
    lstm_out = jnp.stack(outs, axis=0)
    y = jax.nn.relu(fc @ params["w3a"] + lstm_out @ params["w3b"] + params["b3"])
    q = y @ params["w4"] + params["b4"]
    return (jnp.transpose(q, (1, 0, 2)),
            (jnp.stack(h, 0), jnp.stack(c, 0)))


# ----------------------------------------------------------------------------
if __name__ == "__main__":
    # Small shapes consistent with the module's forward pass.
    batch, seq = 2, 8
    state_dim, action_dim = 8, 4
    hidden_dim, num_layers = 32, 2
    dropout = 0.0  # eval-mode semantics; nn.LSTM dropout is training-only

    key = jax.random.PRNGKey(0)
    kp, ks, ka, kla, kh, kc = jax.random.split(key, 6)

    params = init_params(kp, state_dim, action_dim, hidden_dim, num_layers)
    state = jax.random.normal(ks, (batch, seq, state_dim), jnp.float32)
    action = jax.random.normal(ka, (batch, seq, action_dim), jnp.float32)
    last_action = jax.random.normal(kla, (batch, seq, action_dim), jnp.float32)
    h0 = jax.random.normal(kh, (num_layers, batch, hidden_dim), jnp.float32)
    c0 = jax.random.normal(kc, (num_layers, batch, hidden_dim), jnp.float32)

    fwd = functools.partial(critic_forward,
                            num_layers=num_layers, hidden_dim=hidden_dim)
    q, (h_n, c_n) = jax.jit(fwd)(state, action, last_action, (h0, c0), params)
    jax.block_until_ready((q, h_n, c_n))

    # Validate against a pure-JAX reference of the same math.
    q_ref, (h_ref, c_ref) = critic_reference(
        state, action, last_action, (h0, c0), params,
        num_layers=num_layers, hidden_dim=hidden_dim)
    assert q.shape == (batch, seq, 1)
    assert h_n.shape == (num_layers, batch, hidden_dim)
    assert jnp.allclose(q, q_ref, atol=1e-4), "Q mismatch"
    assert jnp.allclose(h_n, h_ref, atol=1e-4), "h_n mismatch"
    assert jnp.allclose(c_n, c_ref, atol=1e-4), "c_n mismatch"

    print("KERNEL_OK")
</pallas_src>

<mosaic_0001>
module attributes {stable_mosaic.version = 11 : i64} {
  func.func @kernel(%arg0: i32, %arg1: memref<16x12xf32, #tpu.memory_space<vmem>>, %arg2: memref<16x12xf32, #tpu.memory_space<vmem>>, %arg3: memref<2x2x32xf32, #tpu.memory_space<vmem>>, %arg4: memref<2x2x32xf32, #tpu.memory_space<vmem>>, %arg5: memref<12x32xf32, #tpu.memory_space<vmem>>, %arg6: memref<1x32xf32, #tpu.memory_space<vmem>>, %arg7: memref<12x32xf32, #tpu.memory_space<vmem>>, %arg8: memref<1x32xf32, #tpu.memory_space<vmem>>, %arg9: memref<2x32x128xf32, #tpu.memory_space<vmem>>, %arg10: memref<2x32x128xf32, #tpu.memory_space<vmem>>, %arg11: memref<2x1x128xf32, #tpu.memory_space<vmem>>, %arg12: memref<32x32xf32, #tpu.memory_space<vmem>>, %arg13: memref<32x32xf32, #tpu.memory_space<vmem>>, %arg14: memref<1x32xf32, #tpu.memory_space<vmem>>, %arg15: memref<32x1xf32, #tpu.memory_space<vmem>>, %arg16: memref<1x1xf32, #tpu.memory_space<vmem>>, %arg17: memref<16x1xf32, #tpu.memory_space<vmem>>, %arg18: memref<2x2x32xf32, #tpu.memory_space<vmem>>, %arg19: memref<2x2x32xf32, #tpu.memory_space<vmem>>, %arg20: memref<16x32xf32, #tpu.memory_space<vmem>>) attributes {dimension_semantics = [#tpu.dimension_semantics<arbitrary>], iteration_bounds = array<i64: 1>, scalar_prefetch = 0 : i64, scratch_operands = 1 : i64, tpu.core_type = #tpu.core_type<tc>, window_params = [{pipeline_mode = #tpu.pipeline_mode<synchronous>, transform_indices = @transform_0, window_bounds = array<i64: 16, 12>}, {pipeline_mode = #tpu.pipeline_mode<synchronous>, transform_indices = @transform_1, window_bounds = array<i64: 16, 12>}, {pipeline_mode = #tpu.pipeline_mode<synchronous>, transform_indices = @transform_2, window_bounds = array<i64: 2, 2, 32>}, {pipeline_mode = #tpu.pipeline_mode<synchronous>, transform_indices = @transform_3, window_bounds = array<i64: 2, 2, 32>}, {pipeline_mode = #tpu.pipeline_mode<synchronous>, transform_indices = @transform_4, window_bounds = array<i64: 12, 32>}, {pipeline_mode = #tpu.pipeline_mode<synchronous>, transform_indices = @transform_5, window_bounds = array<i64: 1, 32>}, {pipeline_mode = #tpu.pipeline_mode<synchronous>, transform_indices = @transform_6, window_bounds = array<i64: 12, 32>}, {pipeline_mode = #tpu.pipeline_mode<synchronous>, transform_indices = @transform_7, window_bounds = array<i64: 1, 32>}, {pipeline_mode = #tpu.pipeline_mode<synchronous>, transform_indices = @transform_8, window_bounds = array<i64: 2, 32, 128>}, {pipeline_mode = #tpu.pipeline_mode<synchronous>, transform_indices = @transform_9, window_bounds = array<i64: 2, 32, 128>}, {pipeline_mode = #tpu.pipeline_mode<synchronous>, transform_indices = @transform_10, window_bounds = array<i64: 2, 1, 128>}, {pipeline_mode = #tpu.pipeline_mode<synchronous>, transform_indices = @transform_11, window_bounds = array<i64: 32, 32>}, {pipeline_mode = #tpu.pipeline_mode<synchronous>, transform_indices = @transform_12, window_bounds = array<i64: 32, 32>}, {pipeline_mode = #tpu.pipeline_mode<synchronous>, transform_indices = @transform_13, window_bounds = array<i64: 1, 32>}, {pipeline_mode = #tpu.pipeline_mode<synchronous>, transform_indices = @transform_14, window_bounds = array<i64: 32, 1>}, {pipeline_mode = #tpu.pipeline_mode<synchronous>, transform_indices = @transform_15, window_bounds = array<i64: 1, 1>}, {pipeline_mode = #tpu.pipeline_mode<synchronous>, transform_indices = @transform_16, window_bounds = array<i64: 16, 1>}, {pipeline_mode = #tpu.pipeline_mode<synchronous>, transform_indices = @transform_17, window_bounds = array<i64: 2, 2, 32>}, {pipeline_mode = #tpu.pipeline_mode<synchronous>, transform_indices = @transform_18, window_bounds = array<i64: 2, 2, 32>}]} {
    %c0 = arith.constant 0 : index
    %c0_0 = arith.constant 0 : index
    %0 = vector.load %arg1[%c0, %c0_0] : memref<16x12xf32, #tpu.memory_space<vmem>>, vector<16x12xf32>
    %c0_1 = arith.constant 0 : index
    %c0_2 = arith.constant 0 : index
    %1 = vector.load %arg5[%c0_1, %c0_2] : memref<12x32xf32, #tpu.memory_space<vmem>>, vector<12x32xf32>
    %cst = arith.constant dense<0.000000e+00> : vector<16x32xf32>
    %2 = tpu.matmul %0, %1, %cst {dimension_numbers = #tpu.dot_dimension_numbers<[1], [0], [0], [1], [0, 0, 1, 1], [], []>} : vector<16x12xf32>, vector<12x32xf32>, vector<16x32xf32> -> vector<16x32xf32>
    %c0_3 = arith.constant 0 : index
    %c0_4 = arith.constant 0 : index
    %3 = vector.load %arg6[%c0_3, %c0_4] : memref<1x32xf32, #tpu.memory_space<vmem>>, vector<1x32xf32>
    %4 = vector.broadcast %3 : vector<1x32xf32> to vector<16x32xf32>
    %5 = arith.addf %2, %4 : vector<16x32xf32>
    %cst_5 = arith.constant 0.000000e+00 : f32
    %6 = vector.broadcast %cst_5 : f32 to vector<16x32xf32>
    %7 = arith.maximumf %5, %6 : vector<16x32xf32>
    %c0_6 = arith.constant 0 : index
    %c0_7 = arith.constant 0 : index
    %8 = vector.load %arg2[%c0_6, %c0_7] : memref<16x12xf32, #tpu.memory_space<vmem>>, vector<16x12xf32>
    %c0_8 = arith.constant 0 : index
    %c0_9 = arith.constant 0 : index
    %9 = vector.load %arg7[%c0_8, %c0_9] : memref<12x32xf32, #tpu.memory_space<vmem>>, vector<12x32xf32>
    %cst_10 = arith.constant dense<0.000000e+00> : vector<16x32xf32>
    %10 = tpu.matmul %8, %9, %cst_10 {dimension_numbers = #tpu.dot_dimension_numbers<[1], [0], [0], [1], [0, 0, 1, 1], [], []>} : vector<16x12xf32>, vector<12x32xf32>, vector<16x32xf32> -> vector<16x32xf32>
    %c0_11 = arith.constant 0 : index
    %c0_12 = arith.constant 0 : index
    %11 = vector.load %arg8[%c0_11, %c0_12] : memref<1x32xf32, #tpu.memory_space<vmem>>, vector<1x32xf32>
    %12 = vector.broadcast %11 : vector<1x32xf32> to vector<16x32xf32>
    %13 = arith.addf %10, %12 : vector<16x32xf32>
    %cst_13 = arith.constant 0.000000e+00 : f32
    %14 = vector.broadcast %cst_13 : f32 to vector<16x32xf32>
    %15 = arith.maximumf %13, %14 : vector<16x32xf32>
    %c0_14 = arith.constant 0 : index
    %c0_15 = arith.constant 0 : index
    %c0_16 = arith.constant 0 : index
    %16 = vector.load %arg9[%c0_14, %c0_15, %c0_16] : memref<2x32x128xf32, #tpu.memory_space<vmem>>, vector<1x32x128xf32>
    %17 = vector.shape_cast %16 : vector<1x32x128xf32> to vector<32x128xf32>
    %cst_17 = arith.constant dense<0.000000e+00> : vector<16x128xf32>
    %18 = tpu.matmul %15, %17, %cst_17 {dimension_numbers = #tpu.dot_dimension_numbers<[1], [0], [0], [1], [0, 0, 1, 1], [], []>} : vector<16x32xf32>, vector<32x128xf32>, vector<16x128xf32> -> vector<16x128xf32>
    %c0_18 = arith.constant 0 : index
    %c0_19 = arith.constant 0 : index
    %c0_20 = arith.constant 0 : index
    %19 = vector.load %arg11[%c0_18, %c0_19, %c0_20] : memref<2x1x128xf32, #tpu.memory_space<vmem>>, vector<1x1x128xf32>
    %20 = vector.shape_cast %19 : vector<1x1x128xf32> to vector<1x128xf32>
    %21 = vector.broadcast %20 : vector<1x128xf32> to vector<16x128xf32>
    %22 = arith.addf %18, %21 : vector<16x128xf32>
    %c0_21 = arith.constant 0 : index
    %c0_22 = arith.constant 0 : index
    %c0_23 = arith.constant 0 : index
    %23 = vector.load %arg3[%c0_21, %c0_22, %c0_23] : memref<2x2x32xf32, #tpu.memory_space<vmem>>, vector<1x2x32xf32>
    %24 = vector.shape_cast %23 : vector<1x2x32xf32> to vector<2x32xf32>
    %c1 = arith.constant 1 : index
    %c0_24 = arith.constant 0 : index
    %c0_25 = arith.constant 0 : index
    %25 = vector.load %arg3[%c1, %c0_24, %c0_25] : memref<2x2x32xf32, #tpu.memory_space<vmem>>, vector<1x2x32xf32>
    %26 = vector.shape_cast %25 : vector<1x2x32xf32> to vector<2x32xf32>
    %c0_26 = arith.constant 0 : index
    %c0_27 = arith.constant 0 : index
    %c0_28 = arith.constant 0 : index
    %27 = vector.load %arg4[%c0_26, %c0_27, %c0_28] : memref<2x2x32xf32, #tpu.memory_space<vmem>>, vector<1x2x32xf32>
    %28 = vector.shape_cast %27 : vector<1x2x32xf32> to vector<2x32xf32>
    %c1_29 = arith.constant 1 : index
    %c0_30 = arith.constant 0 : index
    %c0_31 = arith.constant 0 : index
    %29 = vector.load %arg4[%c1_29, %c0_30, %c0_31] : memref<2x2x32xf32, #tpu.memory_space<vmem>>, vector<1x2x32xf32>
    %30 = vector.shape_cast %29 : vector<1x2x32xf32> to vector<2x32xf32>
    %c0_32 = arith.constant 0 : index
    %c0_33 = arith.constant 0 : index
    %c0_34 = arith.constant 0 : index
    %31 = vector.load %arg10[%c0_32, %c0_33, %c0_34] : memref<2x32x128xf32, #tpu.memory_space<vmem>>, vector<1x32x128xf32>
    %32 = vector.shape_cast %31 : vector<1x32x128xf32> to vector<32x128xf32>
    %c1_35 = arith.constant 1 : index
    %c0_36 = arith.constant 0 : index
    %c0_37 = arith.constant 0 : index
    %33 = vector.load %arg10[%c1_35, %c0_36, %c0_37] : memref<2x32x128xf32, #tpu.memory_space<vmem>>, vector<1x32x128xf32>
    %34 = vector.shape_cast %33 : vector<1x32x128xf32> to vector<32x128xf32>
    %c1_38 = arith.constant 1 : index
    %c0_39 = arith.constant 0 : index
    %c0_40 = arith.constant 0 : index
    %35 = vector.load %arg9[%c1_38, %c0_39, %c0_40] : memref<2x32x128xf32, #tpu.memory_space<vmem>>, vector<1x32x128xf32>
    %36 = vector.shape_cast %35 : vector<1x32x128xf32> to vector<32x128xf32>
    %c1_41 = arith.constant 1 : index
    %c0_42 = arith.constant 0 : index
    %c0_43 = arith.constant 0 : index
    %37 = vector.load %arg11[%c1_41, %c0_42, %c0_43] : memref<2x1x128xf32, #tpu.memory_space<vmem>>, vector<1x1x128xf32>
    %38 = vector.shape_cast %37 : vector<1x1x128xf32> to vector<1x128xf32>
    %39 = vector.extract_strided_slice %22 {offsets = [0, 0], sizes = [2, 128], strides = [1, 1]} : vector<16x128xf32> to vector<2x128xf32>
    %cst_44 = arith.constant dense<0.000000e+00> : vector<2x128xf32>
    %40 = tpu.matmul %24, %32, %cst_44 {dimension_numbers = #tpu.dot_dimension_numbers<[1], [0], [0], [1], [0, 0, 1, 1], [], []>} : vector<2x32xf32>, vector<32x128xf32>, vector<2x128xf32> -> vector<2x128xf32>
    %41 = arith.addf %39, %40 : vector<2x128xf32>
    %42 = arith.negf %41 : vector<2x128xf32>
    %43 = math.exp %42 : vector<2x128xf32>
    %cst_45 = arith.constant 1.000000e+00 : f32
    %44 = vector.broadcast %cst_45 : f32 to vector<2x128xf32>
    %45 = arith.addf %44, %43 : vector<2x128xf32>
    %46 = arith.divf %44, %45 : vector<2x128xf32>
    %47 = math.tanh %41 : vector<2x128xf32>
    %48 = vector.extract_strided_slice %46 {offsets = [0, 0], sizes = [2, 32], strides = [1, 1]} : vector<2x128xf32> to vector<2x32xf32>
    %49 = vector.extract_strided_slice %46 {offsets = [0, 32], sizes = [2, 32], strides = [1, 1]} : vector<2x128xf32> to vector<2x32xf32>
    %50 = vector.extract_strided_slice %47 {offsets = [0, 64], sizes = [2, 32], strides = [1, 1]} : vector<2x128xf32> to vector<2x32xf32>
    %51 = vector.extract_strided_slice %46 {offsets = [0, 96], sizes = [2, 32], strides = [1, 1]} : vector<2x128xf32> to vector<2x32xf32>
    %52 = arith.mulf %49, %28 : vector<2x32xf32>
    %53 = arith.mulf %48, %50 : vector<2x32xf32>
    %54 = arith.addf %52, %53 : vector<2x32xf32>
    %55 = math.tanh %54 : vector<2x32xf32>
    %56 = arith.mulf %51, %55 : vector<2x32xf32>
    %cst_46 = arith.constant dense<0.000000e+00> : vector<2x128xf32>
    %57 = tpu.matmul %56, %36, %cst_46 {dimension_numbers = #tpu.dot_dimension_numbers<[1], [0], [0], [1], [0, 0, 1, 1], [], []>} : vector<2x32xf32>, vector<32x128xf32>, vector<2x128xf32> -> vector<2x128xf32>
    %cst_47 = arith.constant dense<0.000000e+00> : vector<2x128xf32>
    %58 = tpu.matmul %26, %34, %cst_47 {dimension_numbers = #tpu.dot_dimension_numbers<[1], [0], [0], [1], [0, 0, 1, 1], [], []>} : vector<2x32xf32>, vector<32x128xf32>, vector<2x128xf32> -> vector<2x128xf32>
    %59 = arith.addf %57, %58 : vector<2x128xf32>
    %60 = vector.broadcast %38 : vector<1x128xf32> to vector<2x128xf32>
    %61 = arith.addf %59, %60 : vector<2x128xf32>
    %62 = arith.negf %61 : vector<2x128xf32>
    %63 = math.exp %62 : vector<2x128xf32>
    %cst_48 = arith.constant 1.000000e+00 : f32
    %64 = vector.broadcast %cst_48 : f32 to vector<2x128xf32>
    %65 = arith.addf %64, %63 : vector<2x128xf32>
    %66 = arith.divf %64, %65 : vector<2x128xf32>
    %67 = math.tanh %61 : vector<2x128xf32>
    %68 = vector.extract_strided_slice %66 {offsets = [0, 0], sizes = [2, 32], strides = [1, 1]} : vector<2x128xf32> to vector<2x32xf32>
    %69 = vector.extract_strided_slice %66 {offsets = [0, 32], sizes = [2, 32], strides = [1, 1]} : vector<2x128xf32> to vector<2x32xf32>
    %70 = vector.extract_strided_slice %67 {offsets = [0, 64], sizes = [2, 32], strides = [1, 1]} : vector<2x128xf32> to vector<2x32xf32>
    %71 = vector.extract_strided_slice %66 {offsets = [0, 96], sizes = [2, 32], strides = [1, 1]} : vector<2x128xf32> to vector<2x32xf32>
    %72 = arith.mulf %69, %30 : vector<2x32xf32>
    %73 = arith.mulf %68, %70 : vector<2x32xf32>
    %74 = arith.addf %72, %73 : vector<2x32xf32>
    %75 = math.tanh %74 : vector<2x32xf32>
    %76 = arith.mulf %71, %75 : vector<2x32xf32>
    %c0_49 = arith.constant 0 : index
    %c0_50 = arith.constant 0 : index
    %77 = vector.load %arg20[%c0_49, %c0_50] : memref<16x32xf32, #tpu.memory_space<vmem>>, vector<2x32xf32>
    tpu.vector_store %arg20[%c0_49, %c0_50], %76 {strides = array<i32>} : memref<16x32xf32, #tpu.memory_space<vmem>>, vector<2x32xf32>,
    %78 = vector.extract_strided_slice %22 {offsets = [2, 0], sizes = [2, 128], strides = [1, 1]} : vector<16x128xf32> to vector<2x128xf32>
    %cst_51 = arith.constant dense<0.000000e+00> : vector<2x128xf32>
    %79 = tpu.matmul %56, %32, %cst_51 {dimension_numbers = #tpu.dot_dimension_numbers<[1], [0], [0], [1], [0, 0, 1, 1], [], []>} : vector<2x32xf32>, vector<32x128xf32>, vector<2x128xf32> -> vector<2x128xf32>
    %80 = arith.addf %78, %79 : vector<2x128xf32>
    %81 = arith.negf %80 : vector<2x128xf32>
    %82 = math.exp %81 : vector<2x128xf32>
    %cst_52 = arith.constant 1.000000e+00 : f32
    %83 = vector.broadcast %cst_52 : f32 to vector<2x128xf32>
    %84 = arith.addf %83, %82 : vector<2x128xf32>
    %85 = arith.divf %83, %84 : vector<2x128xf32>
    %86 = math.tanh %80 : vector<2x128xf32>
    %87 = vector.extract_strided_slice %85 {offsets = [0, 0], sizes = [2, 32], strides = [1, 1]} : vector<2x128xf32> to vector<2x32xf32>
    %88 = vector.extract_strided_slice %85 {offsets = [0, 32], sizes = [2, 32], strides = [1, 1]} : vector<2x128xf32> to vector<2x32xf32>
    %89 = vector.extract_strided_slice %86 {offsets = [0, 64], sizes = [2, 32], strides = [1, 1]} : vector<2x128xf32> to vector<2x32xf32>
    %90 = vector.extract_strided_slice %85 {offsets = [0, 96], sizes = [2, 32], strides = [1, 1]} : vector<2x128xf32> to vector<2x32xf32>
    %91 = arith.mulf %88, %54 : vector<2x32xf32>
    %92 = arith.mulf %87, %89 : vector<2x32xf32>
    %93 = arith.addf %91, %92 : vector<2x32xf32>
    %94 = math.tanh %93 : vector<2x32xf32>
    %95 = arith.mulf %90, %94 : vector<2x32xf32>
    %cst_53 = arith.constant dense<0.000000e+00> : vector<2x128xf32>
    %96 = tpu.matmul %95, %36, %cst_53 {dimension_numbers = #tpu.dot_dimension_numbers<[1], [0], [0], [1], [0, 0, 1, 1], [], []>} : vector<2x32xf32>, vector<32x128xf32>, vector<2x128xf32> -> vector<2x128xf32>
    %cst_54 = arith.constant dense<0.000000e+00> : vector<2x128xf32>
    %97 = tpu.matmul %76, %34, %cst_54 {dimension_numbers = #tpu.dot_dimension_numbers<[1], [0], [0], [1], [0, 0, 1, 1], [], []>} : vector<2x32xf32>, vector<32x128xf32>, vector<2x128xf32> -> vector<2x128xf32>
    %98 = arith.addf %96, %97 : vector<2x128xf32>
    %99 = vector.broadcast %38 : vector<1x128xf32> to vector<2x128xf32>
    %100 = arith.addf %98, %99 : vector<2x128xf32>
    %101 = arith.negf %100 : vector<2x128xf32>
    %102 = math.exp %101 : vector<2x128xf32>
    %cst_55 = arith.constant 1.000000e+00 : f32
    %103 = vector.broadcast %cst_55 : f32 to vector<2x128xf32>
    %104 = arith.addf %103, %102 : vector<2x128xf32>
    %105 = arith.divf %103, %104 : vector<2x128xf32>
    %106 = math.tanh %100 : vector<2x128xf32>
    %107 = vector.extract_strided_slice %105 {offsets = [0, 0], sizes = [2, 32], strides = [1, 1]} : vector<2x128xf32> to vector<2x32xf32>
    %108 = vector.extract_strided_slice %105 {offsets = [0, 32], sizes = [2, 32], strides = [1, 1]} : vector<2x128xf32> to vector<2x32xf32>
    %109 = vector.extract_strided_slice %106 {offsets = [0, 64], sizes = [2, 32], strides = [1, 1]} : vector<2x128xf32> to vector<2x32xf32>
    %110 = vector.extract_strided_slice %105 {offsets = [0, 96], sizes = [2, 32], strides = [1, 1]} : vector<2x128xf32> to vector<2x32xf32>
    %111 = arith.mulf %108, %74 : vector<2x32xf32>
    %112 = arith.mulf %107, %109 : vector<2x32xf32>
    %113 = arith.addf %111, %112 : vector<2x32xf32>
    %114 = math.tanh %113 : vector<2x32xf32>
    %115 = arith.mulf %110, %114 : vector<2x32xf32>
    %c2 = arith.constant 2 : index
    %c0_56 = arith.constant 0 : index
    %116 = vector.load %arg20[%c2, %c0_56] : memref<16x32xf32, #tpu.memory_space<vmem>>, vector<2x32xf32>
    tpu.vector_store %arg20[%c2, %c0_56], %115 {strides = array<i32>} : memref<16x32xf32, #tpu.memory_space<vmem>>, vector<2x32xf32>,
    %117 = vector.extract_strided_slice %22 {offsets = [4, 0], sizes = [2, 128], strides = [1, 1]} : vector<16x128xf32> to vector<2x128xf32>
    %cst_57 = arith.constant dense<0.000000e+00> : vector<2x128xf32>
    %118 = tpu.matmul %95, %32, %cst_57 {dimension_numbers = #tpu.dot_dimension_numbers<[1], [0], [0], [1], [0, 0, 1, 1], [], []>} : vector<2x32xf32>, vector<32x128xf32>, vector<2x128xf32> -> vector<2x128xf32>
    %119 = arith.addf %117, %118 : vector<2x128xf32>
    %120 = arith.negf %119 : vector<2x128xf32>
    %121 = math.exp %120 : vector<2x128xf32>
    %cst_58 = arith.constant 1.000000e+00 : f32
    %122 = vector.broadcast %cst_58 : f32 to vector<2x128xf32>
    %123 = arith.addf %122, %121 : vector<2x128xf32>
    %124 = arith.divf %122, %123 : vector<2x128xf32>
    %125 = math.tanh %119 : vector<2x128xf32>
    %126 = vector.extract_strided_slice %124 {offsets = [0, 0], sizes = [2, 32], strides = [1, 1]} : vector<2x128xf32> to vector<2x32xf32>
    %127 = vector.extract_strided_slice %124 {offsets = [0, 32], sizes = [2, 32], strides = [1, 1]} : vector<2x128xf32> to vector<2x32xf32>
    %128 = vector.extract_strided_slice %125 {offsets = [0, 64], sizes = [2, 32], strides = [1, 1]} : vector<2x128xf32> to vector<2x32xf32>
    %129 = vector.extract_strided_slice %124 {offsets = [0, 96], sizes = [2, 32], strides = [1, 1]} : vector<2x128xf32> to vector<2x32xf32>
    %130 = arith.mulf %127, %93 : vector<2x32xf32>
    %131 = arith.mulf %126, %128 : vector<2x32xf32>
    %132 = arith.addf %130, %131 : vector<2x32xf32>
    %133 = math.tanh %132 : vector<2x32xf32>
    %134 = arith.mulf %129, %133 : vector<2x32xf32>
    %cst_59 = arith.constant dense<0.000000e+00> : vector<2x128xf32>
    %135 = tpu.matmul %134, %36, %cst_59 {dimension_numbers = #tpu.dot_dimension_numbers<[1], [0], [0], [1], [0, 0, 1, 1], [], []>} : vector<2x32xf32>, vector<32x128xf32>, vector<2x128xf32> -> vector<2x128xf32>
    %cst_60 = arith.constant dense<0.000000e+00> : vector<2x128xf32>
    %136 = tpu.matmul %115, %34, %cst_60 {dimension_numbers = #tpu.dot_dimension_numbers<[1], [0], [0], [1], [0, 0, 1, 1], [], []>} : vector<2x32xf32>, vector<32x128xf32>, vector<2x128xf32> -> vector<2x128xf32>
    %137 = arith.addf %135, %136 : vector<2x128xf32>
    %138 = vector.broadcast %38 : vector<1x128xf32> to vector<2x128xf32>
    %139 = arith.addf %137, %138 : vector<2x128xf32>
    %140 = arith.negf %139 : vector<2x128xf32>
    %141 = math.exp %140 : vector<2x128xf32>
    %cst_61 = arith.constant 1.000000e+00 : f32
    %142 = vector.broadcast %cst_61 : f32 to vector<2x128xf32>
    %143 = arith.addf %142, %141 : vector<2x128xf32>
    %144 = arith.divf %142, %143 : vector<2x128xf32>
    %145 = math.tanh %139 : vector<2x128xf32>
    %146 = vector.extract_strided_slice %144 {offsets = [0, 0], sizes = [2, 32], strides = [1, 1]} : vector<2x128xf32> to vector<2x32xf32>
    %147 = vector.extract_strided_slice %144 {offsets = [0, 32], sizes = [2, 32], strides = [1, 1]} : vector<2x128xf32> to vector<2x32xf32>
    %148 = vector.extract_strided_slice %145 {offsets = [0, 64], sizes = [2, 32], strides = [1, 1]} : vector<2x128xf32> to vector<2x32xf32>
    %149 = vector.extract_strided_slice %144 {offsets = [0, 96], sizes = [2, 32], strides = [1, 1]} : vector<2x128xf32> to vector<2x32xf32>
    %150 = arith.mulf %147, %113 : vector<2x32xf32>
    %151 = arith.mulf %146, %148 : vector<2x32xf32>
    %152 = arith.addf %150, %151 : vector<2x32xf32>
    %153 = math.tanh %152 : vector<2x32xf32>
    %154 = arith.mulf %149, %153 : vector<2x32xf32>
    %c4 = arith.constant 4 : index
    %c0_62 = arith.constant 0 : index
    %155 = vector.load %arg20[%c4, %c0_62] : memref<16x32xf32, #tpu.memory_space<vmem>>, vector<2x32xf32>
    tpu.vector_store %arg20[%c4, %c0_62], %154 {strides = array<i32>} : memref<16x32xf32, #tpu.memory_space<vmem>>, vector<2x32xf32>,
    %156 = vector.extract_strided_slice %22 {offsets = [6, 0], sizes = [2, 128], strides = [1, 1]} : vector<16x128xf32> to vector<2x128xf32>
    %cst_63 = arith.constant dense<0.000000e+00> : vector<2x128xf32>
    %157 = tpu.matmul %134, %32, %cst_63 {dimension_numbers = #tpu.dot_dimension_numbers<[1], [0], [0], [1], [0, 0, 1, 1], [], []>} : vector<2x32xf32>, vector<32x128xf32>, vector<2x128xf32> -> vector<2x128xf32>
    %158 = arith.addf %156, %157 : vector<2x128xf32>
    %159 = arith.negf %158 : vector<2x128xf32>
    %160 = math.exp %159 : vector<2x128xf32>
    %cst_64 = arith.constant 1.000000e+00 : f32
    %161 = vector.broadcast %cst_64 : f32 to vector<2x128xf32>
    %162 = arith.addf %161, %160 : vector<2x128xf32>
    %163 = arith.divf %161, %162 : vector<2x128xf32>
    %164 = math.tanh %158 : vector<2x128xf32>
    %165 = vector.extract_strided_slice %163 {offsets = [0, 0], sizes = [2, 32], strides = [1, 1]} : vector<2x128xf32> to vector<2x32xf32>
    %166 = vector.extract_strided_slice %163 {offsets = [0, 32], sizes = [2, 32], strides = [1, 1]} : vector<2x128xf32> to vector<2x32xf32>
    %167 = vector.extract_strided_slice %164 {offsets = [0, 64], sizes = [2, 32], strides = [1, 1]} : vector<2x128xf32> to vector<2x32xf32>
    %168 = vector.extract_strided_slice %163 {offsets = [0, 96], sizes = [2, 32], strides = [1, 1]} : vector<2x128xf32> to vector<2x32xf32>
    %169 = arith.mulf %166, %132 : vector<2x32xf32>
    %170 = arith.mulf %165, %167 : vector<2x32xf32>
    %171 = arith.addf %169, %170 : vector<2x32xf32>
    %172 = math.tanh %171 : vector<2x32xf32>
    %173 = arith.mulf %168, %172 : vector<2x32xf32>
    %cst_65 = arith.constant dense<0.000000e+00> : vector<2x128xf32>
    %174 = tpu.matmul %173, %36, %cst_65 {dimension_numbers = #tpu.dot_dimension_numbers<[1], [0], [0], [1], [0, 0, 1, 1], [], []>} : vector<2x32xf32>, vector<32x128xf32>, vector<2x128xf32> -> vector<2x128xf32>
    %cst_66 = arith.constant dense<0.000000e+00> : vector<2x128xf32>
    %175 = tpu.matmul %154, %34, %cst_66 {dimension_numbers = #tpu.dot_dimension_numbers<[1], [0], [0], [1], [0, 0, 1, 1], [], []>} : vector<2x32xf32>, vector<32x128xf32>, vector<2x128xf32> -> vector<2x128xf32>
    %176 = arith.addf %174, %175 : vector<2x128xf32>
    %177 = vector.broadcast %38 : vector<1x128xf32> to vector<2x128xf32>
    %178 = arith.addf %176, %177 : vector<2x128xf32>
    %179 = arith.negf %178 : vector<2x128xf32>
    %180 = math.exp %179 : vector<2x128xf32>
    %cst_67 = arith.constant 1.000000e+00 : f32
    %181 = vector.broadcast %cst_67 : f32 to vector<2x128xf32>
    %182 = arith.addf %181, %180 : vector<2x128xf32>
    %183 = arith.divf %181, %182 : vector<2x128xf32>
    %184 = math.tanh %178 : vector<2x128xf32>
    %185 = vector.extract_strided_slice %183 {offsets = [0, 0], sizes = [2, 32], strides = [1, 1]} : vector<2x128xf32> to vector<2x32xf32>
    %186 = vector.extract_strided_slice %183 {offsets = [0, 32], sizes = [2, 32], strides = [1, 1]} : vector<2x128xf32> to vector<2x32xf32>
    %187 = vector.extract_strided_slice %184 {offsets = [0, 64], sizes = [2, 32], strides = [1, 1]} : vector<2x128xf32> to vector<2x32xf32>
    %188 = vector.extract_strided_slice %183 {offsets = [0, 96], sizes = [2, 32], strides = [1, 1]} : vector<2x128xf32> to vector<2x32xf32>
    %189 = arith.mulf %186, %152 : vector<2x32xf32>
    %190 = arith.mulf %185, %187 : vector<2x32xf32>
    %191 = arith.addf %189, %190 : vector<2x32xf32>
    %192 = math.tanh %191 : vector<2x32xf32>
    %193 = arith.mulf %188, %192 : vector<2x32xf32>
    %c6 = arith.constant 6 : index
    %c0_68 = arith.constant 0 : index
    %194 = vector.load %arg20[%c6, %c0_68] : memref<16x32xf32, #tpu.memory_space<vmem>>, vector<2x32xf32>
    tpu.vector_store %arg20[%c6, %c0_68], %193 {strides = array<i32>} : memref<16x32xf32, #tpu.memory_space<vmem>>, vector<2x32xf32>,
    %195 = vector.extract_strided_slice %22 {offsets = [8, 0], sizes = [2, 128], strides = [1, 1]} : vector<16x128xf32> to vector<2x128xf32>
    %cst_69 = arith.constant dense<0.000000e+00> : vector<2x128xf32>
    %196 = tpu.matmul %173, %32, %cst_69 {dimension_numbers = #tpu.dot_dimension_numbers<[1], [0], [0], [1], [0, 0, 1, 1], [], []>} : vector<2x32xf32>, vector<32x128xf32>, vector<2x128xf32> -> vector<2x128xf32>
    %197 = arith.addf %195, %196 : vector<2x128xf32>
    %198 = arith.negf %197 : vector<2x128xf32>
    %199 = math.exp %198 : vector<2x128xf32>
    %cst_70 = arith.constant 1.000000e+00 : f32
    %200 = vector.broadcast %cst_70 : f32 to vector<2x128xf32>
    %201 = arith.addf %200, %199 : vector<2x128xf32>
    %202 = arith.divf %200, %201 : vector<2x128xf32>
    %203 = math.tanh %197 : vector<2x128xf32>
    %204 = vector.extract_strided_slice %202 {offsets = [0, 0], sizes = [2, 32], strides = [1, 1]} : vector<2x128xf32> to vector<2x32xf32>
    %205 = vector.extract_strided_slice %202 {offsets = [0, 32], sizes = [2, 32], strides = [1, 1]} : vector<2x128xf32> to vector<2x32xf32>
    %206 = vector.extract_strided_slice %203 {offsets = [0, 64], sizes = [2, 32], strides = [1, 1]} : vector<2x128xf32> to vector<2x32xf32>
    %207 = vector.extract_strided_slice %202 {offsets = [0, 96], sizes = [2, 32], strides = [1, 1]} : vector<2x128xf32> to vector<2x32xf32>
    %208 = arith.mulf %205, %171 : vector<2x32xf32>
    %209 = arith.mulf %204, %206 : vector<2x32xf32>
    %210 = arith.addf %208, %209 : vector<2x32xf32>
    %211 = math.tanh %210 : vector<2x32xf32>
    %212 = arith.mulf %207, %211 : vector<2x32xf32>
    %cst_71 = arith.constant dense<0.000000e+00> : vector<2x128xf32>
    %213 = tpu.matmul %212, %36, %cst_71 {dimension_numbers = #tpu.dot_dimension_numbers<[1], [0], [0], [1], [0, 0, 1, 1], [], []>} : vector<2x32xf32>, vector<32x128xf32>, vector<2x128xf32> -> vector<2x128xf32>
    %cst_72 = arith.constant dense<0.000000e+00> : vector<2x128xf32>
    %214 = tpu.matmul %193, %34, %cst_72 {dimension_numbers = #tpu.dot_dimension_numbers<[1], [0], [0], [1], [0, 0, 1, 1], [], []>} : vector<2x32xf32>, vector<32x128xf32>, vector<2x128xf32> -> vector<2x128xf32>
    %215 = arith.addf %213, %214 : vector<2x128xf32>
    %216 = vector.broadcast %38 : vector<1x128xf32> to vector<2x128xf32>
    %217 = arith.addf %215, %216 : vector<2x128xf32>
    %218 = arith.negf %217 : vector<2x128xf32>
    %219 = math.exp %218 : vector<2x128xf32>
    %cst_73 = arith.constant 1.000000e+00 : f32
    %220 = vector.broadcast %cst_73 : f32 to vector<2x128xf32>
    %221 = arith.addf %220, %219 : vector<2x128xf32>
    %222 = arith.divf %220, %221 : vector<2x128xf32>
    %223 = math.tanh %217 : vector<2x128xf32>
    %224 = vector.extract_strided_slice %222 {offsets = [0, 0], sizes = [2, 32], strides = [1, 1]} : vector<2x128xf32> to vector<2x32xf32>
    %225 = vector.extract_strided_slice %222 {offsets = [0, 32], sizes = [2, 32], strides = [1, 1]} : vector<2x128xf32> to vector<2x32xf32>
    %226 = vector.extract_strided_slice %223 {offsets = [0, 64], sizes = [2, 32], strides = [1, 1]} : vector<2x128xf32> to vector<2x32xf32>
    %227 = vector.extract_strided_slice %222 {offsets = [0, 96], sizes = [2, 32], strides = [1, 1]} : vector<2x128xf32> to vector<2x32xf32>
    %228 = arith.mulf %225, %191 : vector<2x32xf32>
    %229 = arith.mulf %224, %226 : vector<2x32xf32>
    %230 = arith.addf %228, %229 : vector<2x32xf32>
    %231 = math.tanh %230 : vector<2x32xf32>
    %232 = arith.mulf %227, %231 : vector<2x32xf32>
    %c8 = arith.constant 8 : index
    %c0_74 = arith.constant 0 : index
    %233 = vector.load %arg20[%c8, %c0_74] : memref<16x32xf32, #tpu.memory_space<vmem>>, vector<2x32xf32>
    tpu.vector_store %arg20[%c8, %c0_74], %232 {strides = array<i32>} : memref<16x32xf32, #tpu.memory_space<vmem>>, vector<2x32xf32>,
    %234 = vector.extract_strided_slice %22 {offsets = [10, 0], sizes = [2, 128], strides = [1, 1]} : vector<16x128xf32> to vector<2x128xf32>
    %cst_75 = arith.constant dense<0.000000e+00> : vector<2x128xf32>
    %235 = tpu.matmul %212, %32, %cst_75 {dimension_numbers = #tpu.dot_dimension_numbers<[1], [0], [0], [1], [0, 0, 1, 1], [], []>} : vector<2x32xf32>, vector<32x128xf32>, vector<2x128xf32> -> vector<2x128xf32>
    %236 = arith.addf %234, %235 : vector<2x128xf32>
    %237 = arith.negf %236 : vector<2x128xf32>
    %238 = math.exp %237 : vector<2x128xf32>
    %cst_76 = arith.constant 1.000000e+00 : f32
    %239 = vector.broadcast %cst_76 : f32 to vector<2x128xf32>
    %240 = arith.addf %239, %238 : vector<2x128xf32>
    %241 = arith.divf %239, %240 : vector<2x128xf32>
    %242 = math.tanh %236 : vector<2x128xf32>
    %243 = vector.extract_strided_slice %241 {offsets = [0, 0], sizes = [2, 32], strides = [1, 1]} : vector<2x128xf32> to vector<2x32xf32>
    %244 = vector.extract_strided_slice %241 {offsets = [0, 32], sizes = [2, 32], strides = [1, 1]} : vector<2x128xf32> to vector<2x32xf32>
    %245 = vector.extract_strided_slice %242 {offsets = [0, 64], sizes = [2, 32], strides = [1, 1]} : vector<2x128xf32> to vector<2x32xf32>
    %246 = vector.extract_strided_slice %241 {offsets = [0, 96], sizes = [2, 32], strides = [1, 1]} : vector<2x128xf32> to vector<2x32xf32>
    %247 = arith.mulf %244, %210 : vector<2x32xf32>
    %248 = arith.mulf %243, %245 : vector<2x32xf32>
    %249 = arith.addf %247, %248 : vector<2x32xf32>
    %250 = math.tanh %249 : vector<2x32xf32>
    %251 = arith.mulf %246, %250 : vector<2x32xf32>
    %cst_77 = arith.constant dense<0.000000e+00> : vector<2x128xf32>
    %252 = tpu.matmul %251, %36, %cst_77 {dimension_numbers = #tpu.dot_dimension_numbers<[1], [0], [0], [1], [0, 0, 1, 1], [], []>} : vector<2x32xf32>, vector<32x128xf32>, vector<2x128xf32> -> vector<2x128xf32>
    %cst_78 = arith.constant dense<0.000000e+00> : vector<2x128xf32>
    %253 = tpu.matmul %232, %34, %cst_78 {dimension_numbers = #tpu.dot_dimension_numbers<[1], [0], [0], [1], [0, 0, 1, 1], [], []>} : vector<2x32xf32>, vector<32x128xf32>, vector<2x128xf32> -> vector<2x128xf32>
    %254 = arith.addf %252, %253 : vector<2x128xf32>
    %255 = vector.broadcast %38 : vector<1x128xf32> to vector<2x128xf32>
    %256 = arith.addf %254, %255 : vector<2x128xf32>
    %257 = arith.negf %256 : vector<2x128xf32>
    %258 = math.exp %257 : vector<2x128xf32>
    %cst_79 = arith.constant 1.000000e+00 : f32
    %259 = vector.broadcast %cst_79 : f32 to vector<2x128xf32>
    %260 = arith.addf %259, %258 : vector<2x128xf32>
    %261 = arith.divf %259, %260 : vector<2x128xf32>
    %262 = math.tanh %256 : vector<2x128xf32>
    %263 = vector.extract_strided_slice %261 {offsets = [0, 0], sizes = [2, 32], strides = [1, 1]} : vector<2x128xf32> to vector<2x32xf32>
    %264 = vector.extract_strided_slice %261 {offsets = [0, 32], sizes = [2, 32], strides = [1, 1]} : vector<2x128xf32> to vector<2x32xf32>
    %265 = vector.extract_strided_slice %262 {offsets = [0, 64], sizes = [2, 32], strides = [1, 1]} : vector<2x128xf32> to vector<2x32xf32>
    %266 = vector.extract_strided_slice %261 {offsets = [0, 96], sizes = [2, 32], strides = [1, 1]} : vector<2x128xf32> to vector<2x32xf32>
    %267 = arith.mulf %264, %230 : vector<2x32xf32>
    %268 = arith.mulf %263, %265 : vector<2x32xf32>
    %269 = arith.addf %267, %268 : vector<2x32xf32>
    %270 = math.tanh %269 : vector<2x32xf32>
    %271 = arith.mulf %266, %270 : vector<2x32xf32>
    %c10 = arith.constant 10 : index
    %c0_80 = arith.constant 0 : index
    %272 = vector.load %arg20[%c10, %c0_80] : memref<16x32xf32, #tpu.memory_space<vmem>>, vector<2x32xf32>
    tpu.vector_store %arg20[%c10, %c0_80], %271 {strides = array<i32>} : memref<16x32xf32, #tpu.memory_space<vmem>>, vector<2x32xf32>,
    %273 = vector.extract_strided_slice %22 {offsets = [12, 0], sizes = [2, 128], strides = [1, 1]} : vector<16x128xf32> to vector<2x128xf32>
    %cst_81 = arith.constant dense<0.000000e+00> : vector<2x128xf32>
    %274 = tpu.matmul %251, %32, %cst_81 {dimension_numbers = #tpu.dot_dimension_numbers<[1], [0], [0], [1], [0, 0, 1, 1], [], []>} : vector<2x32xf32>, vector<32x128xf32>, vector<2x128xf32> -> vector<2x128xf32>
    %275 = arith.addf %273, %274 : vector<2x128xf32>
    %276 = arith.negf %275 : vector<2x128xf32>
    %277 = math.exp %276 : vector<2x128xf32>
    %cst_82 = arith.constant 1.000000e+00 : f32
    %278 = vector.broadcast %cst_82 : f32 to vector<2x128xf32>
    %279 = arith.addf %278, %277 : vector<2x128xf32>
    %280 = arith.divf %278, %279 : vector<2x128xf32>
    %281 = math.tanh %275 : vector<2x128xf32>
    %282 = vector.extract_strided_slice %280 {offsets = [0, 0], sizes = [2, 32], strides = [1, 1]} : vector<2x128xf32> to vector<2x32xf32>
    %283 = vector.extract_strided_slice %280 {offsets = [0, 32], sizes = [2, 32], strides = [1, 1]} : vector<2x128xf32> to vector<2x32xf32>
    %284 = vector.extract_strided_slice %281 {offsets = [0, 64], sizes = [2, 32], strides = [1, 1]} : vector<2x128xf32> to vector<2x32xf32>
    %285 = vector.extract_strided_slice %280 {offsets = [0, 96], sizes = [2, 32], strides = [1, 1]} : vector<2x128xf32> to vector<2x32xf32>
    %286 = arith.mulf %283, %249 : vector<2x32xf32>
    %287 = arith.mulf %282, %284 : vector<2x32xf32>
    %288 = arith.addf %286, %287 : vector<2x32xf32>
    %289 = math.tanh %288 : vector<2x32xf32>
    %290 = arith.mulf %285, %289 : vector<2x32xf32>
    %cst_83 = arith.constant dense<0.000000e+00> : vector<2x128xf32>
    %291 = tpu.matmul %290, %36, %cst_83 {dimension_numbers = #tpu.dot_dimension_numbers<[1], [0], [0], [1], [0, 0, 1, 1], [], []>} : vector<2x32xf32>, vector<32x128xf32>, vector<2x128xf32> -> vector<2x128xf32>
    %cst_84 = arith.constant dense<0.000000e+00> : vector<2x128xf32>
    %292 = tpu.matmul %271, %34, %cst_84 {dimension_numbers = #tpu.dot_dimension_numbers<[1], [0], [0], [1], [0, 0, 1, 1], [], []>} : vector<2x32xf32>, vector<32x128xf32>, vector<2x128xf32> -> vector<2x128xf32>
    %293 = arith.addf %291, %292 : vector<2x128xf32>
    %294 = vector.broadcast %38 : vector<1x128xf32> to vector<2x128xf32>
    %295 = arith.addf %293, %294 : vector<2x128xf32>
    %296 = arith.negf %295 : vector<2x128xf32>
    %297 = math.exp %296 : vector<2x128xf32>
    %cst_85 = arith.constant 1.000000e+00 : f32
    %298 = vector.broadcast %cst_85 : f32 to vector<2x128xf32>
    %299 = arith.addf %298, %297 : vector<2x128xf32>
    %300 = arith.divf %298, %299 : vector<2x128xf32>
    %301 = math.tanh %295 : vector<2x128xf32>
    %302 = vector.extract_strided_slice %300 {offsets = [0, 0], sizes = [2, 32], strides = [1, 1]} : vector<2x128xf32> to vector<2x32xf32>
    %303 = vector.extract_strided_slice %300 {offsets = [0, 32], sizes = [2, 32], strides = [1, 1]} : vector<2x128xf32> to vector<2x32xf32>
    %304 = vector.extract_strided_slice %301 {offsets = [0, 64], sizes = [2, 32], strides = [1, 1]} : vector<2x128xf32> to vector<2x32xf32>
    %305 = vector.extract_strided_slice %300 {offsets = [0, 96], sizes = [2, 32], strides = [1, 1]} : vector<2x128xf32> to vector<2x32xf32>
    %306 = arith.mulf %303, %269 : vector<2x32xf32>
    %307 = arith.mulf %302, %304 : vector<2x32xf32>
    %308 = arith.addf %306, %307 : vector<2x32xf32>
    %309 = math.tanh %308 : vector<2x32xf32>
    %310 = arith.mulf %305, %309 : vector<2x32xf32>
    %c12 = arith.constant 12 : index
    %c0_86 = arith.constant 0 : index
    %311 = vector.load %arg20[%c12, %c0_86] : memref<16x32xf32, #tpu.memory_space<vmem>>, vector<2x32xf32>
    tpu.vector_store %arg20[%c12, %c0_86], %310 {strides = array<i32>} : memref<16x32xf32, #tpu.memory_space<vmem>>, vector<2x32xf32>,
    %312 = vector.extract_strided_slice %22 {offsets = [14, 0], sizes = [2, 128], strides = [1, 1]} : vector<16x128xf32> to vector<2x128xf32>
    %cst_87 = arith.constant dense<0.000000e+00> : vector<2x128xf32>
    %313 = tpu.matmul %290, %32, %cst_87 {dimension_numbers = #tpu.dot_dimension_numbers<[1], [0], [0], [1], [0, 0, 1, 1], [], []>} : vector<2x32xf32>, vector<32x128xf32>, vector<2x128xf32> -> vector<2x128xf32>
    %314 = arith.addf %312, %313 : vector<2x128xf32>
    %315 = arith.negf %314 : vector<2x128xf32>
    %316 = math.exp %315 : vector<2x128xf32>
    %cst_88 = arith.constant 1.000000e+00 : f32
    %317 = vector.broadcast %cst_88 : f32 to vector<2x128xf32>
    %318 = arith.addf %317, %316 : vector<2x128xf32>
    %319 = arith.divf %317, %318 : vector<2x128xf32>
    %320 = math.tanh %314 : vector<2x128xf32>
    %321 = vector.extract_strided_slice %319 {offsets = [0, 0], sizes = [2, 32], strides = [1, 1]} : vector<2x128xf32> to vector<2x32xf32>
    %322 = vector.extract_strided_slice %319 {offsets = [0, 32], sizes = [2, 32], strides = [1, 1]} : vector<2x128xf32> to vector<2x32xf32>
    %323 = vector.extract_strided_slice %320 {offsets = [0, 64], sizes = [2, 32], strides = [1, 1]} : vector<2x128xf32> to vector<2x32xf32>
    %324 = vector.extract_strided_slice %319 {offsets = [0, 96], sizes = [2, 32], strides = [1, 1]} : vector<2x128xf32> to vector<2x32xf32>
    %325 = arith.mulf %322, %288 : vector<2x32xf32>
    %326 = arith.mulf %321, %323 : vector<2x32xf32>
    %327 = arith.addf %325, %326 : vector<2x32xf32>
    %328 = math.tanh %327 : vector<2x32xf32>
    %329 = arith.mulf %324, %328 : vector<2x32xf32>
    %cst_89 = arith.constant dense<0.000000e+00> : vector<2x128xf32>
    %330 = tpu.matmul %329, %36, %cst_89 {dimension_numbers = #tpu.dot_dimension_numbers<[1], [0], [0], [1], [0, 0, 1, 1], [], []>} : vector<2x32xf32>, vector<32x128xf32>, vector<2x128xf32> -> vector<2x128xf32>
    %cst_90 = arith.constant dense<0.000000e+00> : vector<2x128xf32>
    %331 = tpu.matmul %310, %34, %cst_90 {dimension_numbers = #tpu.dot_dimension_numbers<[1], [0], [0], [1], [0, 0, 1, 1], [], []>} : vector<2x32xf32>, vector<32x128xf32>, vector<2x128xf32> -> vector<2x128xf32>
    %332 = arith.addf %330, %331 : vector<2x128xf32>
    %333 = vector.broadcast %38 : vector<1x128xf32> to vector<2x128xf32>
    %334 = arith.addf %332, %333 : vector<2x128xf32>
    %335 = arith.negf %334 : vector<2x128xf32>
    %336 = math.exp %335 : vector<2x128xf32>
    %cst_91 = arith.constant 1.000000e+00 : f32
    %337 = vector.broadcast %cst_91 : f32 to vector<2x128xf32>
    %338 = arith.addf %337, %336 : vector<2x128xf32>
    %339 = arith.divf %337, %338 : vector<2x128xf32>
    %340 = math.tanh %334 : vector<2x128xf32>
    %341 = vector.extract_strided_slice %339 {offsets = [0, 0], sizes = [2, 32], strides = [1, 1]} : vector<2x128xf32> to vector<2x32xf32>
    %342 = vector.extract_strided_slice %339 {offsets = [0, 32], sizes = [2, 32], strides = [1, 1]} : vector<2x128xf32> to vector<2x32xf32>
    %343 = vector.extract_strided_slice %340 {offsets = [0, 64], sizes = [2, 32], strides = [1, 1]} : vector<2x128xf32> to vector<2x32xf32>
    %344 = vector.extract_strided_slice %339 {offsets = [0, 96], sizes = [2, 32], strides = [1, 1]} : vector<2x128xf32> to vector<2x32xf32>
    %345 = arith.mulf %342, %308 : vector<2x32xf32>
    %346 = arith.mulf %341, %343 : vector<2x32xf32>
    %347 = arith.addf %345, %346 : vector<2x32xf32>
    %348 = math.tanh %347 : vector<2x32xf32>
    %349 = arith.mulf %344, %348 : vector<2x32xf32>
    %c14 = arith.constant 14 : index
    %c0_92 = arith.constant 0 : index
    %350 = vector.load %arg20[%c14, %c0_92] : memref<16x32xf32, #tpu.memory_space<vmem>>, vector<2x32xf32>
    tpu.vector_store %arg20[%c14, %c0_92], %349 {strides = array<i32>} : memref<16x32xf32, #tpu.memory_space<vmem>>, vector<2x32xf32>,
    %c0_93 = arith.constant 0 : index
    %c0_94 = arith.constant 0 : index
    %351 = vector.load %arg12[%c0_93, %c0_94] : memref<32x32xf32, #tpu.memory_space<vmem>>, vector<32x32xf32>
    %cst_95 = arith.constant dense<0.000000e+00> : vector<16x32xf32>
    %352 = tpu.matmul %7, %351, %cst_95 {dimension_numbers = #tpu.dot_dimension_numbers<[1], [0], [0], [1], [0, 0, 1, 1], [], []>} : vector<16x32xf32>, vector<32x32xf32>, vector<16x32xf32> -> vector<16x32xf32>
    %c0_96 = arith.constant 0 : index
    %c0_97 = arith.constant 0 : index
    %353 = vector.load %arg20[%c0_96, %c0_97] : memref<16x32xf32, #tpu.memory_space<vmem>>, vector<16x32xf32>
    %c0_98 = arith.constant 0 : index
    %c0_99 = arith.constant 0 : index
    %354 = vector.load %arg13[%c0_98, %c0_99] : memref<32x32xf32, #tpu.memory_space<vmem>>, vector<32x32xf32>
    %cst_100 = arith.constant dense<0.000000e+00> : vector<16x32xf32>
    %355 = tpu.matmul %353, %354, %cst_100 {dimension_numbers = #tpu.dot_dimension_numbers<[1], [0], [0], [1], [0, 0, 1, 1], [], []>} : vector<16x32xf32>, vector<32x32xf32>, vector<16x32xf32> -> vector<16x32xf32>
    %356 = arith.addf %352, %355 : vector<16x32xf32>
    %c0_101 = arith.constant 0 : index
    %c0_102 = arith.constant 0 : index
    %357 = vector.load %arg14[%c0_101, %c0_102] : memref<1x32xf32, #tpu.memory_space<vmem>>, vector<1x32xf32>
    %358 = vector.broadcast %357 : vector<1x32xf32> to vector<16x32xf32>
    %359 = arith.addf %356, %358 : vector<16x32xf32>
    %cst_103 = arith.constant 0.000000e+00 : f32
    %360 = vector.broadcast %cst_103 : f32 to vector<16x32xf32>
    %361 = arith.maximumf %359, %360 : vector<16x32xf32>
    %c0_104 = arith.constant 0 : index
    %c0_105 = arith.constant 0 : index
    %362 = vector.load %arg15[%c0_104, %c0_105] : memref<32x1xf32, #tpu.memory_space<vmem>>, vector<32x1xf32>
    %cst_106 = arith.constant dense<0.000000e+00> : vector<16x1xf32>
    %363 = tpu.matmul %361, %362, %cst_106 {dimension_numbers = #tpu.dot_dimension_numbers<[1], [0], [0], [1], [0, 0, 1, 1], [], []>} : vector<16x32xf32>, vector<32x1xf32>, vector<16x1xf32> -> vector<16x1xf32>
    %c0_107 = arith.constant 0 : index
    %c0_108 = arith.constant 0 : index
    %364 = vector.load %arg16[%c0_107, %c0_108] : memref<1x1xf32, #tpu.memory_space<vmem>>, vector<1x1xf32>
    %365 = vector.broadcast %364 : vector<1x1xf32> to vector<16x1xf32>
    %366 = arith.addf %363, %365 : vector<16x1xf32>
    %c0_109 = arith.constant 0 : index
    %c0_110 = arith.constant 0 : index
    %367 = vector.load %arg17[%c0_109, %c0_110] : memref<16x1xf32, #tpu.memory_space<vmem>>, vector<16x1xf32>
    tpu.vector_store %arg17[%c0_109, %c0_110], %366 {strides = array<i32>} : memref<16x1xf32, #tpu.memory_space<vmem>>, vector<16x1xf32>,
    %c0_111 = arith.constant 0 : index
    %c0_112 = arith.constant 0 : index
    %c0_113 = arith.constant 0 : index
    %368 = vector.load %arg18[%c0_111, %c0_112, %c0_113] : memref<2x2x32xf32, #tpu.memory_space<vmem>>, vector<1x2x32xf32>
    %369 = vector.shape_cast %368 : vector<1x2x32xf32> to vector<2x32xf32>
    %370 = vector.shape_cast %329 : vector<2x32xf32> to vector<1x2x32xf32>
    tpu.vector_store %arg18[%c0_111, %c0_112, %c0_113], %370 {strides = array<i32>} : memref<2x2x32xf32, #tpu.memory_space<vmem>>, vector<1x2x32xf32>,
    %c0_114 = arith.constant 0 : index
    %c0_115 = arith.constant 0 : index
    %c0_116 = arith.constant 0 : index
    %371 = vector.load %arg19[%c0_114, %c0_115, %c0_116] : memref<2x2x32xf32, #tpu.memory_space<vmem>>, vector<1x2x32xf32>
    %372 = vector.shape_cast %371 : vector<1x2x32xf32> to vector<2x32xf32>
    %373 = vector.shape_cast %327 : vector<2x32xf32> to vector<1x2x32xf32>
    tpu.vector_store %arg19[%c0_114, %c0_115, %c0_116], %373 {strides = array<i32>} : memref<2x2x32xf32, #tpu.memory_space<vmem>>, vector<1x2x32xf32>,
    %c1_117 = arith.constant 1 : index
    %c0_118 = arith.constant 0 : index
    %c0_119 = arith.constant 0 : index
    %374 = vector.load %arg18[%c1_117, %c0_118, %c0_119] : memref<2x2x32xf32, #tpu.memory_space<vmem>>, vector<1x2x32xf32>
    %375 = vector.shape_cast %374 : vector<1x2x32xf32> to vector<2x32xf32>
    %376 = vector.shape_cast %349 : vector<2x32xf32> to vector<1x2x32xf32>
    tpu.vector_store %arg18[%c1_117, %c0_118, %c0_119], %376 {strides = array<i32>} : memref<2x2x32xf32, #tpu.memory_space<vmem>>, vector<1x2x32xf32>,
    %c1_120 = arith.constant 1 : index
    %c0_121 = arith.constant 0 : index
    %c0_122 = arith.constant 0 : index
    %377 = vector.load %arg19[%c1_120, %c0_121, %c0_122] : memref<2x2x32xf32, #tpu.memory_space<vmem>>, vector<1x2x32xf32>
    %378 = vector.shape_cast %377 : vector<1x2x32xf32> to vector<2x32xf32>
    %379 = vector.shape_cast %347 : vector<2x32xf32> to vector<1x2x32xf32>
    tpu.vector_store %arg19[%c1_120, %c0_121, %c0_122], %379 {strides = array<i32>} : memref<2x2x32xf32, #tpu.memory_space<vmem>>, vector<1x2x32xf32>,
    return
  }
  func.func @transform_0(%arg0: i32) -> (i32, i32) {
    %c0_i32 = arith.constant 0 : i32
    %c0_i32_0 = arith.constant 0 : i32
    %c0_i32_1 = arith.constant 0 : i32
    return %c0_i32, %c0_i32_0 : i32, i32
  }
  func.func @transform_1(%arg0: i32) -> (i32, i32) {
    %c0_i32 = arith.constant 0 : i32
    %c0_i32_0 = arith.constant 0 : i32
    %c0_i32_1 = arith.constant 0 : i32
    return %c0_i32, %c0_i32_0 : i32, i32
  }
  func.func @transform_2(%arg0: i32) -> (i32, i32, i32) {
    %c0_i32 = arith.constant 0 : i32
    %c0_i32_0 = arith.constant 0 : i32
    %c0_i32_1 = arith.constant 0 : i32
    %c0_i32_2 = arith.constant 0 : i32
    return %c0_i32, %c0_i32_0, %c0_i32_1 : i32, i32, i32
  }
  func.func @transform_3(%arg0: i32) -> (i32, i32, i32) {
    %c0_i32 = arith.constant 0 : i32
    %c0_i32_0 = arith.constant 0 : i32
    %c0_i32_1 = arith.constant 0 : i32
    %c0_i32_2 = arith.constant 0 : i32
    return %c0_i32, %c0_i32_0, %c0_i32_1 : i32, i32, i32
  }
  func.func @transform_4(%arg0: i32) -> (i32, i32) {
    %c0_i32 = arith.constant 0 : i32
    %c0_i32_0 = arith.constant 0 : i32
    %c0_i32_1 = arith.constant 0 : i32
    return %c0_i32, %c0_i32_0 : i32, i32
  }
  func.func @transform_5(%arg0: i32) -> (i32, i32) {
    %c0_i32 = arith.constant 0 : i32
    %c0_i32_0 = arith.constant 0 : i32
    %c0_i32_1 = arith.constant 0 : i32
    return %c0_i32, %c0_i32_0 : i32, i32
  }
  func.func @transform_6(%arg0: i32) -> (i32, i32) {
    %c0_i32 = arith.constant 0 : i32
    %c0_i32_0 = arith.constant 0 : i32
    %c0_i32_1 = arith.constant 0 : i32
    return %c0_i32, %c0_i32_0 : i32, i32
  }
  func.func @transform_7(%arg0: i32) -> (i32, i32) {
    %c0_i32 = arith.constant 0 : i32
    %c0_i32_0 = arith.constant 0 : i32
    %c0_i32_1 = arith.constant 0 : i32
    return %c0_i32, %c0_i32_0 : i32, i32
  }
  func.func @transform_8(%arg0: i32) -> (i32, i32, i32) {
    %c0_i32 = arith.constant 0 : i32
    %c0_i32_0 = arith.constant 0 : i32
    %c0_i32_1 = arith.constant 0 : i32
    %c0_i32_2 = arith.constant 0 : i32
    return %c0_i32, %c0_i32_0, %c0_i32_1 : i32, i32, i32
  }
  func.func @transform_9(%arg0: i32) -> (i32, i32, i32) {
    %c0_i32 = arith.constant 0 : i32
    %c0_i32_0 = arith.constant 0 : i32
    %c0_i32_1 = arith.constant 0 : i32
    %c0_i32_2 = arith.constant 0 : i32
    return %c0_i32, %c0_i32_0, %c0_i32_1 : i32, i32, i32
  }
  func.func @transform_10(%arg0: i32) -> (i32, i32, i32) {
    %c0_i32 = arith.constant 0 : i32
    %c0_i32_0 = arith.constant 0 : i32
    %c0_i32_1 = arith.constant 0 : i32
    %c0_i32_2 = arith.constant 0 : i32
    return %c0_i32, %c0_i32_0, %c0_i32_1 : i32, i32, i32
  }
  func.func @transform_11(%arg0: i32) -> (i32, i32) {
    %c0_i32 = arith.constant 0 : i32
    %c0_i32_0 = arith.constant 0 : i32
    %c0_i32_1 = arith.constant 0 : i32
    return %c0_i32, %c0_i32_0 : i32, i32
  }
  func.func @transform_12(%arg0: i32) -> (i32, i32) {
    %c0_i32 = arith.constant 0 : i32
    %c0_i32_0 = arith.constant 0 : i32
    %c0_i32_1 = arith.constant 0 : i32
    return %c0_i32, %c0_i32_0 : i32, i32
  }
  func.func @transform_13(%arg0: i32) -> (i32, i32) {
    %c0_i32 = arith.constant 0 : i32
    %c0_i32_0 = arith.constant 0 : i32
    %c0_i32_1 = arith.constant 0 : i32
    return %c0_i32, %c0_i32_0 : i32, i32
  }
  func.func @transform_14(%arg0: i32) -> (i32, i32) {
    %c0_i32 = arith.constant 0 : i32
    %c0_i32_0 = arith.constant 0 : i32
    %c0_i32_1 = arith.constant 0 : i32
    return %c0_i32, %c0_i32_0 : i32, i32
  }
  func.func @transform_15(%arg0: i32) -> (i32, i32) {
    %c0_i32 = arith.constant 0 : i32
    %c0_i32_0 = arith.constant 0 : i32
    %c0_i32_1 = arith.constant 0 : i32
    return %c0_i32, %c0_i32_0 : i32, i32
  }
  func.func @transform_16(%arg0: i32) -> (i32, i32) {
    %c0_i32 = arith.constant 0 : i32
    %c0_i32_0 = arith.constant 0 : i32
    %c0_i32_1 = arith.constant 0 : i32
    return %c0_i32, %c0_i32_0 : i32, i32
  }
  func.func @transform_17(%arg0: i32) -> (i32, i32, i32) {
    %c0_i32 = arith.constant 0 : i32
    %c0_i32_0 = arith.constant 0 : i32
    %c0_i32_1 = arith.constant 0 : i32
    %c0_i32_2 = arith.constant 0 : i32
    return %c0_i32, %c0_i32_0, %c0_i32_1 : i32, i32, i32
  }
  func.func @transform_18(%arg0: i32) -> (i32, i32, i32) {
    %c0_i32 = arith.constant 0 : i32
    %c0_i32_0 = arith.constant 0 : i32
    %c0_i32_1 = arith.constant 0 : i32
    %c0_i32_2 = arith.constant 0 : i32
    return %c0_i32, %c0_i32_0, %c0_i32_1 : i32, i32, i32
  }
}

</mosaic_0001>

<llo_original>
// kernel: critic_forward.1
$region0: #{critic_forward.1}
  #allocation0 [shape = 'u32[]', space=smem, size = 0x4, offset = 0x4, fixed_abs, tag = 'smem constant byte address 0x4 - core index']
  #allocation1 [shape = 'u32[144,128]{1,0:T(1,128)}', space=vmem, size = 0x12000, scoped, tag = 'internal scratch']
  #allocation2 [shape = 'f32[16,32]{1,0:T(8,128)}', space=vmem, size = 0x2000, scoped, tag = 'scratch operand']
  #allocation3 [shape = 'f32[1,1]{1,0:T(1,128)S(1)}', space=vmem, size = 0x200, scoped, tag = 'scoped memory for critic_forward.1']
  %s0 = inlined_call_operand.vmem [shape: f32[16,12], index: 0, kind: input, shape index: {}]
  %s1 = inlined_call_operand.vmem [shape: f32[16,12], index: 1, kind: input, shape index: {}]
  %s2 = inlined_call_operand.vmem [shape: f32[2,2,32], index: 2, kind: input, shape index: {}]
  %s3 = inlined_call_operand.vmem [shape: f32[2,2,32], index: 3, kind: input, shape index: {}]
  %s4 = inlined_call_operand.vmem [shape: f32[12,32], index: 4, kind: input, shape index: {}]
  %s5 = inlined_call_operand.vmem [shape: f32[1,32], index: 5, kind: input, shape index: {}]
  %s6 = inlined_call_operand.vmem [shape: f32[12,32], index: 6, kind: input, shape index: {}]
  %s7 = inlined_call_operand.vmem [shape: f32[1,32], index: 7, kind: input, shape index: {}]
  %s8 = inlined_call_operand.vmem [shape: f32[2,32,128], index: 8, kind: input, shape index: {}]
  %s9 = inlined_call_operand.vmem [shape: f32[2,32,128], index: 9, kind: input, shape index: {}]
  %s10 = inlined_call_operand.vmem [shape: f32[2,1,128], index: 10, kind: input, shape index: {}]
  %s11 = inlined_call_operand.vmem [shape: f32[32,32], index: 11, kind: input, shape index: {}]
  %s12 = inlined_call_operand.vmem [shape: f32[32,32], index: 12, kind: input, shape index: {}]
  %s13 = inlined_call_operand.vmem [shape: f32[1,32], index: 13, kind: input, shape index: {}]
  %s14 = inlined_call_operand.vmem [shape: f32[32,1], index: 14, kind: input, shape index: {}]
  %s15 = inlined_call_operand.<no memory space> [shape: f32[1,1], index: 15, kind: input, shape index: {}]
  %s16 = inlined_call_operand.vmem [shape: f32[16,1], index: 16, kind: output, shape index: {0}]
  %s17 = inlined_call_operand.hbm [shape: f32[2,2,32], index: 17, kind: output, shape index: {1}]
  %s18 = inlined_call_operand.hbm [shape: f32[2,2,32], index: 18, kind: output, shape index: {2}]
  %19 = xla_tuple %s16, %s17, %s18
  %s20 = sld [smem:[#allocation0]]
  $region90: #{critic_forward.1} parent=0
    _
  %s22 = ssub.s32 1, %s20
  %s23 = scalar_select 0, %s22, %s20
  %v24 = vstv %s15
  %25 = vst [vmem:[#allocation3] sm:$0x1] %v24
  $region1: #{critic_forward.1} parent=0
    #allocation4 [shape = 'u8[2048]{0}', space=vmem, size = 0x800, scoped, tag = 'output window, operand 1, single buffered']
    #allocation5 [shape = 's32[1]{0}', space=sflag, size = 0x4, scoped, tag = 'scoped memory for critic_forward.1']
    #allocation6 [shape = 'u8[2048]{0}', space=vmem, size = 0x800, scoped, tag = 'output window, operand 2, single buffered']
    #allocation7 [shape = 's32[1]{0}', space=sflag, size = 0x4, scoped, tag = 'scoped memory for critic_forward.1']
    %26 = vsyncpa [#allocation5], 0
    %27 = vsyncpa [#allocation7], 0
    // Predicated region
    $region2: #{critic_forward.1} parent=1 // pred_check
      _
    $region3: #{critic_forward.1} parent=1 // pred_check_branch
      %29 = sbr.rel (0) target = $region5
    $region4: #{critic_forward.1} parent=1 // pred_region
      _
    $region5: #{critic_forward.1} parent=1 // pred_fallthru
      _
    // Predicated region
    $region6: #{critic_forward.1} parent=1 // pred_check
      _
    $region7: #{critic_forward.1} parent=1 // pred_check_branch
      %31 = sbr.rel (0) target = $region9
    $region8: #{critic_forward.1} parent=1 // pred_region
      _
    $region9: #{critic_forward.1} parent=1 // pred_fallthru
      _
    // Predicated region
    $region10: #{critic_forward.1} parent=1 // pred_check
      _
    $region11: #{critic_forward.1} parent=1 // pred_check_branch
      %33 = sbr.rel (0) target = $region13
    $region12: #{critic_forward.1} parent=1 // pred_region
      _
    $region13: #{critic_forward.1} parent=1 // pred_fallthru
      _
    // Predicated region
    $region14: #{critic_forward.1} parent=1 // pred_check
      _
    $region15: #{critic_forward.1} parent=1 // pred_check_branch
      %35 = sbr.rel (0) target = $region17
    $region16: #{critic_forward.1} parent=1 // pred_region
      _
    $region17: #{critic_forward.1} parent=1 // pred_fallthru
      _
    // Predicated region
    $region18: #{critic_forward.1} parent=1 // pred_check
      _
    $region19: #{critic_forward.1} parent=1 // pred_check_branch
      %37 = sbr.rel (0) target = $region21
    $region20: #{critic_forward.1} parent=1 // pred_region
      _
    $region21: #{critic_forward.1} parent=1 // pred_fallthru
      _
    // Predicated region
    $region22: #{critic_forward.1} parent=1 // pred_check
      _
    $region23: #{critic_forward.1} parent=1 // pred_check_branch
      %39 = sbr.rel (0) target = $region25
    $region24: #{critic_forward.1} parent=1 // pred_region
      _
    $region25: #{critic_forward.1} parent=1 // pred_fallthru
      _
    // Predicated region
    $region26: #{critic_forward.1} parent=1 // pred_check
      _
    $region27: #{critic_forward.1} parent=1 // pred_check_branch
      %41 = sbr.rel (0) target = $region29
    $region28: #{critic_forward.1} parent=1 // pred_region
      _
    $region29: #{critic_forward.1} parent=1 // pred_fallthru
      _
    // Predicated region
    $region30: #{critic_forward.1} parent=1 // pred_check
      _
    $region31: #{critic_forward.1} parent=1 // pred_check_branch
      %43 = sbr.rel (0) target = $region33
    $region32: #{critic_forward.1} parent=1 // pred_region
      _
    $region33: #{critic_forward.1} parent=1 // pred_fallthru
      _
    // Predicated region
    $region34: #{critic_forward.1} parent=1 // pred_check
      _
    $region35: #{critic_forward.1} parent=1 // pred_check_branch
      %45 = sbr.rel (0) target = $region37
    $region36: #{critic_forward.1} parent=1 // pred_region
      _
    $region37: #{critic_forward.1} parent=1 // pred_fallthru
      _
    // Predicated region
    $region38: #{critic_forward.1} parent=1 // pred_check
      _
    $region39: #{critic_forward.1} parent=1 // pred_check_branch
      %47 = sbr.rel (0) target = $region41
    $region40: #{critic_forward.1} parent=1 // pred_region
      _
    $region41: #{critic_forward.1} parent=1 // pred_fallthru
      _
    // Predicated region
    $region42: #{critic_forward.1} parent=1 // pred_check
      _
    $region43: #{critic_forward.1} parent=1 // pred_check_branch
      %49 = sbr.rel (0) target = $region45
    $region44: #{critic_forward.1} parent=1 // pred_region
      _
    $region45: #{critic_forward.1} parent=1 // pred_fallthru
      _
    // Predicated region
    $region46: #{critic_forward.1} parent=1 // pred_check
      _
    $region47: #{critic_forward.1} parent=1 // pred_check_branch
      %51 = sbr.rel (0) target = $region49
    $region48: #{critic_forward.1} parent=1 // pred_region
      _
    $region49: #{critic_forward.1} parent=1 // pred_fallthru
      _
    // Predicated region
    $region50: #{critic_forward.1} parent=1 // pred_check
      _
    $region51: #{critic_forward.1} parent=1 // pred_check_branch
      %53 = sbr.rel (0) target = $region53
    $region52: #{critic_forward.1} parent=1 // pred_region
      _
    $region53: #{critic_forward.1} parent=1 // pred_fallthru
      _
    // Predicated region
    $region54: #{critic_forward.1} parent=1 // pred_check
      _
    $region55: #{critic_forward.1} parent=1 // pred_check_branch
      %55 = sbr.rel (0) target = $region57
    $region56: #{critic_forward.1} parent=1 // pred_region
      _
    $region57: #{critic_forward.1} parent=1 // pred_fallthru
      _
    // Predicated region
    $region58: #{critic_forward.1} parent=1 // pred_check
      _
    $region59: #{critic_forward.1} parent=1 // pred_check_branch
      %57 = sbr.rel (0) target = $region61
    $region60: #{critic_forward.1} parent=1 // pred_region
      _
    $region61: #{critic_forward.1} parent=1 // pred_fallthru
      _
    // Predicated region
    $region62: #{critic_forward.1} parent=1 // pred_check
      _
    $region63: #{critic_forward.1} parent=1 // pred_check_branch
      %59 = sbr.rel (0) target = $region65
    $region64: #{critic_forward.1} parent=1 // pred_region
      _
    $region65: #{critic_forward.1} parent=1 // pred_fallthru
      _
    %v60 = vld [vmem:[%s0] sm:$0xff]
    %v61 = vld [vmem:[%s0 + $0x8] sm:$0xff]
    %v62 = vld [vmem:[%s4] sm:$0xff]
    %v63 = vld [vmem:[%s4 + $0x8] sm:$0xf]
    %v64 = vld [vmem:[%s5] sm:$0x1]
    %v66 = vlaneseq
    %v67 = vshrl.u32 %v66, 7
    %v68 = vsub.s32 0, %v67
    %v69 = vrot.slane %v64, %v68
    %vm71 = vcmask 97280
    %v73 = vsel %vm71, %v60, 0
    %v76 = vsel %vm71, %v61, 0
    %vm78 = vcmask 1043456
    %v80 = vsel %vm78, %v63, 0
    %82 = vmatprep.subr.mxu0 0.0
    %83 = vmatpush1.msra.mxu0 %v62
    %84 = vmatprep.subr.mxu0 0.0
    %85 = vmatpush1.msra.mxu0 %v80
    %86 = vmatprep.subr.mxu0 0.0
    %87 = vmatpush1.msra.mxu0 0.0
    %88 = vmatprep.subr.mxu0 0.0
    %89 = vmatpush1.msra.mxu0 0.0
    %90 = vmatprep.subr.mxu0 0.0
    %91 = vmatpush1.msra.mxu0 0.0
    %92 = vmatprep.subr.mxu0 0.0
    %93 = vmatpush1.msra.mxu0 0.0
    %94 = vmatprep.subr.mxu0 0.0
    %95 = vmatpush1.msra.mxu0 0.0
    %96 = vmatprep.subr.mxu0 0.0
    %97 = vmatpush1.msra.mxu0 0.0
    %98 = vmatprep.subr.mxu0 0.0
    %99 = vmatpush1.msra.mxu0 0.0
    %100 = vmatprep.subr.mxu0 0.0
    %101 = vmatpush1.msra.mxu0 0.0
    %102 = vmatprep.subr.mxu0 0.0
    %103 = vmatpush1.msra.mxu0 0.0
    %104 = vmatprep.subr.mxu0 0.0
    %105 = vmatpush1.msra.mxu0 0.0
    %106 = vmatprep.subr.mxu0 0.0
    %107 = vmatpush1.msra.mxu0 0.0
    %108 = vmatprep.subr.mxu0 0.0
    %109 = vmatpush1.msra.mxu0 0.0
    %110 = vmatprep.subr.mxu0 0.0
    %111 = vmatpush1.msra.mxu0 0.0
    %112 = vmatprep.subr.mxu0 0.0
    %113 = vmatpush1.msra.mxu0 0.0
    %114 = vmatprep.subr.mxu0 0.0
    %115 = vmatpush1.msra.mxu0 0.0
    %116 = vmatprep.subr.mxu0 0.0
    %117 = vmatpush1.msra.mxu0 0.0
    %118 = vmatprep.subr.mxu0 0.0
    %119 = vmatpush1.msra.mxu0 0.0
    %120 = vmatprep.subr.mxu0 0.0
    %121 = vmatpush1.msra.mxu0 0.0
    %122 = vmatprep.subr.mxu0 0.0
    %123 = vmatpush1.msra.mxu0 0.0
    %124 = vmatprep.subr.mxu0 0.0
    %125 = vmatpush1.msra.mxu0 0.0
    %126 = vmatprep.subr.mxu0 0.0
    %127 = vmatpush1.msra.mxu0 0.0
    %128 = vmatprep.subr.mxu0 0.0
    %129 = vmatpush1.msra.mxu0 0.0
    %130 = vmatprep.subr.mxu0 0.0
    %131 = vmatpush1.msra.mxu0 0.0
    %132 = vmatprep.subr.mxu0 0.0
    %133 = vmatpush1.msra.mxu0 0.0
    %134 = vmatprep.subr.mxu0 0.0
    %135 = vmatpush1.msra.mxu0 0.0
    %136 = vmatprep.subr.mxu0 0.0
    %137 = vmatpush1.msra.mxu0 0.0
    %138 = vmatprep.subr.mxu0 0.0
    %139 = vmatpush1.msra.mxu0 0.0
    %140 = vmatprep.subr.mxu0 0.0
    %141 = vmatpush1.msra.mxu0 0.0
    %142 = vmatprep.subr.mxu0 0.0
    %143 = vmatpush1.msra.mxu0 0.0
    %144 = vmatprep.subr.mxu0 0.0
    %145 = vmatpush1.msra.mxu0 0.0
    %146 = vmatprep.mubr.f32.mxu0 0.0
    %147 = vmatmul.mubr.f32.gmra.mrb[0].mxu0 %v73
    %v148 = vpop.f32.mrb[0].mxu0
    %v149 = vadd.f32 %v69, %v148
    %v150 = vpop.f32.mrb[0].mxu0
    %151 = vmatprep.mubr.f32.mxu0 0.0
    %152 = vmatmul.mubr.f32.gmra.mrb[0].mxu0 %v76
    %v153 = vpop.f32.mrb[0].mxu0
    %v154 = vadd.f32 %v69, %v153
    %v155 = vpop.f32.mrb[0].mxu0
    %156 = vdwg.mxu0
    %v157 = vmax.f32 %v149, 0.0
    %v158 = vmax.f32 %v154, 0.0
    %v159 = vld [vmem:[%s1] sm:$0xff]
    %v160 = vld [vmem:[%s1 + $0x8] sm:$0xff]
    %v161 = vld [vmem:[%s6] sm:$0xff]
    %v162 = vld [vmem:[%s6 + $0x8] sm:$0xf]
    %v163 = vld [vmem:[%s7] sm:$0x1]
    %v165 = vlaneseq
    %v166 = vshrl.u32 %v165, 7
    %v167 = vsub.s32 0, %v166
    %v168 = vrot.slane %v163, %v167
    %v171 = vsel %vm71, %v159, 0
    %v174 = vsel %vm71, %v160, 0
    %v177 = vsel %vm78, %v162, 0
    %179 = vmatprep.subr.mxu0 0.0
    %180 = vmatpush1.msra.mxu0 %v161
    %181 = vmatprep.subr.mxu0 0.0
    %182 = vmatpush1.msra.mxu0 %v177
    %183 = vmatprep.subr.mxu0 0.0
    %184 = vmatpush1.msra.mxu0 0.0
    %185 = vmatprep.subr.mxu0 0.0
    %186 = vmatpush1.msra.mxu0 0.0
    %187 = vmatprep.subr.mxu0 0.0
    %188 = vmatpush1.msra.mxu0 0.0
    %189 = vmatprep.subr.mxu0 0.0
    %190 = vmatpush1.msra.mxu0 0.0
    %191 = vmatprep.subr.mxu0 0.0
    %192 = vmatpush1.msra.mxu0 0.0
    %193 = vmatprep.subr.mxu0 0.0
    %194 = vmatpush1.msra.mxu0 0.0
    %195 = vmatprep.subr.mxu0 0.0
    %196 = vmatpush1.msra.mxu0 0.0
    %197 = vmatprep.subr.mxu0 0.0
    %198 = vmatpush1.msra.mxu0 0.0
    %199 = vmatprep.subr.mxu0 0.0
    %200 = vmatpush1.msra.mxu0 0.0
    %201 = vmatprep.subr.mxu0 0.0
    %202 = vmatpush1.msra.mxu0 0.0
    %203 = vmatprep.subr.mxu0 0.0
    %204 = vmatpush1.msra.mxu0 0.0
    %205 = vmatprep.subr.mxu0 0.0
    %206 = vmatpush1.msra.mxu0 0.0
    %207 = vmatprep.subr.mxu0 0.0
    %208 = vmatpush1.msra.mxu0 0.0
    %209 = vmatprep.subr.mxu0 0.0
    %210 = vmatpush1.msra.mxu0 0.0
    %211 = vmatprep.subr.mxu0 0.0
    %212 = vmatpush1.msra.mxu0 0.0
    %213 = vmatprep.subr.mxu0 0.0
    %214 = vmatpush1.msra.mxu0 0.0
    %215 = vmatprep.subr.mxu0 0.0
    %216 = vmatpush1.msra.mxu0 0.0
    %217 = vmatprep.subr.mxu0 0.0
    %218 = vmatpush1.msra.mxu0 0.0
    %219 = vmatprep.subr.mxu0 0.0
    %220 = vmatpush1.msra.mxu0 0.0
    %221 = vmatprep.subr.mxu0 0.0
    %222 = vmatpush1.msra.mxu0 0.0
    %223 = vmatprep.subr.mxu0 0.0
    %224 = vmatpush1.msra.mxu0 0.0
    %225 = vmatprep.subr.mxu0 0.0
    %226 = vmatpush1.msra.mxu0 0.0
    %227 = vmatprep.subr.mxu0 0.0
    %228 = vmatpush1.msra.mxu0 0.0
    %229 = vmatprep.subr.mxu0 0.0
    %230 = vmatpush1.msra.mxu0 0.0
    %231 = vmatprep.subr.mxu0 0.0
    %232 = vmatpush1.msra.mxu0 0.0
    %233 = vmatprep.subr.mxu0 0.0
    %234 = vmatpush1.msra.mxu0 0.0
    %235 = vmatprep.subr.mxu0 0.0
    %236 = vmatpush1.msra.mxu0 0.0
    %237 = vmatprep.subr.mxu0 0.0
    %238 = vmatpush1.msra.mxu0 0.0
    %239 = vmatprep.subr.mxu0 0.0
    %240 = vmatpush1.msra.mxu0 0.0
    %241 = vmatprep.subr.mxu0 0.0
    %242 = vmatpush1.msra.mxu0 0.0
    %243 = vmatprep.mubr.f32.mxu0 0.0
    %244 = vmatmul.mubr.f32.gmra.mrb[0].mxu0 %v171
    %v245 = vpop.f32.mrb[0].mxu0
    %v246 = vadd.f32 %v168, %v245
    %v247 = vpop.f32.mrb[0].mxu0
    %248 = vmatprep.mubr.f32.mxu0 0.0
    %249 = vmatmul.mubr.f32.gmra.mrb[0].mxu0 %v174
    %v250 = vpop.f32.mrb[0].mxu0
    %v251 = vadd.f32 %v168, %v250
    %v252 = vpop.f32.mrb[0].mxu0
    %253 = vdwg.mxu0
    %v254 = vmax.f32 %v246, 0.0
    %v255 = vmax.f32 %v251, 0.0
    %v256 = vld [vmem:[%s8] sm:$0xff]
    %v257 = vld [vmem:[%s8 + $0x8] sm:$0xff]
    %v258 = vld [vmem:[%s8 + $0x10] sm:$0xff]
    %v259 = vld [vmem:[%s8 + $0x18] sm:$0xff]
    %v260 = vld [vmem:[%s10] sm:$0x1]
    %v262 = vlaneseq
    %v263 = vshrl.u32 %v262, 7
    %v264 = vsub.s32 0, %v263
    %v265 = vrot.slane %v260, %v264
    %vm267 = vcmask 261120
    %v269 = vsel %vm267, %v254, 0
    %v272 = vsel %vm267, %v255, 0
    %274 = vmatprep.subr.mxu0 0.0
    %275 = vmatpush1.msra.mxu0 %v256
    %276 = vmatprep.subr.mxu0 0.0
    %277 = vmatpush1.msra.mxu0 %v257
    %278 = vmatprep.subr.mxu0 0.0
    %279 = vmatpush1.msra.mxu0 %v258
    %280 = vmatprep.subr.mxu0 0.0
    %281 = vmatpush1.msra.mxu0 %v259
    %282 = vmatprep.subr.mxu0 0.0
    %283 = vmatpush1.msra.mxu0 0.0
    %284 = vmatprep.subr.mxu0 0.0
    %285 = vmatpush1.msra.mxu0 0.0
    %286 = vmatprep.subr.mxu0 0.0
    %287 = vmatpush1.msra.mxu0 0.0
    %288 = vmatprep.subr.mxu0 0.0
    %289 = vmatpush1.msra.mxu0 0.0
    %290 = vmatprep.subr.mxu0 0.0
    %291 = vmatpush1.msra.mxu0 0.0
    %292 = vmatprep.subr.mxu0 0.0
    %293 = vmatpush1.msra.mxu0 0.0
    %294 = vmatprep.subr.mxu0 0.0
    %295 = vmatpush1.msra.mxu0 0.0
    %296 = vmatprep.subr.mxu0 0.0
    %297 = vmatpush1.msra.mxu0 0.0
    %298 = vmatprep.subr.mxu0 0.0
    %299 = vmatpush1.msra.mxu0 0.0
    %300 = vmatprep.subr.mxu0 0.0
    %301 = vmatpush1.msra.mxu0 0.0
    %302 = vmatprep.subr.mxu0 0.0
    %303 = vmatpush1.msra.mxu0 0.0
    %304 = vmatprep.subr.mxu0 0.0
    %305 = vmatpush1.msra.mxu0 0.0
    %306 = vmatprep.subr.mxu0 0.0
    %307 = vmatpush1.msra.mxu0 0.0
    %308 = vmatprep.subr.mxu0 0.0
    %309 = vmatpush1.msra.mxu0 0.0
    %310 = vmatprep.subr.mxu0 0.0
    %311 = vmatpush1.msra.mxu0 0.0
    %312 = vmatprep.subr.mxu0 0.0
    %313 = vmatpush1.msra.mxu0 0.0
    %314 = vmatprep.subr.mxu0 0.0
    %315 = vmatpush1.msra.mxu0 0.0
    %316 = vmatprep.subr.mxu0 0.0
    %317 = vmatpush1.msra.mxu0 0.0
    %318 = vmatprep.subr.mxu0 0.0
    %319 = vmatpush1.msra.mxu0 0.0
    %320 = vmatprep.subr.mxu0 0.0
    %321 = vmatpush1.msra.mxu0 0.0
    %322 = vmatprep.subr.mxu0 0.0
    %323 = vmatpush1.msra.mxu0 0.0
    %324 = vmatprep.subr.mxu0 0.0
    %325 = vmatpush1.msra.mxu0 0.0
    %326 = vmatprep.subr.mxu0 0.0
    %327 = vmatpush1.msra.mxu0 0.0
    %328 = vmatprep.subr.mxu0 0.0
    %329 = vmatpush1.msra.mxu0 0.0
    %330 = vmatprep.subr.mxu0 0.0
    %331 = vmatpush1.msra.mxu0 0.0
    %332 = vmatprep.subr.mxu0 0.0
    %333 = vmatpush1.msra.mxu0 0.0
    %334 = vmatprep.subr.mxu0 0.0
    %335 = vmatpush1.msra.mxu0 0.0
    %336 = vmatprep.subr.mxu0 0.0
    %337 = vmatpush1.msra.mxu0 0.0
    %338 = vmatprep.mubr.f32.mxu0 0.0
    %339 = vmatmul.mubr.f32.gmra.mrb[0].mxu0 %v269
    %v340 = vpop.f32.mrb[0].mxu0
    %v341 = vadd.f32 %v265, %v340
    %v342 = vpop.f32.mrb[0].mxu0
    %343 = vmatprep.mubr.f32.mxu0 0.0
    %344 = vmatmul.mubr.f32.gmra.mrb[0].mxu0 %v272
    %v345 = vpop.f32.mrb[0].mxu0
    %v346 = vadd.f32 %v265, %v345
    %v347 = vpop.f32.mrb[0].mxu0
    %348 = vdwg.mxu0
    %v349 = vld [vmem:[%s2] sm:$0x3]
    %s350 = scalar_lea.vmem %s2, 2
    %v351 = vld [vmem:[%s350] sm:$0x3]
    %v352 = vld [vmem:[%s3] sm:$0x3]
    %s353 = scalar_lea.vmem %s3, 2
    %v354 = vld [vmem:[%s353] sm:$0x3]
    %v355 = vld [vmem:[%s9] sm:$0xff]
    %v356 = vld [vmem:[%s9 + $0x8] sm:$0xff]
    %v357 = vld [vmem:[%s9 + $0x10] sm:$0xff]
    %v358 = vld [vmem:[%s9 + $0x18] sm:$0xff]
    %s359 = scalar_lea.vmem %s9, 32
    %v360 = vld [vmem:[%s359] sm:$0xff]
    %v361 = vld [vmem:[%s359 + $0x8] sm:$0xff]
    %v362 = vld [vmem:[%s359 + $0x10] sm:$0xff]
    %v363 = vld [vmem:[%s359 + $0x18] sm:$0xff]
    %s364 = scalar_lea.vmem %s8, 32
    %v365 = vld [vmem:[%s364] sm:$0xff]
    %v366 = vld [vmem:[%s364 + $0x8] sm:$0xff]
    %v367 = vld [vmem:[%s364 + $0x10] sm:$0xff]
    %v368 = vld [vmem:[%s364 + $0x18] sm:$0xff]
    %s369 = scalar_lea.vmem %s10, 1
    %v370 = vld [vmem:[%s369] sm:$0x1]
    %v372 = vsel %vm267, %v349, 0
    %374 = vmatprep.subr.mxu0 0.0
    %375 = vmatpush1.msra.mxu0 %v355
    %376 = vmatprep.subr.mxu0 0.0
    %377 = vmatpush1.msra.mxu0 %v356
    %378 = vmatprep.subr.mxu0 0.0
    %379 = vmatpush1.msra.mxu0 %v357
    %380 = vmatprep.subr.mxu0 0.0
    %381 = vmatpush1.msra.mxu0 %v358
    %382 = vmatprep.subr.mxu0 0.0
    %383 = vmatpush1.msra.mxu0 0.0
    %384 = vmatprep.subr.mxu0 0.0
    %385 = vmatpush1.msra.mxu0 0.0
    %386 = vmatprep.subr.mxu0 0.0
    %387 = vmatpush1.msra.mxu0 0.0
    %388 = vmatprep.subr.mxu0 0.0
    %389 = vmatpush1.msra.mxu0 0.0
    %390 = vmatprep.subr.mxu0 0.0
    %391 = vmatpush1.msra.mxu0 0.0
    %392 = vmatprep.subr.mxu0 0.0
    %393 = vmatpush1.msra.mxu0 0.0
    %394 = vmatprep.subr.mxu0 0.0
    %395 = vmatpush1.msra.mxu0 0.0
    %396 = vmatprep.subr.mxu0 0.0
    %397 = vmatpush1.msra.mxu0 0.0
    %398 = vmatprep.subr.mxu0 0.0
    %399 = vmatpush1.msra.mxu0 0.0
    %400 = vmatprep.subr.mxu0 0.0
    %401 = vmatpush1.msra.mxu0 0.0
    %402 = vmatprep.subr.mxu0 0.0
    %403 = vmatpush1.msra.mxu0 0.0
    %404 = vmatprep.subr.mxu0 0.0
    %405 = vmatpush1.msra.mxu0 0.0
    %406 = vmatprep.subr.mxu0 0.0
    %407 = vmatpush1.msra.mxu0 0.0
    %408 = vmatprep.subr.mxu0 0.0
    %409 = vmatpush1.msra.mxu0 0.0
    %410 = vmatprep.subr.mxu0 0.0
    %411 = vmatpush1.msra.mxu0 0.0
    %412 = vmatprep.subr.mxu0 0.0
    %413 = vmatpush1.msra.mxu0 0.0
    %414 = vmatprep.subr.mxu0 0.0
    %415 = vmatpush1.msra.mxu0 0.0
    %416 = vmatprep.subr.mxu0 0.0
    %417 = vmatpush1.msra.mxu0 0.0
    %418 = vmatprep.subr.mxu0 0.0
    %419 = vmatpush1.msra.mxu0 0.0
    %420 = vmatprep.subr.mxu0 0.0
    %421 = vmatpush1.msra.mxu0 0.0
    %422 = vmatprep.subr.mxu0 0.0
    %423 = vmatpush1.msra.mxu0 0.0
    %424 = vmatprep.subr.mxu0 0.0
    %425 = vmatpush1.msra.mxu0 0.0
    %426 = vmatprep.subr.mxu0 0.0
    %427 = vmatpush1.msra.mxu0 0.0
    %428 = vmatprep.subr.mxu0 0.0
    %429 = vmatpush1.msra.mxu0 0.0
    %430 = vmatprep.subr.mxu0 0.0
    %431 = vmatpush1.msra.mxu0 0.0
    %432 = vmatprep.subr.mxu0 0.0
    %433 = vmatpush1.msra.mxu0 0.0
    %434 = vmatprep.subr.mxu0 0.0
    %435 = vmatpush1.msra.mxu0 0.0
    %436 = vmatprep.subr.mxu0 0.0
    %437 = vmatpush1.msra.mxu0 0.0
    %438 = vmatprep.mubr.f32.mxu0 0.0
    %439 = vmatmul.mubr.f32.gmra.mrb[0].mxu0 %v372
    %v440 = vpop.f32.mrb[0].mxu0
    %v441 = vadd.f32 0.0, %v440
    %v442 = vpop.f32.mrb[0].mxu0
    %443 = vdwg.mxu0
    %v444 = vadd.f32 %v341, %v441
    %v445 = vxor.u32 %v444, 2147483648
    %v446 = vmul.f32 %v445, 1.442695
    %v447 = vpow.pop %v446
    %v448 = vadd.f32 %v447, 1.0
    %v449 = vrcp.pop %v448
    %v450 = vmul.f32 1.0, %v449
    %v451 = vtanh.pop %v444
    %453 = vrot.lane.b32.xlu0 %v352, 32
    %v454 = vpop.permute.xlu0 %453
    %v456 = vmul.f32 %v450, %v454
    %458 = vrot.lane.b32.xlu0 %v451, 64
    %v459 = vpop.permute.xlu0 %458
    %v461 = vmul.f32 %v450, %v459
    %463 = vrot.lane.b32.xlu0 %v461, 32
    %v464 = vpop.permute.xlu0 %463
    %v466 = vadd.f32 %v456, %v464
    %v467 = vtanh.pop %v466
    %469 = vrot.lane.b32.xlu0 %v467, 64
    %v470 = vpop.permute.xlu0 %469
    %v472 = vmul.f32 %v450, %v470
    %v474 = vsel %vm267, %v351, 0
    %476 = vmatprep.subr.mxu0 0.0
    %477 = vmatpush1.msra.mxu0 %v360
    %478 = vmatprep.subr.mxu0 0.0
    %479 = vmatpush1.msra.mxu0 %v361
    %480 = vmatprep.subr.mxu0 0.0
    %481 = vmatpush1.msra.mxu0 %v362
    %482 = vmatprep.subr.mxu0 0.0
    %483 = vmatpush1.msra.mxu0 %v363
    %484 = vmatprep.subr.mxu0 0.0
    %485 = vmatpush1.msra.mxu0 0.0
    %486 = vmatprep.subr.mxu0 0.0
    %487 = vmatpush1.msra.mxu0 0.0
    %488 = vmatprep.subr.mxu0 0.0
    %489 = vmatpush1.msra.mxu0 0.0
    %490 = vmatprep.subr.mxu0 0.0
    %491 = vmatpush1.msra.mxu0 0.0
    %492 = vmatprep.subr.mxu0 0.0
    %493 = vmatpush1.msra.mxu0 0.0
    %494 = vmatprep.subr.mxu0 0.0
    %495 = vmatpush1.msra.mxu0 0.0
    %496 = vmatprep.subr.mxu0 0.0
    %497 = vmatpush1.msra.mxu0 0.0
    %498 = vmatprep.subr.mxu0 0.0
    %499 = vmatpush1.msra.mxu0 0.0
    %500 = vmatprep.subr.mxu0 0.0
    %501 = vmatpush1.msra.mxu0 0.0
    %502 = vmatprep.subr.mxu0 0.0
    %503 = vmatpush1.msra.mxu0 0.0
    %504 = vmatprep.subr.mxu0 0.0
    %505 = vmatpush1.msra.mxu0 0.0
    %506 = vmatprep.subr.mxu0 0.0
    %507 = vmatpush1.msra.mxu0 0.0
    %508 = vmatprep.subr.mxu0 0.0
    %509 = vmatpush1.msra.mxu0 0.0
    %510 = vmatprep.subr.mxu0 0.0
    %511 = vmatpush1.msra.mxu0 0.0
    %512 = vmatprep.subr.mxu0 0.0
    %513 = vmatpush1.msra.mxu0 0.0
    %514 = vmatprep.subr.mxu0 0.0
    %515 = vmatpush1.msra.mxu0 0.0
    %516 = vmatprep.subr.mxu0 0.0
    %517 = vmatpush1.msra.mxu0 0.0
    %518 = vmatprep.subr.mxu0 0.0
    %519 = vmatpush1.msra.mxu0 0.0
    %520 = vmatprep.subr.mxu0 0.0
    %521 = vmatpush1.msra.mxu0 0.0
    %522 = vmatprep.subr.mxu0 0.0
    %523 = vmatpush1.msra.mxu0 0.0
    %524 = vmatprep.subr.mxu0 0.0
    %525 = vmatpush1.msra.mxu0 0.0
    %526 = vmatprep.subr.mxu0 0.0
    %527 = vmatpush1.msra.mxu0 0.0
    %528 = vmatprep.subr.mxu0 0.0
    %529 = vmatpush1.msra.mxu0 0.0
    %530 = vmatprep.subr.mxu0 0.0
    %531 = vmatpush1.msra.mxu0 0.0
    %532 = vmatprep.subr.mxu0 0.0
    %533 = vmatpush1.msra.mxu0 0.0
    %534 = vmatprep.subr.mxu0 0.0
    %535 = vmatpush1.msra.mxu0 0.0
    %536 = vmatprep.subr.mxu0 0.0
    %537 = vmatpush1.msra.mxu0 0.0
    %538 = vmatprep.subr.mxu0 0.0
    %539 = vmatpush1.msra.mxu0 0.0
    %540 = vmatprep.mubr.f32.mxu0 0.0
    %541 = vmatmul.mubr.f32.gmra.mrb[0].mxu0 %v474
    %v542 = vpop.f32.mrb[0].mxu0
    %v543 = vadd.f32 0.0, %v542
    %v544 = vpop.f32.mrb[0].mxu0
    %545 = vdwg.mxu0
    %547 = vrot.lane.b32.xlu0 %v472, 32
    %v548 = vpop.permute.xlu0 %547
    %v549 = vsel %vm267, %v548, 0
    %551 = vmatprep.subr.mxu0 0.0
    %552 = vmatpush1.msra.mxu0 %v365
    %553 = vmatprep.subr.mxu0 0.0
    %554 = vmatpush1.msra.mxu0 %v366
    %555 = vmatprep.subr.mxu0 0.0
    %556 = vmatpush1.msra.mxu0 %v367
    %557 = vmatprep.subr.mxu0 0.0
    %558 = vmatpush1.msra.mxu0 %v368
    %559 = vmatprep.subr.mxu0 0.0
    %560 = vmatpush1.msra.mxu0 0.0
    %561 = vmatprep.subr.mxu0 0.0
    %562 = vmatpush1.msra.mxu0 0.0
    %563 = vmatprep.subr.mxu0 0.0
    %564 = vmatpush1.msra.mxu0 0.0
    %565 = vmatprep.subr.mxu0 0.0
    %566 = vmatpush1.msra.mxu0 0.0
    %567 = vmatprep.subr.mxu0 0.0
    %568 = vmatpush1.msra.mxu0 0.0
    %569 = vmatprep.subr.mxu0 0.0
    %570 = vmatpush1.msra.mxu0 0.0
    %571 = vmatprep.subr.mxu0 0.0
    %572 = vmatpush1.msra.mxu0 0.0
    %573 = vmatprep.subr.mxu0 0.0
    %574 = vmatpush1.msra.mxu0 0.0
    %575 = vmatprep.subr.mxu0 0.0
    %576 = vmatpush1.msra.mxu0 0.0
    %577 = vmatprep.subr.mxu0 0.0
    %578 = vmatpush1.msra.mxu0 0.0
    %579 = vmatprep.subr.mxu0 0.0
    %580 = vmatpush1.msra.mxu0 0.0
    %581 = vmatprep.subr.mxu0 0.0
    %582 = vmatpush1.msra.mxu0 0.0
    %583 = vmatprep.subr.mxu0 0.0
    %584 = vmatpush1.msra.mxu0 0.0
    %585 = vmatprep.subr.mxu0 0.0
    %586 = vmatpush1.msra.mxu0 0.0
    %587 = vmatprep.subr.mxu0 0.0
    %588 = vmatpush1.msra.mxu0 0.0
    %589 = vmatprep.subr.mxu0 0.0
    %590 = vmatpush1.msra.mxu0 0.0
    %591 = vmatprep.subr.mxu0 0.0
    %592 = vmatpush1.msra.mxu0 0.0
    %593 = vmatprep.subr.mxu0 0.0
    %594 = vmatpush1.msra.mxu0 0.0
    %595 = vmatprep.subr.mxu0 0.0
    %596 = vmatpush1.msra.mxu0 0.0
    %597 = vmatprep.subr.mxu0 0.0
    %598 = vmatpush1.msra.mxu0 0.0
    %599 = vmatprep.subr.mxu0 0.0
    %600 = vmatpush1.msra.mxu0 0.0
    %601 = vmatprep.subr.mxu0 0.0
    %602 = vmatpush1.msra.mxu0 0.0
    %603 = vmatprep.subr.mxu0 0.0
    %604 = vmatpush1.msra.mxu0 0.0
    %605 = vmatprep.subr.mxu0 0.0
    %606 = vmatpush1.msra.mxu0 0.0
    %607 = vmatprep.subr.mxu0 0.0
    %608 = vmatpush1.msra.mxu0 0.0
    %609 = vmatprep.subr.mxu0 0.0
    %610 = vmatpush1.msra.mxu0 0.0
    %611 = vmatprep.subr.mxu0 0.0
    %612 = vmatpush1.msra.mxu0 0.0
    %613 = vmatprep.subr.mxu0 0.0
    %614 = vmatpush1.msra.mxu0 0.0
    %615 = vmatprep.mubr.f32.mxu0 0.0
    %616 = vmatmul.mubr.f32.gmra.mrb[0].mxu0 %v549
    %v617 = vpop.f32.mrb[0].mxu0
    %v618 = vadd.f32 %v543, %v617
    %v619 = vpop.f32.mrb[0].mxu0
    %620 = vdwg.mxu0
    %v622 = vlaneseq
    %v623 = vshrl.u32 %v622, 7
    %v624 = vsub.s32 0, %v623
    %v625 = vrot.slane %v370, %v624
    %v627 = vadd.f32 %v618, %v625
    %v628 = vxor.u32 %v627, 2147483648
    %v629 = vmul.f32 %v628, 1.442695
    %v630 = vpow.pop %v629
    %v631 = vadd.f32 %v630, 1.0
    %v632 = vrcp.pop %v631
    %v633 = vmul.f32 1.0, %v632
    %v634 = vtanh.pop %v627
    %636 = vrot.lane.b32.xlu0 %v354, 32
    %v637 = vpop.permute.xlu0 %636
    %v639 = vmul.f32 %v633, %v637
    %641 = vrot.lane.b32.xlu0 %v634, 64
    %v642 = vpop.permute.xlu0 %641
    %v644 = vmul.f32 %v633, %v642
    %646 = vrot.lane.b32.xlu0 %v644, 32
    %v647 = vpop.permute.xlu0 %646
    %v649 = vadd.f32 %v639, %v647
    %v650 = vtanh.pop %v649
    %652 = vrot.lane.b32.xlu0 %v650, 64
    %v653 = vpop.permute.xlu0 %652
    %v655 = vmul.f32 %v633, %v653
    %657 = vrot.lane.b32.xlu0 %v655, 32
    %v658 = vpop.permute.xlu0 %657
    %vm660 = vcmask 254976
    %661 = vst.msk [vmem:[#allocation2] sm:$0x3] %vm660, %v658
    %662 = vmatprep.subr.mxu0 0.0
    %663 = vmatpush1.msra.mxu0 %v355
    %664 = vmatprep.subr.mxu0 0.0
    %665 = vmatpush1.msra.mxu0 %v356
    %666 = vmatprep.subr.mxu0 0.0
    %667 = vmatpush1.msra.mxu0 %v357
    %668 = vmatprep.subr.mxu0 0.0
    %669 = vmatpush1.msra.mxu0 %v358
    %670 = vmatprep.subr.mxu0 0.0
    %671 = vmatpush1.msra.mxu0 0.0
    %672 = vmatprep.subr.mxu0 0.0
    %673 = vmatpush1.msra.mxu0 0.0
    %674 = vmatprep.subr.mxu0 0.0
    %675 = vmatpush1.msra.mxu0 0.0
    %676 = vmatprep.subr.mxu0 0.0
    %677 = vmatpush1.msra.mxu0 0.0
    %678 = vmatprep.subr.mxu0 0.0
    %679 = vmatpush1.msra.mxu0 0.0
    %680 = vmatprep.subr.mxu0 0.0
    %681 = vmatpush1.msra.mxu0 0.0
    %682 = vmatprep.subr.mxu0 0.0
    %683 = vmatpush1.msra.mxu0 0.0
    %684 = vmatprep.subr.mxu0 0.0
    %685 = vmatpush1.msra.mxu0 0.0
    %686 = vmatprep.subr.mxu0 0.0
    %687 = vmatpush1.msra.mxu0 0.0
    %688 = vmatprep.subr.mxu0 0.0
    %689 = vmatpush1.msra.mxu0 0.0
    %690 = vmatprep.subr.mxu0 0.0
    %691 = vmatpush1.msra.mxu0 0.0
    %692 = vmatprep.subr.mxu0 0.0
    %693 = vmatpush1.msra.mxu0 0.0
    %694 = vmatprep.subr.mxu0 0.0
    %695 = vmatpush1.msra.mxu0 0.0
    %696 = vmatprep.subr.mxu0 0.0
    %697 = vmatpush1.msra.mxu0 0.0
    %698 = vmatprep.subr.mxu0 0.0
    %699 = vmatpush1.msra.mxu0 0.0
    %700 = vmatprep.subr.mxu0 0.0
    %701 = vmatpush1.msra.mxu0 0.0
    %702 = vmatprep.subr.mxu0 0.0
    %703 = vmatpush1.msra.mxu0 0.0
    %704 = vmatprep.subr.mxu0 0.0
    %705 = vmatpush1.msra.mxu0 0.0
    %706 = vmatprep.subr.mxu0 0.0
    %707 = vmatpush1.msra.mxu0 0.0
    %708 = vmatprep.subr.mxu0 0.0
    %709 = vmatpush1.msra.mxu0 0.0
    %710 = vmatprep.subr.mxu0 0.0
    %711 = vmatpush1.msra.mxu0 0.0
    %712 = vmatprep.subr.mxu0 0.0
    %713 = vmatpush1.msra.mxu0 0.0
    %714 = vmatprep.subr.mxu0 0.0
    %715 = vmatpush1.msra.mxu0 0.0
    %716 = vmatprep.subr.mxu0 0.0
    %717 = vmatpush1.msra.mxu0 0.0
    %718 = vmatprep.subr.mxu0 0.0
    %719 = vmatpush1.msra.mxu0 0.0
    %720 = vmatprep.subr.mxu0 0.0
    %721 = vmatpush1.msra.mxu0 0.0
    %722 = vmatprep.subr.mxu0 0.0
    %723 = vmatpush1.msra.mxu0 0.0
    %724 = vmatprep.subr.mxu0 0.0
    %725 = vmatpush1.msra.mxu0 0.0
    %726 = vmatprep.mubr.f32.mxu0 0.0
    %727 = vmatmul.mubr.f32.gmra.mrb[0].mxu0 %v549
    %v728 = vpop.f32.mrb[0].mxu0
    %v729 = vadd.f32 0.0, %v728
    %v730 = vpop.f32.mrb[0].mxu0
    %731 = vdwg.mxu0
    %v733 = vrot.slane %v729, 6
    %v735 = vadd.f32 %v341, %v733
    %v736 = vxor.u32 %v735, 2147483648
    %v737 = vmul.f32 %v736, 1.442695
    %v738 = vpow.pop %v737
    %v739 = vadd.f32 %v738, 1.0
    %v740 = vrcp.pop %v739
    %v741 = vmul.f32 1.0, %v740
    %v742 = vtanh.pop %v735
    %v744 = vrot.slane %v466, 6
    %v746 = vmul.f32 %v741, %v744
    %748 = vrot.lane.b32.xlu0 %v742, 64
    %v749 = vpop.permute.xlu0 %748
    %v751 = vmul.f32 %v741, %v749
    %753 = vrot.lane.b32.xlu0 %v751, 32
    %v754 = vpop.permute.xlu0 %753
    %v756 = vadd.f32 %v746, %v754
    %v757 = vtanh.pop %v756
    %759 = vrot.lane.b32.xlu0 %v757, 64
    %v760 = vpop.permute.xlu0 %759
    %v762 = vmul.f32 %v741, %v760
    %v763 = vsel %vm267, %v658, 0
    %765 = vmatprep.subr.mxu0 0.0
    %766 = vmatpush1.msra.mxu0 %v360
    %767 = vmatprep.subr.mxu0 0.0
    %768 = vmatpush1.msra.mxu0 %v361
    %769 = vmatprep.subr.mxu0 0.0
    %770 = vmatpush1.msra.mxu0 %v362
    %771 = vmatprep.subr.mxu0 0.0
    %772 = vmatpush1.msra.mxu0 %v363
    %773 = vmatprep.subr.mxu0 0.0
    %774 = vmatpush1.msra.mxu0 0.0
    %775 = vmatprep.subr.mxu0 0.0
    %776 = vmatpush1.msra.mxu0 0.0
    %777 = vmatprep.subr.mxu0 0.0
    %778 = vmatpush1.msra.mxu0 0.0
    %779 = vmatprep.subr.mxu0 0.0
    %780 = vmatpush1.msra.mxu0 0.0
    %781 = vmatprep.subr.mxu0 0.0
    %782 = vmatpush1.msra.mxu0 0.0
    %783 = vmatprep.subr.mxu0 0.0
    %784 = vmatpush1.msra.mxu0 0.0
    %785 = vmatprep.subr.mxu0 0.0
    %786 = vmatpush1.msra.mxu0 0.0
    %787 = vmatprep.subr.mxu0 0.0
    %788 = vmatpush1.msra.mxu0 0.0
    %789 = vmatprep.subr.mxu0 0.0
    %790 = vmatpush1.msra.mxu0 0.0
    %791 = vmatprep.subr.mxu0 0.0
    %792 = vmatpush1.msra.mxu0 0.0
    %793 = vmatprep.subr.mxu0 0.0
    %794 = vmatpush1.msra.mxu0 0.0
    %795 = vmatprep.subr.mxu0 0.0
    %796 = vmatpush1.msra.mxu0 0.0
    %797 = vmatprep.subr.mxu0 0.0
    %798 = vmatpush1.msra.mxu0 0.0
    %799 = vmatprep.subr.mxu0 0.0
    %800 = vmatpush1.msra.mxu0 0.0
    %801 = vmatprep.subr.mxu0 0.0
    %802 = vmatpush1.msra.mxu0 0.0
    %803 = vmatprep.subr.mxu0 0.0
    %804 = vmatpush1.msra.mxu0 0.0
    %805 = vmatprep.subr.mxu0 0.0
    %806 = vmatpush1.msra.mxu0 0.0
    %807 = vmatprep.subr.mxu0 0.0
    %808 = vmatpush1.msra.mxu0 0.0
    %809 = vmatprep.subr.mxu0 0.0
    %810 = vmatpush1.msra.mxu0 0.0
    %811 = vmatprep.subr.mxu0 0.0
    %812 = vmatpush1.msra.mxu0 0.0
    %813 = vmatprep.subr.mxu0 0.0
    %814 = vmatpush1.msra.mxu0 0.0
    %815 = vmatprep.subr.mxu0 0.0
    %816 = vmatpush1.msra.mxu0 0.0
    %817 = vmatprep.subr.mxu0 0.0
    %818 = vmatpush1.msra.mxu0 0.0
    %819 = vmatprep.subr.mxu0 0.0
    %820 = vmatpush1.msra.mxu0 0.0
    %821 = vmatprep.subr.mxu0 0.0
    %822 = vmatpush1.msra.mxu0 0.0
    %823 = vmatprep.subr.mxu0 0.0
    %824 = vmatpush1.msra.mxu0 0.0
    %825 = vmatprep.subr.mxu0 0.0
    %826 = vmatpush1.msra.mxu0 0.0
    %827 = vmatprep.subr.mxu0 0.0
    %828 = vmatpush1.msra.mxu0 0.0
    %829 = vmatprep.mubr.f32.mxu0 0.0
    %830 = vmatmul.mubr.f32.gmra.mrb[0].mxu0 %v763
    %v831 = vpop.f32.mrb[0].mxu0
    %v832 = vadd.f32 0.0, %v831
    %v833 = vpop.f32.mrb[0].mxu0
    %834 = vdwg.mxu0
    %v836 = vrot.slane %v762, 2
    %837 = vrot.lane.b32.xlu0 %v836, 32
    %v838 = vpop.permute.xlu0 %837
    %v839 = vsel %vm267, %v838, 0
    %841 = vmatprep.subr.mxu0 0.0
    %842 = vmatpush1.msra.mxu0 %v365
    %843 = vmatprep.subr.mxu0 0.0
    %844 = vmatpush1.msra.mxu0 %v366
    %845 = vmatprep.subr.mxu0 0.0
    %846 = vmatpush1.msra.mxu0 %v367
    %847 = vmatprep.subr.mxu0 0.0
    %848 = vmatpush1.msra.mxu0 %v368
    %849 = vmatprep.subr.mxu0 0.0
    %850 = vmatpush1.msra.mxu0 0.0
    %851 = vmatprep.subr.mxu0 0.0
    %852 = vmatpush1.msra.mxu0 0.0
    %853 = vmatprep.subr.mxu0 0.0
    %854 = vmatpush1.msra.mxu0 0.0
    %855 = vmatprep.subr.mxu0 0.0
    %856 = vmatpush1.msra.mxu0 0.0
    %857 = vmatprep.subr.mxu0 0.0
    %858 = vmatpush1.msra.mxu0 0.0
    %859 = vmatprep.subr.mxu0 0.0
    %860 = vmatpush1.msra.mxu0 0.0
    %861 = vmatprep.subr.mxu0 0.0
    %862 = vmatpush1.msra.mxu0 0.0
    %863 = vmatprep.subr.mxu0 0.0
    %864 = vmatpush1.msra.mxu0 0.0
    %865 = vmatprep.subr.mxu0 0.0
    %866 = vmatpush1.msra.mxu0 0.0
    %867 = vmatprep.subr.mxu0 0.0
    %868 = vmatpush1.msra.mxu0 0.0
    %869 = vmatprep.subr.mxu0 0.0
    %870 = vmatpush1.msra.mxu0 0.0
    %871 = vmatprep.subr.mxu0 0.0
    %872 = vmatpush1.msra.mxu0 0.0
    %873 = vmatprep.subr.mxu0 0.0
    %874 = vmatpush1.msra.mxu0 0.0
    %875 = vmatprep.subr.mxu0 0.0
    %876 = vmatpush1.msra.mxu0 0.0
    %877 = vmatprep.subr.mxu0 0.0
    %878 = vmatpush1.msra.mxu0 0.0
    %879 = vmatprep.subr.mxu0 0.0
    %880 = vmatpush1.msra.mxu0 0.0
    %881 = vmatprep.subr.mxu0 0.0
    %882 = vmatpush1.msra.mxu0 0.0
    %883 = vmatprep.subr.mxu0 0.0
    %884 = vmatpush1.msra.mxu0 0.0
    %885 = vmatprep.subr.mxu0 0.0
    %886 = vmatpush1.msra.mxu0 0.0
    %887 = vmatprep.subr.mxu0 0.0
    %888 = vmatpush1.msra.mxu0 0.0
    %889 = vmatprep.subr.mxu0 0.0
    %890 = vmatpush1.msra.mxu0 0.0
    %891 = vmatprep.subr.mxu0 0.0
    %892 = vmatpush1.msra.mxu0 0.0
    %893 = vmatprep.subr.mxu0 0.0
    %894 = vmatpush1.msra.mxu0 0.0
    %895 = vmatprep.subr.mxu0 0.0
    %896 = vmatpush1.msra.mxu0 0.0
    %897 = vmatprep.subr.mxu0 0.0
    %898 = vmatpush1.msra.mxu0 0.0
    %899 = vmatprep.subr.mxu0 0.0
    %900 = vmatpush1.msra.mxu0 0.0
    %901 = vmatprep.subr.mxu0 0.0
    %902 = vmatpush1.msra.mxu0 0.0
    %903 = vmatprep.subr.mxu0 0.0
    %904 = vmatpush1.msra.mxu0 0.0
    %905 = vmatprep.mubr.f32.mxu0 0.0
    %906 = vmatmul.mubr.f32.gmra.mrb[0].mxu0 %v839
    %v907 = vpop.f32.mrb[0].mxu0
    %v908 = vadd.f32 %v832, %v907
    %v909 = vpop.f32.mrb[0].mxu0
    %910 = vdwg.mxu0
    %v911 = vadd.f32 %v908, %v625
    %v912 = vxor.u32 %v911, 2147483648
    %v913 = vmul.f32 %v912, 1.442695
    %v914 = vpow.pop %v913
    %v915 = vadd.f32 %v914, 1.0
    %v916 = vrcp.pop %v915
    %v917 = vmul.f32 1.0, %v916
    %v918 = vtanh.pop %v911
    %v919 = vmul.f32 %v917, %v649
    %921 = vrot.lane.b32.xlu0 %v918, 64
    %v922 = vpop.permute.xlu0 %921
    %v924 = vmul.f32 %v917, %v922
    %926 = vrot.lane.b32.xlu0 %v924, 32
    %v927 = vpop.permute.xlu0 %926
    %v929 = vadd.f32 %v919, %v927
    %v930 = vtanh.pop %v929
    %932 = vrot.lane.b32.xlu0 %v930, 64
    %v933 = vpop.permute.xlu0 %932
    %v935 = vmul.f32 %v917, %v933
    %937 = vrot.lane.b32.xlu0 %v935, 32
    %v938 = vpop.permute.xlu0 %937
    %940 = vst.msk [vmem:[#allocation2 + $0x2] sm:$0x3] %vm660, %v938
    %941 = vmatprep.subr.mxu0 0.0
    %942 = vmatpush1.msra.mxu0 %v355
    %943 = vmatprep.subr.mxu0 0.0
    %944 = vmatpush1.msra.mxu0 %v356
    %945 = vmatprep.subr.mxu0 0.0
    %946 = vmatpush1.msra.mxu0 %v357
    %947 = vmatprep.subr.mxu0 0.0
    %948 = vmatpush1.msra.mxu0 %v358
    %949 = vmatprep.subr.mxu0 0.0
    %950 = vmatpush1.msra.mxu0 0.0
    %951 = vmatprep.subr.mxu0 0.0
    %952 = vmatpush1.msra.mxu0 0.0
    %953 = vmatprep.subr.mxu0 0.0
    %954 = vmatpush1.msra.mxu0 0.0
    %955 = vmatprep.subr.mxu0 0.0
    %956 = vmatpush1.msra.mxu0 0.0
    %957 = vmatprep.subr.mxu0 0.0
    %958 = vmatpush1.msra.mxu0 0.0
    %959 = vmatprep.subr.mxu0 0.0
    %960 = vmatpush1.msra.mxu0 0.0
    %961 = vmatprep.subr.mxu0 0.0
    %962 = vmatpush1.msra.mxu0 0.0
    %963 = vmatprep.subr.mxu0 0.0
    %964 = vmatpush1.msra.mxu0 0.0
    %965 = vmatprep.subr.mxu0 0.0
    %966 = vmatpush1.msra.mxu0 0.0
    %967 = vmatprep.subr.mxu0 0.0
    %968 = vmatpush1.msra.mxu0 0.0
    %969 = vmatprep.subr.mxu0 0.0
    %970 = vmatpush1.msra.mxu0 0.0
    %971 = vmatprep.subr.mxu0 0.0
    %972 = vmatpush1.msra.mxu0 0.0
    %973 = vmatprep.subr.mxu0 0.0
    %974 = vmatpush1.msra.mxu0 0.0
    %975 = vmatprep.subr.mxu0 0.0
    %976 = vmatpush1.msra.mxu0 0.0
    %977 = vmatprep.subr.mxu0 0.0
    %978 = vmatpush1.msra.mxu0 0.0
    %979 = vmatprep.subr.mxu0 0.0
    %980 = vmatpush1.msra.mxu0 0.0
    %981 = vmatprep.subr.mxu0 0.0
    %982 = vmatpush1.msra.mxu0 0.0
    %983 = vmatprep.subr.mxu0 0.0
    %984 = vmatpush1.msra.mxu0 0.0
    %985 = vmatprep.subr.mxu0 0.0
    %986 = vmatpush1.msra.mxu0 0.0
    %987 = vmatprep.subr.mxu0 0.0
    %988 = vmatpush1.msra.mxu0 0.0
    %989 = vmatprep.subr.mxu0 0.0
    %990 = vmatpush1.msra.mxu0 0.0
    %991 = vmatprep.subr.mxu0 0.0
    %992 = vmatpush1.msra.mxu0 0.0
    %993 = vmatprep.subr.mxu0 0.0
    %994 = vmatpush1.msra.mxu0 0.0
    %995 = vmatprep.subr.mxu0 0.0
    %996 = vmatpush1.msra.mxu0 0.0
    %997 = vmatprep.subr.mxu0 0.0
    %998 = vmatpush1.msra.mxu0 0.0
    %999 = vmatprep.subr.mxu0 0.0
    %1000 = vmatpush1.msra.mxu0 0.0
    %1001 = vmatprep.subr.mxu0 0.0
    %1002 = vmatpush1.msra.mxu0 0.0
    %1003 = vmatprep.subr.mxu0 0.0
    %1004 = vmatpush1.msra.mxu0 0.0
    %1005 = vmatprep.mubr.f32.mxu0 0.0
    %1006 = vmatmul.mubr.f32.gmra.mrb[0].mxu0 %v839
    %v1007 = vpop.f32.mrb[0].mxu0
    %v1008 = vadd.f32 0.0, %v1007
    %v1009 = vpop.f32.mrb[0].mxu0
    %1010 = vdwg.mxu0
    %v1012 = vrot.slane %v1008, 4
    %v1014 = vadd.f32 %v341, %v1012
    %v1015 = vxor.u32 %v1014, 2147483648
    %v1016 = vmul.f32 %v1015, 1.442695
    %v1017 = vpow.pop %v1016
    %v1018 = vadd.f32 %v1017, 1.0
    %v1019 = vrcp.pop %v1018
    %v1020 = vmul.f32 1.0, %v1019
    %v1021 = vtanh.pop %v1014
    %v1023 = vrot.slane %v756, 6
    %v1025 = vmul.f32 %v1020, %v1023
    %1027 = vrot.lane.b32.xlu0 %v1021, 64
    %v1028 = vpop.permute.xlu0 %1027
    %v1030 = vmul.f32 %v1020, %v1028
    %1032 = vrot.lane.b32.xlu0 %v1030, 32
    %v1033 = vpop.permute.xlu0 %1032
    %v1035 = vadd.f32 %v1025, %v1033
    %v1036 = vtanh.pop %v1035
    %1038 = vrot.lane.b32.xlu0 %v1036, 64
    %v1039 = vpop.permute.xlu0 %1038
    %v1041 = vmul.f32 %v1020, %v1039
    %v1042 = vsel %vm267, %v938, 0
    %1044 = vmatprep.subr.mxu0 0.0
    %1045 = vmatpush1.msra.mxu0 %v360
    %1046 = vmatprep.subr.mxu0 0.0
    %1047 = vmatpush1.msra.mxu0 %v361
    %1048 = vmatprep.subr.mxu0 0.0
    %1049 = vmatpush1.msra.mxu0 %v362
    %1050 = vmatprep.subr.mxu0 0.0
    %1051 = vmatpush1.msra.mxu0 %v363
    %1052 = vmatprep.subr.mxu0 0.0
    %1053 = vmatpush1.msra.mxu0 0.0
    %1054 = vmatprep.subr.mxu0 0.0
    %1055 = vmatpush1.msra.mxu0 0.0
    %1056 = vmatprep.subr.mxu0 0.0
    %1057 = vmatpush1.msra.mxu0 0.0
    %1058 = vmatprep.subr.mxu0 0.0
    %1059 = vmatpush1.msra.mxu0 0.0
    %1060 = vmatprep.subr.mxu0 0.0
    %1061 = vmatpush1.msra.mxu0 0.0
    %1062 = vmatprep.subr.mxu0 0.0
    %1063 = vmatpush1.msra.mxu0 0.0
    %1064 = vmatprep.subr.mxu0 0.0
    %1065 = vmatpush1.msra.mxu0 0.0
    %1066 = vmatprep.subr.mxu0 0.0
    %1067 = vmatpush1.msra.mxu0 0.0
    %1068 = vmatprep.subr.mxu0 0.0
    %1069 = vmatpush1.msra.mxu0 0.0
    %1070 = vmatprep.subr.mxu0 0.0
    %1071 = vmatpush1.msra.mxu0 0.0
    %1072 = vmatprep.subr.mxu0 0.0
    %1073 = vmatpush1.msra.mxu0 0.0
    %1074 = vmatprep.subr.mxu0 0.0
    %1075 = vmatpush1.msra.mxu0 0.0
    %1076 = vmatprep.subr.mxu0 0.0
    %1077 = vmatpush1.msra.mxu0 0.0
    %1078 = vmatprep.subr.mxu0 0.0
    %1079 = vmatpush1.msra.mxu0 0.0
    %1080 = vmatprep.subr.mxu0 0.0
    %1081 = vmatpush1.msra.mxu0 0.0
    %1082 = vmatprep.subr.mxu0 0.0
    %1083 = vmatpush1.msra.mxu0 0.0
    %1084 = vmatprep.subr.mxu0 0.0
    %1085 = vmatpush1.msra.mxu0 0.0
    %1086 = vmatprep.subr.mxu0 0.0
    %1087 = vmatpush1.msra.mxu0 0.0
    %1088 = vmatprep.subr.mxu0 0.0
    %1089 = vmatpush1.msra.mxu0 0.0
    %1090 = vmatprep.subr.mxu0 0.0
    %1091 = vmatpush1.msra.mxu0 0.0
    %1092 = vmatprep.subr.mxu0 0.0
    %1093 = vmatpush1.msra.mxu0 0.0
    %1094 = vmatprep.subr.mxu0 0.0
    %1095 = vmatpush1.msra.mxu0 0.0
    %1096 = vmatprep.subr.mxu0 0.0
    %1097 = vmatpush1.msra.mxu0 0.0
    %1098 = vmatprep.subr.mxu0 0.0
    %1099 = vmatpush1.msra.mxu0 0.0
    %1100 = vmatprep.subr.mxu0 0.0
    %1101 = vmatpush1.msra.mxu0 0.0
    %1102 = vmatprep.subr.mxu0 0.0
    %1103 = vmatpush1.msra.mxu0 0.0
    %1104 = vmatprep.subr.mxu0 0.0
    %1105 = vmatpush1.msra.mxu0 0.0
    %1106 = vmatprep.subr.mxu0 0.0
    %1107 = vmatpush1.msra.mxu0 0.0
    %1108 = vmatprep.mubr.f32.mxu0 0.0
    %1109 = vmatmul.mubr.f32.gmra.mrb[0].mxu0 %v1042
    %v1110 = vpop.f32.mrb[0].mxu0
    %v1111 = vadd.f32 0.0, %v1110
    %v1112 = vpop.f32.mrb[0].mxu0
    %1113 = vdwg.mxu0
    %v1115 = vrot.slane %v1041, 4
    %1116 = vrot.lane.b32.xlu0 %v1115, 32
    %v1117 = vpop.permute.xlu0 %1116
    %v1118 = vsel %vm267, %v1117, 0
    %1120 = vmatprep.subr.mxu0 0.0
    %1121 = vmatpush1.msra.mxu0 %v365
    %1122 = vmatprep.subr.mxu0 0.0
    %1123 = vmatpush1.msra.mxu0 %v366
    %1124 = vmatprep.subr.mxu0 0.0
    %1125 = vmatpush1.msra.mxu0 %v367
    %1126 = vmatprep.subr.mxu0 0.0
    %1127 = vmatpush1.msra.mxu0 %v368
    %1128 = vmatprep.subr.mxu0 0.0
    %1129 = vmatpush1.msra.mxu0 0.0
    %1130 = vmatprep.subr.mxu0 0.0
    %1131 = vmatpush1.msra.mxu0 0.0
    %1132 = vmatprep.subr.mxu0 0.0
    %1133 = vmatpush1.msra.mxu0 0.0
    %1134 = vmatprep.subr.mxu0 0.0
    %1135 = vmatpush1.msra.mxu0 0.0
    %1136 = vmatprep.subr.mxu0 0.0
    %1137 = vmatpush1.msra.mxu0 0.0
    %1138 = vmatprep.subr.mxu0 0.0
    %1139 = vmatpush1.msra.mxu0 0.0
    %1140 = vmatprep.subr.mxu0 0.0
    %1141 = vmatpush1.msra.mxu0 0.0
    %1142 = vmatprep.subr.mxu0 0.0
    %1143 = vmatpush1.msra.mxu0 0.0
    %1144 = vmatprep.subr.mxu0 0.0
    %1145 = vmatpush1.msra.mxu0 0.0
    %1146 = vmatprep.subr.mxu0 0.0
    %1147 = vmatpush1.msra.mxu0 0.0
    %1148 = vmatprep.subr.mxu0 0.0
    %1149 = vmatpush1.msra.mxu0 0.0
    %1150 = vmatprep.subr.mxu0 0.0
    %1151 = vmatpush1.msra.mxu0 0.0
    %1152 = vmatprep.subr.mxu0 0.0
    %1153 = vmatpush1.msra.mxu0 0.0
    %1154 = vmatprep.subr.mxu0 0.0
    %1155 = vmatpush1.msra.mxu0 0.0
    %1156 = vmatprep.subr.mxu0 0.0
    %1157 = vmatpush1.msra.mxu0 0.0
    %1158 = vmatprep.subr.mxu0 0.0
    %1159 = vmatpush1.msra.mxu0 0.0
    %1160 = vmatprep.subr.mxu0 0.0
    %1161 = vmatpush1.msra.mxu0 0.0
    %1162 = vmatprep.subr.mxu0 0.0
    %1163 = vmatpush1.msra.mxu0 0.0
    %1164 = vmatprep.subr.mxu0 0.0
    %1165 = vmatpush1.msra.mxu0 0.0
    %1166 = vmatprep.subr.mxu0 0.0
    %1167 = vmatpush1.msra.mxu0 0.0
    %1168 = vmatprep.subr.mxu0 0.0
    %1169 = vmatpush1.msra.mxu0 0.0
    %1170 = vmatprep.subr.mxu0 0.0
    %1171 = vmatpush1.msra.mxu0 0.0
    %1172 = vmatprep.subr.mxu0 0.0
    %1173 = vmatpush1.msra.mxu0 0.0
    %1174 = vmatprep.subr.mxu0 0.0
    %1175 = vmatpush1.msra.mxu0 0.0
    %1176 = vmatprep.subr.mxu0 0.0
    %1177 = vmatpush1.msra.mxu0 0.0
    %1178 = vmatprep.subr.mxu0 0.0
    %1179 = vmatpush1.msra.mxu0 0.0
    %1180 = vmatprep.subr.mxu0 0.0
    %1181 = vmatpush1.msra.mxu0 0.0
    %1182 = vmatprep.subr.mxu0 0.0
    %1183 = vmatpush1.msra.mxu0 0.0
    %1184 = vmatprep.mubr.f32.mxu0 0.0
    %1185 = vmatmul.mubr.f32.gmra.mrb[0].mxu0 %v1118
    %v1186 = vpop.f32.mrb[0].mxu0
    %v1187 = vadd.f32 %v1111, %v1186
    %v1188 = vpop.f32.mrb[0].mxu0
    %1189 = vdwg.mxu0
    %v1190 = vadd.f32 %v1187, %v625
    %v1191 = vxor.u32 %v1190, 2147483648
    %v1192 = vmul.f32 %v1191, 1.442695
    %v1193 = vpow.pop %v1192
    %v1194 = vadd.f32 %v1193, 1.0
    %v1195 = vrcp.pop %v1194
    %v1196 = vmul.f32 1.0, %v1195
    %v1197 = vtanh.pop %v1190
    %v1198 = vmul.f32 %v1196, %v929
    %1200 = vrot.lane.b32.xlu0 %v1197, 64
    %v1201 = vpop.permute.xlu0 %1200
    %v1203 = vmul.f32 %v1196, %v1201
    %1205 = vrot.lane.b32.xlu0 %v1203, 32
    %v1206 = vpop.permute.xlu0 %1205
    %v1208 = vadd.f32 %v1198, %v1206
    %v1209 = vtanh.pop %v1208
    %1211 = vrot.lane.b32.xlu0 %v1209, 64
    %v1212 = vpop.permute.xlu0 %1211
    %v1214 = vmul.f32 %v1196, %v1212
    %1216 = vrot.lane.b32.xlu0 %v1214, 32
    %v1217 = vpop.permute.xlu0 %1216
    %1219 = vst.msk [vmem:[#allocation2 + $0x4] sm:$0x3] %vm660, %v1217
    %1220 = vmatprep.subr.mxu0 0.0
    %1221 = vmatpush1.msra.mxu0 %v355
    %1222 = vmatprep.subr.mxu0 0.0
    %1223 = vmatpush1.msra.mxu0 %v356
    %1224 = vmatprep.subr.mxu0 0.0
    %1225 = vmatpush1.msra.mxu0 %v357
    %1226 = vmatprep.subr.mxu0 0.0
    %1227 = vmatpush1.msra.mxu0 %v358
    %1228 = vmatprep.subr.mxu0 0.0
    %1229 = vmatpush1.msra.mxu0 0.0
    %1230 = vmatprep.subr.mxu0 0.0
    %1231 = vmatpush1.msra.mxu0 0.0
    %1232 = vmatprep.subr.mxu0 0.0
    %1233 = vmatpush1.msra.mxu0 0.0
    %1234 = vmatprep.subr.mxu0 0.0
    %1235 = vmatpush1.msra.mxu0 0.0
    %1236 = vmatprep.subr.mxu0 0.0
    %1237 = vmatpush1.msra.mxu0 0.0
    %1238 = vmatprep.subr.mxu0 0.0
    %1239 = vmatpush1.msra.mxu0 0.0
    %1240 = vmatprep.subr.mxu0 0.0
    %1241 = vmatpush1.msra.mxu0 0.0
    %1242 = vmatprep.subr.mxu0 0.0
    %1243 = vmatpush1.msra.mxu0 0.0
    %1244 = vmatprep.subr.mxu0 0.0
    %1245 = vmatpush1.msra.mxu0 0.0
    %1246 = vmatprep.subr.mxu0 0.0
    %1247 = vmatpush1.msra.mxu0 0.0
    %1248 = vmatprep.subr.mxu0 0.0
    %1249 = vmatpush1.msra.mxu0 0.0
    %1250 = vmatprep.subr.mxu0 0.0
    %1251 = vmatpush1.msra.mxu0 0.0
    %1252 = vmatprep.subr.mxu0 0.0
    %1253 = vmatpush1.msra.mxu0 0.0
    %1254 = vmatprep.subr.mxu0 0.0
    %1255 = vmatpush1.msra.mxu0 0.0
    %1256 = vmatprep.subr.mxu0 0.0
    %1257 = vmatpush1.msra.mxu0 0.0
    %1258 = vmatprep.subr.mxu0 0.0
    %1259 = vmatpush1.msra.mxu0 0.0
    %1260 = vmatprep.subr.mxu0 0.0
    %1261 = vmatpush1.msra.mxu0 0.0
    %1262 = vmatprep.subr.mxu0 0.0
    %1263 = vmatpush1.msra.mxu0 0.0
    %1264 = vmatprep.subr.mxu0 0.0
    %1265 = vmatpush1.msra.mxu0 0.0
    %1266 = vmatprep.subr.mxu0 0.0
    %1267 = vmatpush1.msra.mxu0 0.0
    %1268 = vmatprep.subr.mxu0 0.0
    %1269 = vmatpush1.msra.mxu0 0.0
    %1270 = vmatprep.subr.mxu0 0.0
    %1271 = vmatpush1.msra.mxu0 0.0
    %1272 = vmatprep.subr.mxu0 0.0
    %1273 = vmatpush1.msra.mxu0 0.0
    %1274 = vmatprep.subr.mxu0 0.0
    %1275 = vmatpush1.msra.mxu0 0.0
    %1276 = vmatprep.subr.mxu0 0.0
    %1277 = vmatpush1.msra.mxu0 0.0
    %1278 = vmatprep.subr.mxu0 0.0
    %1279 = vmatpush1.msra.mxu0 0.0
    %1280 = vmatprep.subr.mxu0 0.0
    %1281 = vmatpush1.msra.mxu0 0.0
    %1282 = vmatprep.subr.mxu0 0.0
    %1283 = vmatpush1.msra.mxu0 0.0
    %1284 = vmatprep.mubr.f32.mxu0 0.0
    %1285 = vmatmul.mubr.f32.gmra.mrb[0].mxu0 %v1118
    %v1286 = vpop.f32.mrb[0].mxu0
    %v1287 = vadd.f32 0.0, %v1286
    %v1288 = vpop.f32.mrb[0].mxu0
    %1289 = vdwg.mxu0
    %v1291 = vrot.slane %v1287, 2
    %v1293 = vadd.f32 %v341, %v1291
    %v1294 = vxor.u32 %v1293, 2147483648
    %v1295 = vmul.f32 %v1294, 1.442695
    %v1296 = vpow.pop %v1295
    %v1297 = vadd.f32 %v1296, 1.0
    %v1298 = vrcp.pop %v1297
    %v1299 = vmul.f32 1.0, %v1298
    %v1300 = vtanh.pop %v1293
    %v1302 = vrot.slane %v1035, 6
    %v1304 = vmul.f32 %v1299, %v1302
    %1306 = vrot.lane.b32.xlu0 %v1300, 64
    %v1307 = vpop.permute.xlu0 %1306
    %v1309 = vmul.f32 %v1299, %v1307
    %1311 = vrot.lane.b32.xlu0 %v1309, 32
    %v1312 = vpop.permute.xlu0 %1311
    %v1314 = vadd.f32 %v1304, %v1312
    %v1315 = vtanh.pop %v1314
    %1317 = vrot.lane.b32.xlu0 %v1315, 64
    %v1318 = vpop.permute.xlu0 %1317
    %v1320 = vmul.f32 %v1299, %v1318
    %v1321 = vsel %vm267, %v1217, 0
    %1323 = vmatprep.subr.mxu0 0.0
    %1324 = vmatpush1.msra.mxu0 %v360
    %1325 = vmatprep.subr.mxu0 0.0
    %1326 = vmatpush1.msra.mxu0 %v361
    %1327 = vmatprep.subr.mxu0 0.0
    %1328 = vmatpush1.msra.mxu0 %v362
    %1329 = vmatprep.subr.mxu0 0.0
    %1330 = vmatpush1.msra.mxu0 %v363
    %1331 = vmatprep.subr.mxu0 0.0
    %1332 = vmatpush1.msra.mxu0 0.0
    %1333 = vmatprep.subr.mxu0 0.0
    %1334 = vmatpush1.msra.mxu0 0.0
    %1335 = vmatprep.subr.mxu0 0.0
    %1336 = vmatpush1.msra.mxu0 0.0
    %1337 = vmatprep.subr.mxu0 0.0
    %1338 = vmatpush1.msra.mxu0 0.0
    %1339 = vmatprep.subr.mxu0 0.0
    %1340 = vmatpush1.msra.mxu0 0.0
    %1341 = vmatprep.subr.mxu0 0.0
    %1342 = vmatpush1.msra.mxu0 0.0
    %1343 = vmatprep.subr.mxu0 0.0
    %1344 = vmatpush1.msra.mxu0 0.0
    %1345 = vmatprep.subr.mxu0 0.0
    %1346 = vmatpush1.msra.mxu0 0.0
    %1347 = vmatprep.subr.mxu0 0.0
    %1348 = vmatpush1.msra.mxu0 0.0
    %1349 = vmatprep.subr.mxu0 0.0
    %1350 = vmatpush1.msra.mxu0 0.0
    %1351 = vmatprep.subr.mxu0 0.0
    %1352 = vmatpush1.msra.mxu0 0.0
    %1353 = vmatprep.subr.mxu0 0.0
    %1354 = vmatpush1.msra.mxu0 0.0
    %1355 = vmatprep.subr.mxu0 0.0
    %1356 = vmatpush1.msra.mxu0 0.0
    %1357 = vmatprep.subr.mxu0 0.0
    %1358 = vmatpush1.msra.mxu0 0.0
    %1359 = vmatprep.subr.mxu0 0.0
    %1360 = vmatpush1.msra.mxu0 0.0
    %1361 = vmatprep.subr.mxu0 0.0
    %1362 = vmatpush1.msra.mxu0 0.0
    %1363 = vmatprep.subr.mxu0 0.0
    %1364 = vmatpush1.msra.mxu0 0.0
    %1365 = vmatprep.subr.mxu0 0.0
    %1366 = vmatpush1.msra.mxu0 0.0
    %1367 = vmatprep.subr.mxu0 0.0
    %1368 = vmatpush1.msra.mxu0 0.0
    %1369 = vmatprep.subr.mxu0 0.0
    %1370 = vmatpush1.msra.mxu0 0.0
    %1371 = vmatprep.subr.mxu0 0.0
    %1372 = vmatpush1.msra.mxu0 0.0
    %1373 = vmatprep.subr.mxu0 0.0
    %1374 = vmatpush1.msra.mxu0 0.0
    %1375 = vmatprep.subr.mxu0 0.0
    %1376 = vmatpush1.msra.mxu0 0.0
    %1377 = vmatprep.subr.mxu0 0.0
    %1378 = vmatpush1.msra.mxu0 0.0
    %1379 = vmatprep.subr.mxu0 0.0
    %1380 = vmatpush1.msra.mxu0 0.0
    %1381 = vmatprep.subr.mxu0 0.0
    %1382 = vmatpush1.msra.mxu0 0.0
    %1383 = vmatprep.subr.mxu0 0.0
    %1384 = vmatpush1.msra.mxu0 0.0
    %1385 = vmatprep.subr.mxu0 0.0
    %1386 = vmatpush1.msra.mxu0 0.0
    %1387 = vmatprep.mubr.f32.mxu0 0.0
    %1388 = vmatmul.mubr.f32.gmra.mrb[0].mxu0 %v1321
    %v1389 = vpop.f32.mrb[0].mxu0
    %v1390 = vadd.f32 0.0, %v1389
    %v1391 = vpop.f32.mrb[0].mxu0
    %1392 = vdwg.mxu0
    %v1394 = vrot.slane %v1320, 6
    %1395 = vrot.lane.b32.xlu0 %v1394, 32
    %v1396 = vpop.permute.xlu0 %1395
    %v1397 = vsel %vm267, %v1396, 0
    %1399 = vmatprep.subr.mxu0 0.0
    %1400 = vmatpush1.msra.mxu0 %v365
    %1401 = vmatprep.subr.mxu0 0.0
    %1402 = vmatpush1.msra.mxu0 %v366
    %1403 = vmatprep.subr.mxu0 0.0
    %1404 = vmatpush1.msra.mxu0 %v367
    %1405 = vmatprep.subr.mxu0 0.0
    %1406 = vmatpush1.msra.mxu0 %v368
    %1407 = vmatprep.subr.mxu0 0.0
    %1408 = vmatpush1.msra.mxu0 0.0
    %1409 = vmatprep.subr.mxu0 0.0
    %1410 = vmatpush1.msra.mxu0 0.0
    %1411 = vmatprep.subr.mxu0 0.0
    %1412 = vmatpush1.msra.mxu0 0.0
    %1413 = vmatprep.subr.mxu0 0.0
    %1414 = vmatpush1.msra.mxu0 0.0
    %1415 = vmatprep.subr.mxu0 0.0
    %1416 = vmatpush1.msra.mxu0 0.0
    %1417 = vmatprep.subr.mxu0 0.0
    %1418 = vmatpush1.msra.mxu0 0.0
    %1419 = vmatprep.subr.mxu0 0.0
    %1420 = vmatpush1.msra.mxu0 0.0
    %1421 = vmatprep.subr.mxu0 0.0
    %1422 = vmatpush1.msra.mxu0 0.0
    %1423 = vmatprep.subr.mxu0 0.0
    %1424 = vmatpush1.msra.mxu0 0.0
    %1425 = vmatprep.subr.mxu0 0.0
    %1426 = vmatpush1.msra.mxu0 0.0
    %1427 = vmatprep.subr.mxu0 0.0
    %1428 = vmatpush1.msra.mxu0 0.0
    %1429 = vmatprep.subr.mxu0 0.0
    %1430 = vmatpush1.msra.mxu0 0.0
    %1431 = vmatprep.subr.mxu0 0.0
    %1432 = vmatpush1.msra.mxu0 0.0
    %1433 = vmatprep.subr.mxu0 0.0
    %1434 = vmatpush1.msra.mxu0 0.0
    %1435 = vmatprep.subr.mxu0 0.0
    %1436 = vmatpush1.msra.mxu0 0.0
    %1437 = vmatprep.subr.mxu0 0.0
    %1438 = vmatpush1.msra.mxu0 0.0
    %1439 = vmatprep.subr.mxu0 0.0
    %1440 = vmatpush1.msra.mxu0 0.0
    %1441 = vmatprep.subr.mxu0 0.0
    %1442 = vmatpush1.msra.mxu0 0.0
    %1443 = vmatprep.subr.mxu0 0.0
    %1444 = vmatpush1.msra.mxu0 0.0
    %1445 = vmatprep.subr.mxu0 0.0
    %1446 = vmatpush1.msra.mxu0 0.0
    %1447 = vmatprep.subr.mxu0 0.0
    %1448 = vmatpush1.msra.mxu0 0.0
    %1449 = vmatprep.subr.mxu0 0.0
    %1450 = vmatpush1.msra.mxu0 0.0
    %1451 = vmatprep.subr.mxu0 0.0
    %1452 = vmatpush1.msra.mxu0 0.0
    %1453 = vmatprep.subr.mxu0 0.0
    %1454 = vmatpush1.msra.mxu0 0.0
    %1455 = vmatprep.subr.mxu0 0.0
    %1456 = vmatpush1.msra.mxu0 0.0
    %1457 = vmatprep.subr.mxu0 0.0
    %1458 = vmatpush1.msra.mxu0 0.0
    %1459 = vmatprep.subr.mxu0 0.0
    %1460 = vmatpush1.msra.mxu0 0.0
    %1461 = vmatprep.subr.mxu0 0.0
    %1462 = vmatpush1.msra.mxu0 0.0
    %1463 = vmatprep.mubr.f32.mxu0 0.0
    %1464 = vmatmul.mubr.f32.gmra.mrb[0].mxu0 %v1397
    %v1465 = vpop.f32.mrb[0].mxu0
    %v1466 = vadd.f32 %v1390, %v1465
    %v1467 = vpop.f32.mrb[0].mxu0
    %1468 = vdwg.mxu0
    %v1469 = vadd.f32 %v1466, %v625
    %v1470 = vxor.u32 %v1469, 2147483648
    %v1471 = vmul.f32 %v1470, 1.442695
    %v1472 = vpow.pop %v1471
    %v1473 = vadd.f32 %v1472, 1.0
    %v1474 = vrcp.pop %v1473
    %v1475 = vmul.f32 1.0, %v1474
    %v1476 = vtanh.pop %v1469
    %v1477 = vmul.f32 %v1475, %v1208
    %1479 = vrot.lane.b32.xlu0 %v1476, 64
    %v1480 = vpop.permute.xlu0 %1479
    %v1482 = vmul.f32 %v1475, %v1480
    %1484 = vrot.lane.b32.xlu0 %v1482, 32
    %v1485 = vpop.permute.xlu0 %1484
    %v1487 = vadd.f32 %v1477, %v1485
    %v1488 = vtanh.pop %v1487
    %1490 = vrot.lane.b32.xlu0 %v1488, 64
    %v1491 = vpop.permute.xlu0 %1490
    %v1493 = vmul.f32 %v1475, %v1491
    %1495 = vrot.lane.b32.xlu0 %v1493, 32
    %v1496 = vpop.permute.xlu0 %1495
    %1498 = vst.msk [vmem:[#allocation2 + $0x6] sm:$0x3] %vm660, %v1496
    %1499 = vmatprep.subr.mxu0 0.0
    %1500 = vmatpush1.msra.mxu0 %v355
    %1501 = vmatprep.subr.mxu0 0.0
    %1502 = vmatpush1.msra.mxu0 %v356
    %1503 = vmatprep.subr.mxu0 0.0
    %1504 = vmatpush1.msra.mxu0 %v357
    %1505 = vmatprep.subr.mxu0 0.0
    %1506 = vmatpush1.msra.mxu0 %v358
    %1507 = vmatprep.subr.mxu0 0.0
    %1508 = vmatpush1.msra.mxu0 0.0
    %1509 = vmatprep.subr.mxu0 0.0
    %1510 = vmatpush1.msra.mxu0 0.0
    %1511 = vmatprep.subr.mxu0 0.0
    %1512 = vmatpush1.msra.mxu0 0.0
    %1513 = vmatprep.subr.mxu0 0.0
    %1514 = vmatpush1.msra.mxu0 0.0
    %1515 = vmatprep.subr.mxu0 0.0
    %1516 = vmatpush1.msra.mxu0 0.0
    %1517 = vmatprep.subr.mxu0 0.0
    %1518 = vmatpush1.msra.mxu0 0.0
    %1519 = vmatprep.subr.mxu0 0.0
    %1520 = vmatpush1.msra.mxu0 0.0
    %1521 = vmatprep.subr.mxu0 0.0
    %1522 = vmatpush1.msra.mxu0 0.0
    %1523 = vmatprep.subr.mxu0 0.0
    %1524 = vmatpush1.msra.mxu0 0.0
    %1525 = vmatprep.subr.mxu0 0.0
    %1526 = vmatpush1.msra.mxu0 0.0
    %1527 = vmatprep.subr.mxu0 0.0
    %1528 = vmatpush1.msra.mxu0 0.0
    %1529 = vmatprep.subr.mxu0 0.0
    %1530 = vmatpush1.msra.mxu0 0.0
    %1531 = vmatprep.subr.mxu0 0.0
    %1532 = vmatpush1.msra.mxu0 0.0
    %1533 = vmatprep.subr.mxu0 0.0
    %1534 = vmatpush1.msra.mxu0 0.0
    %1535 = vmatprep.subr.mxu0 0.0
    %1536 = vmatpush1.msra.mxu0 0.0
    %1537 = vmatprep.subr.mxu0 0.0
    %1538 = vmatpush1.msra.mxu0 0.0
    %1539 = vmatprep.subr.mxu0 0.0
    %1540 = vmatpush1.msra.mxu0 0.0
    %1541 = vmatprep.subr.mxu0 0.0
    %1542 = vmatpush1.msra.mxu0 0.0
    %1543 = vmatprep.subr.mxu0 0.0
    %1544 = vmatpush1.msra.mxu0 0.0
    %1545 = vmatprep.subr.mxu0 0.0
    %1546 = vmatpush1.msra.mxu0 0.0
    %1547 = vmatprep.subr.mxu0 0.0
    %1548 = vmatpush1.msra.mxu0 0.0
    %1549 = vmatprep.subr.mxu0 0.0
    %1550 = vmatpush1.msra.mxu0 0.0
    %1551 = vmatprep.subr.mxu0 0.0
    %1552 = vmatpush1.msra.mxu0 0.0
    %1553 = vmatprep.subr.mxu0 0.0
    %1554 = vmatpush1.msra.mxu0 0.0
    %1555 = vmatprep.subr.mxu0 0.0
    %1556 = vmatpush1.msra.mxu0 0.0
    %1557 = vmatprep.subr.mxu0 0.0
    %1558 = vmatpush1.msra.mxu0 0.0
    %1559 = vmatprep.subr.mxu0 0.0
    %1560 = vmatpush1.msra.mxu0 0.0
    %1561 = vmatprep.subr.mxu0 0.0
    %1562 = vmatpush1.msra.mxu0 0.0
    %1563 = vmatprep.mubr.f32.mxu0 0.0
    %1564 = vmatmul.mubr.f32.gmra.mrb[0].mxu0 %v1397
    %v1565 = vpop.f32.mrb[0].mxu0
    %v1566 = vadd.f32 0.0, %v1565
    %v1567 = vpop.f32.mrb[0].mxu0
    %1568 = vdwg.mxu0
    %v1569 = vadd.f32 %v346, %v1566
    %v1570 = vxor.u32 %v1569, 2147483648
    %v1571 = vmul.f32 %v1570, 1.442695
    %v1572 = vpow.pop %v1571
    %v1573 = vadd.f32 %v1572, 1.0
    %v1574 = vrcp.pop %v1573
    %v1575 = vmul.f32 1.0, %v1574
    %v1576 = vtanh.pop %v1569
    %v1578 = vrot.slane %v1314, 6
    %v1580 = vmul.f32 %v1575, %v1578
    %1582 = vrot.lane.b32.xlu0 %v1576, 64
    %v1583 = vpop.permute.xlu0 %1582
    %v1585 = vmul.f32 %v1575, %v1583
    %1587 = vrot.lane.b32.xlu0 %v1585, 32
    %v1588 = vpop.permute.xlu0 %1587
    %v1590 = vadd.f32 %v1580, %v1588
    %v1591 = vtanh.pop %v1590
    %1593 = vrot.lane.b32.xlu0 %v1591, 64
    %v1594 = vpop.permute.xlu0 %1593
    %v1596 = vmul.f32 %v1575, %v1594
    %v1597 = vsel %vm267, %v1496, 0
    %1599 = vmatprep.subr.mxu0 0.0
    %1600 = vmatpush1.msra.mxu0 %v360
    %1601 = vmatprep.subr.mxu0 0.0
    %1602 = vmatpush1.msra.mxu0 %v361
    %1603 = vmatprep.subr.mxu0 0.0
    %1604 = vmatpush1.msra.mxu0 %v362
    %1605 = vmatprep.subr.mxu0 0.0
    %1606 = vmatpush1.msra.mxu0 %v363
    %1607 = vmatprep.subr.mxu0 0.0
    %1608 = vmatpush1.msra.mxu0 0.0
    %1609 = vmatprep.subr.mxu0 0.0
    %1610 = vmatpush1.msra.mxu0 0.0
    %1611 = vmatprep.subr.mxu0 0.0
    %1612 = vmatpush1.msra.mxu0 0.0
    %1613 = vmatprep.subr.mxu0 0.0
    %1614 = vmatpush1.msra.mxu0 0.0
    %1615 = vmatprep.subr.mxu0 0.0
    %1616 = vmatpush1.msra.mxu0 0.0
    %1617 = vmatprep.subr.mxu0 0.0
    %1618 = vmatpush1.msra.mxu0 0.0
    %1619 = vmatprep.subr.mxu0 0.0
    %1620 = vmatpush1.msra.mxu0 0.0
    %1621 = vmatprep.subr.mxu0 0.0
    %1622 = vmatpush1.msra.mxu0 0.0
    %1623 = vmatprep.subr.mxu0 0.0
    %1624 = vmatpush1.msra.mxu0 0.0
    %1625 = vmatprep.subr.mxu0 0.0
    %1626 = vmatpush1.msra.mxu0 0.0
    %1627 = vmatprep.subr.mxu0 0.0
    %1628 = vmatpush1.msra.mxu0 0.0
    %1629 = vmatprep.subr.mxu0 0.0
    %1630 = vmatpush1.msra.mxu0 0.0
    %1631 = vmatprep.subr.mxu0 0.0
    %1632 = vmatpush1.msra.mxu0 0.0
    %1633 = vmatprep.subr.mxu0 0.0
    %1634 = vmatpush1.msra.mxu0 0.0
    %1635 = vmatprep.subr.mxu0 0.0
    %1636 = vmatpush1.msra.mxu0 0.0
    %1637 = vmatprep.subr.mxu0 0.0
    %1638 = vmatpush1.msra.mxu0 0.0
    %1639 = vmatprep.subr.mxu0 0.0
    %1640 = vmatpush1.msra.mxu0 0.0
    %1641 = vmatprep.subr.mxu0 0.0
    %1642 = vmatpush1.msra.mxu0 0.0
    %1643 = vmatprep.subr.mxu0 0.0
    %1644 = vmatpush1.msra.mxu0 0.0
    %1645 = vmatprep.subr.mxu0 0.0
    %1646 = vmatpush1.msra.mxu0 0.0
    %1647 = vmatprep.subr.mxu0 0.0
    %1648 = vmatpush1.msra.mxu0 0.0
    %1649 = vmatprep.subr.mxu0 0.0
    %1650 = vmatpush1.msra.mxu0 0.0
    %1651 = vmatprep.subr.mxu0 0.0
    %1652 = vmatpush1.msra.mxu0 0.0
    %1653 = vmatprep.subr.mxu0 0.0
    %1654 = vmatpush1.msra.mxu0 0.0
    %1655 = vmatprep.subr.mxu0 0.0
    %1656 = vmatpush1.msra.mxu0 0.0
    %1657 = vmatprep.subr.mxu0 0.0
    %1658 = vmatpush1.msra.mxu0 0.0
    %1659 = vmatprep.subr.mxu0 0.0
    %1660 = vmatpush1.msra.mxu0 0.0
    %1661 = vmatprep.subr.mxu0 0.0
    %1662 = vmatpush1.msra.mxu0 0.0
    %1663 = vmatprep.mubr.f32.mxu0 0.0
    %1664 = vmatmul.mubr.f32.gmra.mrb[0].mxu0 %v1597
    %v1665 = vpop.f32.mrb[0].mxu0
    %v1666 = vadd.f32 0.0, %v1665
    %v1667 = vpop.f32.mrb[0].mxu0
    %1668 = vdwg.mxu0
    %1670 = vrot.lane.b32.xlu0 %v1596, 32
    %v1671 = vpop.permute.xlu0 %1670
    %v1672 = vsel %vm267, %v1671, 0
    %1674 = vmatprep.subr.mxu0 0.0
    %1675 = vmatpush1.msra.mxu0 %v365
    %1676 = vmatprep.subr.mxu0 0.0
    %1677 = vmatpush1.msra.mxu0 %v366
    %1678 = vmatprep.subr.mxu0 0.0
    %1679 = vmatpush1.msra.mxu0 %v367
    %1680 = vmatprep.subr.mxu0 0.0
    %1681 = vmatpush1.msra.mxu0 %v368
    %1682 = vmatprep.subr.mxu0 0.0
    %1683 = vmatpush1.msra.mxu0 0.0
    %1684 = vmatprep.subr.mxu0 0.0
    %1685 = vmatpush1.msra.mxu0 0.0
    %1686 = vmatprep.subr.mxu0 0.0
    %1687 = vmatpush1.msra.mxu0 0.0
    %1688 = vmatprep.subr.mxu0 0.0
    %1689 = vmatpush1.msra.mxu0 0.0
    %1690 = vmatprep.subr.mxu0 0.0
    %1691 = vmatpush1.msra.mxu0 0.0
    %1692 = vmatprep.subr.mxu0 0.0
    %1693 = vmatpush1.msra.mxu0 0.0
    %1694 = vmatprep.subr.mxu0 0.0
    %1695 = vmatpush1.msra.mxu0 0.0
    %1696 = vmatprep.subr.mxu0 0.0
    %1697 = vmatpush1.msra.mxu0 0.0
    %1698 = vmatprep.subr.mxu0 0.0
    %1699 = vmatpush1.msra.mxu0 0.0
    %1700 = vmatprep.subr.mxu0 0.0
    %1701 = vmatpush1.msra.mxu0 0.0
    %1702 = vmatprep.subr.mxu0 0.0
    %1703 = vmatpush1.msra.mxu0 0.0
    %1704 = vmatprep.subr.mxu0 0.0
    %1705 = vmatpush1.msra.mxu0 0.0
    %1706 = vmatprep.subr.mxu0 0.0
    %1707 = vmatpush1.msra.mxu0 0.0
    %1708 = vmatprep.subr.mxu0 0.0
    %1709 = vmatpush1.msra.mxu0 0.0
    %1710 = vmatprep.subr.mxu0 0.0
    %1711 = vmatpush1.msra.mxu0 0.0
    %1712 = vmatprep.subr.mxu0 0.0
    %1713 = vmatpush1.msra.mxu0 0.0
    %1714 = vmatprep.subr.mxu0 0.0
    %1715 = vmatpush1.msra.mxu0 0.0
    %1716 = vmatprep.subr.mxu0 0.0
    %1717 = vmatpush1.msra.mxu0 0.0
    %1718 = vmatprep.subr.mxu0 0.0
    %1719 = vmatpush1.msra.mxu0 0.0
    %1720 = vmatprep.subr.mxu0 0.0
    %1721 = vmatpush1.msra.mxu0 0.0
    %1722 = vmatprep.subr.mxu0 0.0
    %1723 = vmatpush1.msra.mxu0 0.0
    %1724 = vmatprep.subr.mxu0 0.0
    %1725 = vmatpush1.msra.mxu0 0.0
    %1726 = vmatprep.subr.mxu0 0.0
    %1727 = vmatpush1.msra.mxu0 0.0
    %1728 = vmatprep.subr.mxu0 0.0
    %1729 = vmatpush1.msra.mxu0 0.0
    %1730 = vmatprep.subr.mxu0 0.0
    %1731 = vmatpush1.msra.mxu0 0.0
    %1732 = vmatprep.subr.mxu0 0.0
    %1733 = vmatpush1.msra.mxu0 0.0
    %1734 = vmatprep.subr.mxu0 0.0
    %1735 = vmatpush1.msra.mxu0 0.0
    %1736 = vmatprep.subr.mxu0 0.0
    %1737 = vmatpush1.msra.mxu0 0.0
    %1738 = vmatprep.mubr.f32.mxu0 0.0
    %1739 = vmatmul.mubr.f32.gmra.mrb[0].mxu0 %v1672
    %v1740 = vpop.f32.mrb[0].mxu0
    %v1741 = vadd.f32 %v1666, %v1740
    %v1742 = vpop.f32.mrb[0].mxu0
    %1743 = vdwg.mxu0
    %v1744 = vadd.f32 %v1741, %v625
    %v1745 = vxor.u32 %v1744, 2147483648
    %v1746 = vmul.f32 %v1745, 1.442695
    %v1747 = vpow.pop %v1746
    %v1748 = vadd.f32 %v1747, 1.0
    %v1749 = vrcp.pop %v1748
    %v1750 = vmul.f32 1.0, %v1749
    %v1751 = vtanh.pop %v1744
    %v1752 = vmul.f32 %v1750, %v1487
    %1754 = vrot.lane.b32.xlu0 %v1751, 64
    %v1755 = vpop.permute.xlu0 %1754
    %v1757 = vmul.f32 %v1750, %v1755
    %1759 = vrot.lane.b32.xlu0 %v1757, 32
    %v1760 = vpop.permute.xlu0 %1759
    %v1762 = vadd.f32 %v1752, %v1760
    %v1763 = vtanh.pop %v1762
    %1765 = vrot.lane.b32.xlu0 %v1763, 64
    %v1766 = vpop.permute.xlu0 %1765
    %v1768 = vmul.f32 %v1750, %v1766
    %1770 = vrot.lane.b32.xlu0 %v1768, 32
    %v1771 = vpop.permute.xlu0 %1770
    %1773 = vst.msk [vmem:[#allocation2 + $0x8] sm:$0x3] %vm660, %v1771
    %1774 = vmatprep.subr.mxu0 0.0
    %1775 = vmatpush1.msra.mxu0 %v355
    %1776 = vmatprep.subr.mxu0 0.0
    %1777 = vmatpush1.msra.mxu0 %v356
    %1778 = vmatprep.subr.mxu0 0.0
    %1779 = vmatpush1.msra.mxu0 %v357
    %1780 = vmatprep.subr.mxu0 0.0
    %1781 = vmatpush1.msra.mxu0 %v358
    %1782 = vmatprep.subr.mxu0 0.0
    %1783 = vmatpush1.msra.mxu0 0.0
    %1784 = vmatprep.subr.mxu0 0.0
    %1785 = vmatpush1.msra.mxu0 0.0
    %1786 = vmatprep.subr.mxu0 0.0
    %1787 = vmatpush1.msra.mxu0 0.0
    %1788 = vmatprep.subr.mxu0 0.0
    %1789 = vmatpush1.msra.mxu0 0.0
    %1790 = vmatprep.subr.mxu0 0.0
    %1791 = vmatpush1.msra.mxu0 0.0
    %1792 = vmatprep.subr.mxu0 0.0
    %1793 = vmatpush1.msra.mxu0 0.0
    %1794 = vmatprep.subr.mxu0 0.0
    %1795 = vmatpush1.msra.mxu0 0.0
    %1796 = vmatprep.subr.mxu0 0.0
    %1797 = vmatpush1.msra.mxu0 0.0
    %1798 = vmatprep.subr.mxu0 0.0
    %1799 = vmatpush1.msra.mxu0 0.0
    %1800 = vmatprep.subr.mxu0 0.0
    %1801 = vmatpush1.msra.mxu0 0.0
    %1802 = vmatprep.subr.mxu0 0.0
    %1803 = vmatpush1.msra.mxu0 0.0
    %1804 = vmatprep.subr.mxu0 0.0
    %1805 = vmatpush1.msra.mxu0 0.0
    %1806 = vmatprep.subr.mxu0 0.0
    %1807 = vmatpush1.msra.mxu0 0.0
    %1808 = vmatprep.subr.mxu0 0.0
    %1809 = vmatpush1.msra.mxu0 0.0
    %1810 = vmatprep.subr.mxu0 0.0
    %1811 = vmatpush1.msra.mxu0 0.0
    %1812 = vmatprep.subr.mxu0 0.0
    %1813 = vmatpush1.msra.mxu0 0.0
    %1814 = vmatprep.subr.mxu0 0.0
    %1815 = vmatpush1.msra.mxu0 0.0
    %1816 = vmatprep.subr.mxu0 0.0
    %1817 = vmatpush1.msra.mxu0 0.0
    %1818 = vmatprep.subr.mxu0 0.0
    %1819 = vmatpush1.msra.mxu0 0.0
    %1820 = vmatprep.subr.mxu0 0.0
    %1821 = vmatpush1.msra.mxu0 0.0
    %1822 = vmatprep.subr.mxu0 0.0
    %1823 = vmatpush1.msra.mxu0 0.0
    %1824 = vmatprep.subr.mxu0 0.0
    %1825 = vmatpush1.msra.mxu0 0.0
    %1826 = vmatprep.subr.mxu0 0.0
    %1827 = vmatpush1.msra.mxu0 0.0
    %1828 = vmatprep.subr.mxu0 0.0
    %1829 = vmatpush1.msra.mxu0 0.0
    %1830 = vmatprep.subr.mxu0 0.0
    %1831 = vmatpush1.msra.mxu0 0.0
    %1832 = vmatprep.subr.mxu0 0.0
    %1833 = vmatpush1.msra.mxu0 0.0
    %1834 = vmatprep.subr.mxu0 0.0
    %1835 = vmatpush1.msra.mxu0 0.0
    %1836 = vmatprep.subr.mxu0 0.0
    %1837 = vmatpush1.msra.mxu0 0.0
    %1838 = vmatprep.mubr.f32.mxu0 0.0
    %1839 = vmatmul.mubr.f32.gmra.mrb[0].mxu0 %v1672
    %v1840 = vpop.f32.mrb[0].mxu0
    %v1841 = vadd.f32 0.0, %v1840
    %v1842 = vpop.f32.mrb[0].mxu0
    %1843 = vdwg.mxu0
    %v1845 = vrot.slane %v1841, 6
    %v1847 = vadd.f32 %v346, %v1845
    %v1848 = vxor.u32 %v1847, 2147483648
    %v1849 = vmul.f32 %v1848, 1.442695
    %v1850 = vpow.pop %v1849
    %v1851 = vadd.f32 %v1850, 1.0
    %v1852 = vrcp.pop %v1851
    %v1853 = vmul.f32 1.0, %v1852
    %v1854 = vtanh.pop %v1847
    %v1856 = vrot.slane %v1590, 6
    %v1858 = vmul.f32 %v1853, %v1856
    %1860 = vrot.lane.b32.xlu0 %v1854, 64
    %v1861 = vpop.permute.xlu0 %1860
    %v1863 = vmul.f32 %v1853, %v1861
    %1865 = vrot.lane.b32.xlu0 %v1863, 32
    %v1866 = vpop.permute.xlu0 %1865
    %v1868 = vadd.f32 %v1858, %v1866
    %v1869 = vtanh.pop %v1868
    %1871 = vrot.lane.b32.xlu0 %v1869, 64
    %v1872 = vpop.permute.xlu0 %1871
    %v1874 = vmul.f32 %v1853, %v1872
    %v1875 = vsel %vm267, %v1771, 0
    %1877 = vmatprep.subr.mxu0 0.0
    %1878 = vmatpush1.msra.mxu0 %v360
    %1879 = vmatprep.subr.mxu0 0.0
    %1880 = vmatpush1.msra.mxu0 %v361
    %1881 = vmatprep.subr.mxu0 0.0
    %1882 = vmatpush1.msra.mxu0 %v362
    %1883 = vmatprep.subr.mxu0 0.0
    %1884 = vmatpush1.msra.mxu0 %v363
    %1885 = vmatprep.subr.mxu0 0.0
    %1886 = vmatpush1.msra.mxu0 0.0
    %1887 = vmatprep.subr.mxu0 0.0
    %1888 = vmatpush1.msra.mxu0 0.0
    %1889 = vmatprep.subr.mxu0 0.0
    %1890 = vmatpush1.msra.mxu0 0.0
    %1891 = vmatprep.subr.mxu0 0.0
    %1892 = vmatpush1.msra.mxu0 0.0
    %1893 = vmatprep.subr.mxu0 0.0
    %1894 = vmatpush1.msra.mxu0 0.0
    %1895 = vmatprep.subr.mxu0 0.0
    %1896 = vmatpush1.msra.mxu0 0.0
    %1897 = vmatprep.subr.mxu0 0.0
    %1898 = vmatpush1.msra.mxu0 0.0
    %1899 = vmatprep.subr.mxu0 0.0
    %1900 = vmatpush1.msra.mxu0 0.0
    %1901 = vmatprep.subr.mxu0 0.0
    %1902 = vmatpush1.msra.mxu0 0.0
    %1903 = vmatprep.subr.mxu0 0.0
    %1904 = vmatpush1.msra.mxu0 0.0
    %1905 = vmatprep.subr.mxu0 0.0
    %1906 = vmatpush1.msra.mxu0 0.0
    %1907 = vmatprep.subr.mxu0 0.0
    %1908 = vmatpush1.msra.mxu0 0.0
    %1909 = vmatprep.subr.mxu0 0.0
    %1910 = vmatpush1.msra.mxu0 0.0
    %1911 = vmatprep.subr.mxu0 0.0
    %1912 = vmatpush1.msra.mxu0 0.0
    %1913 = vmatprep.subr.mxu0 0.0
    %1914 = vmatpush1.msra.mxu0 0.0
    %1915 = vmatprep.subr.mxu0 0.0
    %1916 = vmatpush1.msra.mxu0 0.0
    %1917 = vmatprep.subr.mxu0 0.0
    %1918 = vmatpush1.msra.mxu0 0.0
    %1919 = vmatprep.subr.mxu0 0.0
    %1920 = vmatpush1.msra.mxu0 0.0
    %1921 = vmatprep.subr.mxu0 0.0
    %1922 = vmatpush1.msra.mxu0 0.0
    %1923 = vmatprep.subr.mxu0 0.0
    %1924 = vmatpush1.msra.mxu0 0.0
    %1925 = vmatprep.subr.mxu0 0.0
    %1926 = vmatpush1.msra.mxu0 0.0
    %1927 = vmatprep.subr.mxu0 0.0
    %1928 = vmatpush1.msra.mxu0 0.0
    %1929 = vmatprep.subr.mxu0 0.0
    %1930 = vmatpush1.msra.mxu0 0.0
    %1931 = vmatprep.subr.mxu0 0.0
    %1932 = vmatpush1.msra.mxu0 0.0
    %1933 = vmatprep.subr.mxu0 0.0
    %1934 = vmatpush1.msra.mxu0 0.0
    %1935 = vmatprep.subr.mxu0 0.0
    %1936 = vmatpush1.msra.mxu0 0.0
    %1937 = vmatprep.subr.mxu0 0.0
    %1938 = vmatpush1.msra.mxu0 0.0
    %1939 = vmatprep.subr.mxu0 0.0
    %1940 = vmatpush1.msra.mxu0 0.0
    %1941 = vmatprep.mubr.f32.mxu0 0.0
    %1942 = vmatmul.mubr.f32.gmra.mrb[0].mxu0 %v1875
    %v1943 = vpop.f32.mrb[0].mxu0
    %v1944 = vadd.f32 0.0, %v1943
    %v1945 = vpop.f32.mrb[0].mxu0
    %1946 = vdwg.mxu0
    %v1948 = vrot.slane %v1874, 2
    %1949 = vrot.lane.b32.xlu0 %v1948, 32
    %v1950 = vpop.permute.xlu0 %1949
    %v1951 = vsel %vm267, %v1950, 0
    %1953 = vmatprep.subr.mxu0 0.0
    %1954 = vmatpush1.msra.mxu0 %v365
    %1955 = vmatprep.subr.mxu0 0.0
    %1956 = vmatpush1.msra.mxu0 %v366
    %1957 = vmatprep.subr.mxu0 0.0
    %1958 = vmatpush1.msra.mxu0 %v367
    %1959 = vmatprep.subr.mxu0 0.0
    %1960 = vmatpush1.msra.mxu0 %v368
    %1961 = vmatprep.subr.mxu0 0.0
    %1962 = vmatpush1.msra.mxu0 0.0
    %1963 = vmatprep.subr.mxu0 0.0
    %1964 = vmatpush1.msra.mxu0 0.0
    %1965 = vmatprep.subr.mxu0 0.0
    %1966 = vmatpush1.msra.mxu0 0.0
    %1967 = vmatprep.subr.mxu0 0.0
    %1968 = vmatpush1.msra.mxu0 0.0
    %1969 = vmatprep.subr.mxu0 0.0
    %1970 = vmatpush1.msra.mxu0 0.0
    %1971 = vmatprep.subr.mxu0 0.0
    %1972 = vmatpush1.msra.mxu0 0.0
    %1973 = vmatprep.subr.mxu0 0.0
    %1974 = vmatpush1.msra.mxu0 0.0
    %1975 = vmatprep.subr.mxu0 0.0
    %1976 = vmatpush1.msra.mxu0 0.0
    %1977 = vmatprep.subr.mxu0 0.0
    %1978 = vmatpush1.msra.mxu0 0.0
    %1979 = vmatprep.subr.mxu0 0.0
    %1980 = vmatpush1.msra.mxu0 0.0
    %1981 = vmatprep.subr.mxu0 0.0
    %1982 = vmatpush1.msra.mxu0 0.0
    %1983 = vmatprep.subr.mxu0 0.0
    %1984 = vmatpush1.msra.mxu0 0.0
    %1985 = vmatprep.subr.mxu0 0.0
    %1986 = vmatpush1.msra.mxu0 0.0
    %1987 = vmatprep.subr.mxu0 0.0
    %1988 = vmatpush1.msra.mxu0 0.0
    %1989 = vmatprep.subr.mxu0 0.0
    %1990 = vmatpush1.msra.mxu0 0.0
    %1991 = vmatprep.subr.mxu0 0.0
    %1992 = vmatpush1.msra.mxu0 0.0
    %1993 = vmatprep.subr.mxu0 0.0
    %1994 = vmatpush1.msra.mxu0 0.0
    %1995 = vmatprep.subr.mxu0 0.0
    %1996 = vmatpush1.msra.mxu0 0.0
    %1997 = vmatprep.subr.mxu0 0.0
    %1998 = vmatpush1.msra.mxu0 0.0
    %1999 = vmatprep.subr.mxu0 0.0
    %2000 = vmatpush1.msra.mxu0 0.0
    %2001 = vmatprep.subr.mxu0 0.0
    %2002 = vmatpush1.msra.mxu0 0.0
    %2003 = vmatprep.subr.mxu0 0.0
    %2004 = vmatpush1.msra.mxu0 0.0
    %2005 = vmatprep.subr.mxu0 0.0
    %2006 = vmatpush1.msra.mxu0 0.0
    %2007 = vmatprep.subr.mxu0 0.0
    %2008 = vmatpush1.msra.mxu0 0.0
    %2009 = vmatprep.subr.mxu0 0.0
    %2010 = vmatpush1.msra.mxu0 0.0
    %2011 = vmatprep.subr.mxu0 0.0
    %2012 = vmatpush1.msra.mxu0 0.0
    %2013 = vmatprep.subr.mxu0 0.0
    %2014 = vmatpush1.msra.mxu0 0.0
    %2015 = vmatprep.subr.mxu0 0.0
    %2016 = vmatpush1.msra.mxu0 0.0
    %2017 = vmatprep.mubr.f32.mxu0 0.0
    %2018 = vmatmul.mubr.f32.gmra.mrb[0].mxu0 %v1951
    %v2019 = vpop.f32.mrb[0].mxu0
    %v2020 = vadd.f32 %v1944, %v2019
    %v2021 = vpop.f32.mrb[0].mxu0
    %2022 = vdwg.mxu0
    %v2023 = vadd.f32 %v2020, %v625
    %v2024 = vxor.u32 %v2023, 2147483648
    %v2025 = vmul.f32 %v2024, 1.442695
    %v2026 = vpow.pop %v2025
    %v2027 = vadd.f32 %v2026, 1.0
    %v2028 = vrcp.pop %v2027
    %v2029 = vmul.f32 1.0, %v2028
    %v2030 = vtanh.pop %v2023
    %v2031 = vmul.f32 %v2029, %v1762
    %2033 = vrot.lane.b32.xlu0 %v2030, 64
    %v2034 = vpop.permute.xlu0 %2033
    %v2036 = vmul.f32 %v2029, %v2034
    %2038 = vrot.lane.b32.xlu0 %v2036, 32
    %v2039 = vpop.permute.xlu0 %2038
    %v2041 = vadd.f32 %v2031, %v2039
    %v2042 = vtanh.pop %v2041
    %2044 = vrot.lane.b32.xlu0 %v2042, 64
    %v2045 = vpop.permute.xlu0 %2044
    %v2047 = vmul.f32 %v2029, %v2045
    %2049 = vrot.lane.b32.xlu0 %v2047, 32
    %v2050 = vpop.permute.xlu0 %2049
    %2052 = vst.msk [vmem:[#allocation2 + $0xa] sm:$0x3] %vm660, %v2050
    %2053 = vmatprep.subr.mxu0 0.0
    %2054 = vmatpush1.msra.mxu0 %v355
    %2055 = vmatprep.subr.mxu0 0.0
    %2056 = vmatpush1.msra.mxu0 %v356
    %2057 = vmatprep.subr.mxu0 0.0
    %2058 = vmatpush1.msra.mxu0 %v357
    %2059 = vmatprep.subr.mxu0 0.0
    %2060 = vmatpush1.msra.mxu0 %v358
    %2061 = vmatprep.subr.mxu0 0.0
    %2062 = vmatpush1.msra.mxu0 0.0
    %2063 = vmatprep.subr.mxu0 0.0
    %2064 = vmatpush1.msra.mxu0 0.0
    %2065 = vmatprep.subr.mxu0 0.0
    %2066 = vmatpush1.msra.mxu0 0.0
    %2067 = vmatprep.subr.mxu0 0.0
    %2068 = vmatpush1.msra.mxu0 0.0
    %2069 = vmatprep.subr.mxu0 0.0
    %2070 = vmatpush1.msra.mxu0 0.0
    %2071 = vmatprep.subr.mxu0 0.0
    %2072 = vmatpush1.msra.mxu0 0.0
    %2073 = vmatprep.subr.mxu0 0.0
    %2074 = vmatpush1.msra.mxu0 0.0
    %2075 = vmatprep.subr.mxu0 0.0
    %2076 = vmatpush1.msra.mxu0 0.0
    %2077 = vmatprep.subr.mxu0 0.0
    %2078 = vmatpush1.msra.mxu0 0.0
    %2079 = vmatprep.subr.mxu0 0.0
    %2080 = vmatpush1.msra.mxu0 0.0
    %2081 = vmatprep.subr.mxu0 0.0
    %2082 = vmatpush1.msra.mxu0 0.0
    %2083 = vmatprep.subr.mxu0 0.0
    %2084 = vmatpush1.msra.mxu0 0.0
    %2085 = vmatprep.subr.mxu0 0.0
    %2086 = vmatpush1.msra.mxu0 0.0
    %2087 = vmatprep.subr.mxu0 0.0
    %2088 = vmatpush1.msra.mxu0 0.0
    %2089 = vmatprep.subr.mxu0 0.0
    %2090 = vmatpush1.msra.mxu0 0.0
    %2091 = vmatprep.subr.mxu0 0.0
    %2092 = vmatpush1.msra.mxu0 0.0
    %2093 = vmatprep.subr.mxu0 0.0
    %2094 = vmatpush1.msra.mxu0 0.0
    %2095 = vmatprep.subr.mxu0 0.0
    %2096 = vmatpush1.msra.mxu0 0.0
    %2097 = vmatprep.subr.mxu0 0.0
    %2098 = vmatpush1.msra.mxu0 0.0
    %2099 = vmatprep.subr.mxu0 0.0
    %2100 = vmatpush1.msra.mxu0 0.0
    %2101 = vmatprep.subr.mxu0 0.0
    %2102 = vmatpush1.msra.mxu0 0.0
    %2103 = vmatprep.subr.mxu0 0.0
    %2104 = vmatpush1.msra.mxu0 0.0
    %2105 = vmatprep.subr.mxu0 0.0
    %2106 = vmatpush1.msra.mxu0 0.0
    %2107 = vmatprep.subr.mxu0 0.0
    %2108 = vmatpush1.msra.mxu0 0.0
    %2109 = vmatprep.subr.mxu0 0.0
    %2110 = vmatpush1.msra.mxu0 0.0
    %2111 = vmatprep.subr.mxu0 0.0
    %2112 = vmatpush1.msra.mxu0 0.0
    %2113 = vmatprep.subr.mxu0 0.0
    %2114 = vmatpush1.msra.mxu0 0.0
    %2115 = vmatprep.subr.mxu0 0.0
    %2116 = vmatpush1.msra.mxu0 0.0
    %2117 = vmatprep.mubr.f32.mxu0 0.0
    %2118 = vmatmul.mubr.f32.gmra.mrb[0].mxu0 %v1951
    %v2119 = vpop.f32.mrb[0].mxu0
    %v2120 = vadd.f32 0.0, %v2119
    %v2121 = vpop.f32.mrb[0].mxu0
    %2122 = vdwg.mxu0
    %v2124 = vrot.slane %v2120, 4
    %v2126 = vadd.f32 %v346, %v2124
    %v2127 = vxor.u32 %v2126, 2147483648
    %v2128 = vmul.f32 %v2127, 1.442695
    %v2129 = vpow.pop %v2128
    %v2130 = vadd.f32 %v2129, 1.0
    %v2131 = vrcp.pop %v2130
    %v2132 = vmul.f32 1.0, %v2131
    %v2133 = vtanh.pop %v2126
    %v2135 = vrot.slane %v1868, 6
    %v2137 = vmul.f32 %v2132, %v2135
    %2139 = vrot.lane.b32.xlu0 %v2133, 64
    %v2140 = vpop.permute.xlu0 %2139
    %v2142 = vmul.f32 %v2132, %v2140
    %2144 = vrot.lane.b32.xlu0 %v2142, 32
    %v2145 = vpop.permute.xlu0 %2144
    %v2147 = vadd.f32 %v2137, %v2145
    %v2148 = vtanh.pop %v2147
    %2150 = vrot.lane.b32.xlu0 %v2148, 64
    %v2151 = vpop.permute.xlu0 %2150
    %v2153 = vmul.f32 %v2132, %v2151
    %v2154 = vsel %vm267, %v2050, 0
    %2156 = vmatprep.subr.mxu0 0.0
    %2157 = vmatpush1.msra.mxu0 %v360
    %2158 = vmatprep.subr.mxu0 0.0
    %2159 = vmatpush1.msra.mxu0 %v361
    %2160 = vmatprep.subr.mxu0 0.0
    %2161 = vmatpush1.msra.mxu0 %v362
    %2162 = vmatprep.subr.mxu0 0.0
    %2163 = vmatpush1.msra.mxu0 %v363
    %2164 = vmatprep.subr.mxu0 0.0
    %2165 = vmatpush1.msra.mxu0 0.0
    %2166 = vmatprep.subr.mxu0 0.0
    %2167 = vmatpush1.msra.mxu0 0.0
    %2168 = vmatprep.subr.mxu0 0.0
    %2169 = vmatpush1.msra.mxu0 0.0
    %2170 = vmatprep.subr.mxu0 0.0
    %2171 = vmatpush1.msra.mxu0 0.0
    %2172 = vmatprep.subr.mxu0 0.0
    %2173 = vmatpush1.msra.mxu0 0.0
    %2174 = vmatprep.subr.mxu0 0.0
    %2175 = vmatpush1.msra.mxu0 0.0
    %2176 = vmatprep.subr.mxu0 0.0
    %2177 = vmatpush1.msra.mxu0 0.0
    %2178 = vmatprep.subr.mxu0 0.0
    %2179 = vmatpush1.msra.mxu0 0.0
    %2180 = vmatprep.subr.mxu0 0.0
    %2181 = vmatpush1.msra.mxu0 0.0
    %2182 = vmatprep.subr.mxu0 0.0
    %2183 = vmatpush1.msra.mxu0 0.0
    %2184 = vmatprep.subr.mxu0 0.0
    %2185 = vmatpush1.msra.mxu0 0.0
    %2186 = vmatprep.subr.mxu0 0.0
    %2187 = vmatpush1.msra.mxu0 0.0
    %2188 = vmatprep.subr.mxu0 0.0
    %2189 = vmatpush1.msra.mxu0 0.0
    %2190 = vmatprep.subr.mxu0 0.0
    %2191 = vmatpush1.msra.mxu0 0.0
    %2192 = vmatprep.subr.mxu0 0.0
    %2193 = vmatpush1.msra.mxu0 0.0
    %2194 = vmatprep.subr.mxu0 0.0
    %2195 = vmatpush1.msra.mxu0 0.0
    %2196 = vmatprep.subr.mxu0 0.0
    %2197 = vmatpush1.msra.mxu0 0.0
    %2198 = vmatprep.subr.mxu0 0.0
    %2199 = vmatpush1.msra.mxu0 0.0
    %2200 = vmatprep.subr.mxu0 0.0
    %2201 = vmatpush1.msra.mxu0 0.0
    %2202 = vmatprep.subr.mxu0 0.0
    %2203 = vmatpush1.msra.mxu0 0.0
    %2204 = vmatprep.subr.mxu0 0.0
    %2205 = vmatpush1.msra.mxu0 0.0
    %2206 = vmatprep.subr.mxu0 0.0
    %2207 = vmatpush1.msra.mxu0 0.0
    %2208 = vmatprep.subr.mxu0 0.0
    %2209 = vmatpush1.msra.mxu0 0.0
    %2210 = vmatprep.subr.mxu0 0.0
    %2211 = vmatpush1.msra.mxu0 0.0
    %2212 = vmatprep.subr.mxu0 0.0
    %2213 = vmatpush1.msra.mxu0 0.0
    %2214 = vmatprep.subr.mxu0 0.0
    %2215 = vmatpush1.msra.mxu0 0.0
    %2216 = vmatprep.subr.mxu0 0.0
    %2217 = vmatpush1.msra.mxu0 0.0
    %2218 = vmatprep.subr.mxu0 0.0
    %2219 = vmatpush1.msra.mxu0 0.0
    %2220 = vmatprep.mubr.f32.mxu0 0.0
    %2221 = vmatmul.mubr.f32.gmra.mrb[0].mxu0 %v2154
    %v2222 = vpop.f32.mrb[0].mxu0
    %v2223 = vadd.f32 0.0, %v2222
    %v2224 = vpop.f32.mrb[0].mxu0
    %2225 = vdwg.mxu0
    %v2227 = vrot.slane %v2153, 4
    %2228 = vrot.lane.b32.xlu0 %v2227, 32
    %v2229 = vpop.permute.xlu0 %2228
    %v2230 = vsel %vm267, %v2229, 0
    %2232 = vmatprep.subr.mxu0 0.0
    %2233 = vmatpush1.msra.mxu0 %v365
    %2234 = vmatprep.subr.mxu0 0.0
    %2235 = vmatpush1.msra.mxu0 %v366
    %2236 = vmatprep.subr.mxu0 0.0
    %2237 = vmatpush1.msra.mxu0 %v367
    %2238 = vmatprep.subr.mxu0 0.0
    %2239 = vmatpush1.msra.mxu0 %v368
    %2240 = vmatprep.subr.mxu0 0.0
    %2241 = vmatpush1.msra.mxu0 0.0
    %2242 = vmatprep.subr.mxu0 0.0
    %2243 = vmatpush1.msra.mxu0 0.0
    %2244 = vmatprep.subr.mxu0 0.0
    %2245 = vmatpush1.msra.mxu0 0.0
    %2246 = vmatprep.subr.mxu0 0.0
    %2247 = vmatpush1.msra.mxu0 0.0
    %2248 = vmatprep.subr.mxu0 0.0
    %2249 = vmatpush1.msra.mxu0 0.0
    %2250 = vmatprep.subr.mxu0 0.0
    %2251 = vmatpush1.msra.mxu0 0.0
    %2252 = vmatprep.subr.mxu0 0.0
    %2253 = vmatpush1.msra.mxu0 0.0
    %2254 = vmatprep.subr.mxu0 0.0
    %2255 = vmatpush1.msra.mxu0 0.0
    %2256 = vmatprep.subr.mxu0 0.0
    %2257 = vmatpush1.msra.mxu0 0.0
    %2258 = vmatprep.subr.mxu0 0.0
    %2259 = vmatpush1.msra.mxu0 0.0
    %2260 = vmatprep.subr.mxu0 0.0
    %2261 = vmatpush1.msra.mxu0 0.0
    %2262 = vmatprep.subr.mxu0 0.0
    %2263 = vmatpush1.msra.mxu0 0.0
    %2264 = vmatprep.subr.mxu0 0.0
    %2265 = vmatpush1.msra.mxu0 0.0
    %2266 = vmatprep.subr.mxu0 0.0
    %2267 = vmatpush1.msra.mxu0 0.0
    %2268 = vmatprep.subr.mxu0 0.0
    %2269 = vmatpush1.msra.mxu0 0.0
    %2270 = vmatprep.subr.mxu0 0.0
    %2271 = vmatpush1.msra.mxu0 0.0
    %2272 = vmatprep.subr.mxu0 0.0
    %2273 = vmatpush1.msra.mxu0 0.0
    %2274 = vmatprep.subr.mxu0 0.0
    %2275 = vmatpush1.msra.mxu0 0.0
    %2276 = vmatprep.subr.mxu0 0.0
    %2277 = vmatpush1.msra.mxu0 0.0
    %2278 = vmatprep.subr.mxu0 0.0
    %2279 = vmatpush1.msra.mxu0 0.0
    %2280 = vmatprep.subr.mxu0 0.0
    %2281 = vmatpush1.msra.mxu0 0.0
    %2282 = vmatprep.subr.mxu0 0.0
    %2283 = vmatpush1.msra.mxu0 0.0
    %2284 = vmatprep.subr.mxu0 0.0
    %2285 = vmatpush1.msra.mxu0 0.0
    %2286 = vmatprep.subr.mxu0 0.0
    %2287 = vmatpush1.msra.mxu0 0.0
    %2288 = vmatprep.subr.mxu0 0.0
    %2289 = vmatpush1.msra.mxu0 0.0
    %2290 = vmatprep.subr.mxu0 0.0
    %2291 = vmatpush1.msra.mxu0 0.0
    %2292 = vmatprep.subr.mxu0 0.0
    %2293 = vmatpush1.msra.mxu0 0.0
    %2294 = vmatprep.subr.mxu0 0.0
    %2295 = vmatpush1.msra.mxu0 0.0
    %2296 = vmatprep.mubr.f32.mxu0 0.0
    %2297 = vmatmul.mubr.f32.gmra.mrb[0].mxu0 %v2230
    %v2298 = vpop.f32.mrb[0].mxu0
    %v2299 = vadd.f32 %v2223, %v2298
    %v2300 = vpop.f32.mrb[0].mxu0
    %2301 = vdwg.mxu0
    %v2302 = vadd.f32 %v2299, %v625
    %v2303 = vxor.u32 %v2302, 2147483648
    %v2304 = vmul.f32 %v2303, 1.442695
    %v2305 = vpow.pop %v2304
    %v2306 = vadd.f32 %v2305, 1.0
    %v2307 = vrcp.pop %v2306
    %v2308 = vmul.f32 1.0, %v2307
    %v2309 = vtanh.pop %v2302
    %v2310 = vmul.f32 %v2308, %v2041
    %2312 = vrot.lane.b32.xlu0 %v2309, 64
    %v2313 = vpop.permute.xlu0 %2312
    %v2315 = vmul.f32 %v2308, %v2313
    %2317 = vrot.lane.b32.xlu0 %v2315, 32
    %v2318 = vpop.permute.xlu0 %2317
    %v2320 = vadd.f32 %v2310, %v2318
    %v2321 = vtanh.pop %v2320
    %2323 = vrot.lane.b32.xlu0 %v2321, 64
    %v2324 = vpop.permute.xlu0 %2323
    %v2326 = vmul.f32 %v2308, %v2324
    %2328 = vrot.lane.b32.xlu0 %v2326, 32
    %v2329 = vpop.permute.xlu0 %2328
    %2331 = vst.msk [vmem:[#allocation2 + $0xc] sm:$0x3] %vm660, %v2329
    %2332 = vmatprep.subr.mxu0 0.0
    %2333 = vmatpush1.msra.mxu0 %v355
    %2334 = vmatprep.subr.mxu0 0.0
    %2335 = vmatpush1.msra.mxu0 %v356
    %2336 = vmatprep.subr.mxu0 0.0
    %2337 = vmatpush1.msra.mxu0 %v357
    %2338 = vmatprep.subr.mxu0 0.0
    %2339 = vmatpush1.msra.mxu0 %v358
    %2340 = vmatprep.subr.mxu0 0.0
    %2341 = vmatpush1.msra.mxu0 0.0
    %2342 = vmatprep.subr.mxu0 0.0
    %2343 = vmatpush1.msra.mxu0 0.0
    %2344 = vmatprep.subr.mxu0 0.0
    %2345 = vmatpush1.msra.mxu0 0.0
    %2346 = vmatprep.subr.mxu0 0.0
    %2347 = vmatpush1.msra.mxu0 0.0
    %2348 = vmatprep.subr.mxu0 0.0
    %2349 = vmatpush1.msra.mxu0 0.0
    %2350 = vmatprep.subr.mxu0 0.0
    %2351 = vmatpush1.msra.mxu0 0.0
    %2352 = vmatprep.subr.mxu0 0.0
    %2353 = vmatpush1.msra.mxu0 0.0
    %2354 = vmatprep.subr.mxu0 0.0
    %2355 = vmatpush1.msra.mxu0 0.0
    %2356 = vmatprep.subr.mxu0 0.0
    %2357 = vmatpush1.msra.mxu0 0.0
    %2358 = vmatprep.subr.mxu0 0.0
    %2359 = vmatpush1.msra.mxu0 0.0
    %2360 = vmatprep.subr.mxu0 0.0
    %2361 = vmatpush1.msra.mxu0 0.0
    %2362 = vmatprep.subr.mxu0 0.0
    %2363 = vmatpush1.msra.mxu0 0.0
    %2364 = vmatprep.subr.mxu0 0.0
    %2365 = vmatpush1.msra.mxu0 0.0
    %2366 = vmatprep.subr.mxu0 0.0
    %2367 = vmatpush1.msra.mxu0 0.0
    %2368 = vmatprep.subr.mxu0 0.0
    %2369 = vmatpush1.msra.mxu0 0.0
    %2370 = vmatprep.subr.mxu0 0.0
    %2371 = vmatpush1.msra.mxu0 0.0
    %2372 = vmatprep.subr.mxu0 0.0
    %2373 = vmatpush1.msra.mxu0 0.0
    %2374 = vmatprep.subr.mxu0 0.0
    %2375 = vmatpush1.msra.mxu0 0.0
    %2376 = vmatprep.subr.mxu0 0.0
    %2377 = vmatpush1.msra.mxu0 0.0
    %2378 = vmatprep.subr.mxu0 0.0
    %2379 = vmatpush1.msra.mxu0 0.0
    %2380 = vmatprep.subr.mxu0 0.0
    %2381 = vmatpush1.msra.mxu0 0.0
    %2382 = vmatprep.subr.mxu0 0.0
    %2383 = vmatpush1.msra.mxu0 0.0
    %2384 = vmatprep.subr.mxu0 0.0
    %2385 = vmatpush1.msra.mxu0 0.0
    %2386 = vmatprep.subr.mxu0 0.0
    %2387 = vmatpush1.msra.mxu0 0.0
    %2388 = vmatprep.subr.mxu0 0.0
    %2389 = vmatpush1.msra.mxu0 0.0
    %2390 = vmatprep.subr.mxu0 0.0
    %2391 = vmatpush1.msra.mxu0 0.0
    %2392 = vmatprep.subr.mxu0 0.0
    %2393 = vmatpush1.msra.mxu0 0.0
    %2394 = vmatprep.subr.mxu0 0.0
    %2395 = vmatpush1.msra.mxu0 0.0
    %2396 = vmatprep.mubr.f32.mxu0 0.0
    %2397 = vmatmul.mubr.f32.gmra.mrb[0].mxu0 %v2230
    %v2398 = vpop.f32.mrb[0].mxu0
    %v2399 = vadd.f32 0.0, %v2398
    %v2400 = vpop.f32.mrb[0].mxu0
    %2401 = vdwg.mxu0
    %v2403 = vrot.slane %v2399, 2
    %v2405 = vadd.f32 %v346, %v2403
    %v2406 = vxor.u32 %v2405, 2147483648
    %v2407 = vmul.f32 %v2406, 1.442695
    %v2408 = vpow.pop %v2407
    %v2409 = vadd.f32 %v2408, 1.0
    %v2410 = vrcp.pop %v2409
    %v2411 = vmul.f32 1.0, %v2410
    %v2412 = vtanh.pop %v2405
    %v2414 = vrot.slane %v2147, 6
    %v2416 = vmul.f32 %v2411, %v2414
    %2418 = vrot.lane.b32.xlu0 %v2412, 64
    %v2419 = vpop.permute.xlu0 %2418
    %v2421 = vmul.f32 %v2411, %v2419
    %2423 = vrot.lane.b32.xlu0 %v2421, 32
    %v2424 = vpop.permute.xlu0 %2423
    %v2426 = vadd.f32 %v2416, %v2424
    %v2427 = vtanh.pop %v2426
    %2429 = vrot.lane.b32.xlu0 %v2427, 64
    %v2430 = vpop.permute.xlu0 %2429
    %v2432 = vmul.f32 %v2411, %v2430
    %v2433 = vsel %vm267, %v2329, 0
    %2435 = vmatprep.subr.mxu0 0.0
    %2436 = vmatpush1.msra.mxu0 %v360
    %2437 = vmatprep.subr.mxu0 0.0
    %2438 = vmatpush1.msra.mxu0 %v361
    %2439 = vmatprep.subr.mxu0 0.0
    %2440 = vmatpush1.msra.mxu0 %v362
    %2441 = vmatprep.subr.mxu0 0.0
    %2442 = vmatpush1.msra.mxu0 %v363
    %2443 = vmatprep.subr.mxu0 0.0
    %2444 = vmatpush1.msra.mxu0 0.0
    %2445 = vmatprep.subr.mxu0 0.0
    %2446 = vmatpush1.msra.mxu0 0.0
    %2447 = vmatprep.subr.mxu0 0.0
    %2448 = vmatpush1.msra.mxu0 0.0
    %2449 = vmatprep.subr.mxu0 0.0
    %2450 = vmatpush1.msra.mxu0 0.0
    %2451 = vmatprep.subr.mxu0 0.0
    %2452 = vmatpush1.msra.mxu0 0.0
    %2453 = vmatprep.subr.mxu0 0.0
    %2454 = vmatpush1.msra.mxu0 0.0
    %2455 = vmatprep.subr.mxu0 0.0
    %2456 = vmatpush1.msra.mxu0 0.0
    %2457 = vmatprep.subr.mxu0 0.0
    %2458 = vmatpush1.msra.mxu0 0.0
    %2459 = vmatprep.subr.mxu0 0.0
    %2460 = vmatpush1.msra.mxu0 0.0
    %2461 = vmatprep.subr.mxu0 0.0
    %2462 = vmatpush1.msra.mxu0 0.0
    %2463 = vmatprep.subr.mxu0 0.0
    %2464 = vmatpush1.msra.mxu0 0.0
    %2465 = vmatprep.subr.mxu0 0.0
    %2466 = vmatpush1.msra.mxu0 0.0
    %2467 = vmatprep.subr.mxu0 0.0
    %2468 = vmatpush1.msra.mxu0 0.0
    %2469 = vmatprep.subr.mxu0 0.0
    %2470 = vmatpush1.msra.mxu0 0.0
    %2471 = vmatprep.subr.mxu0 0.0
    %2472 = vmatpush1.msra.mxu0 0.0
    %2473 = vmatprep.subr.mxu0 0.0
    %2474 = vmatpush1.msra.mxu0 0.0
    %2475 = vmatprep.subr.mxu0 0.0
    %2476 = vmatpush1.msra.mxu0 0.0
    %2477 = vmatprep.subr.mxu0 0.0
    %2478 = vmatpush1.msra.mxu0 0.0
    %2479 = vmatprep.subr.mxu0 0.0
    %2480 = vmatpush1.msra.mxu0 0.0
    %2481 = vmatprep.subr.mxu0 0.0
    %2482 = vmatpush1.msra.mxu0 0.0
    %2483 = vmatprep.subr.mxu0 0.0
    %2484 = vmatpush1.msra.mxu0 0.0
    %2485 = vmatprep.subr.mxu0 0.0
    %2486 = vmatpush1.msra.mxu0 0.0
    %2487 = vmatprep.subr.mxu0 0.0
    %2488 = vmatpush1.msra.mxu0 0.0
    %2489 = vmatprep.subr.mxu0 0.0
    %2490 = vmatpush1.msra.mxu0 0.0
    %2491 = vmatprep.subr.mxu0 0.0
    %2492 = vmatpush1.msra.mxu0 0.0
    %2493 = vmatprep.subr.mxu0 0.0
    %2494 = vmatpush1.msra.mxu0 0.0
    %2495 = vmatprep.subr.mxu0 0.0
    %2496 = vmatpush1.msra.mxu0 0.0
    %2497 = vmatprep.subr.mxu0 0.0
    %2498 = vmatpush1.msra.mxu0 0.0
    %2499 = vmatprep.mubr.f32.mxu0 0.0
    %2500 = vmatmul.mubr.f32.gmra.mrb[0].mxu0 %v2433
    %v2501 = vpop.f32.mrb[0].mxu0
    %v2502 = vadd.f32 0.0, %v2501
    %v2503 = vpop.f32.mrb[0].mxu0
    %2504 = vdwg.mxu0
    %v2506 = vrot.slane %v2432, 6
    %2507 = vrot.lane.b32.xlu0 %v2506, 32
    %v2508 = vpop.permute.xlu0 %2507
    %v2509 = vsel %vm267, %v2508, 0
    %2511 = vmatprep.subr.mxu0 0.0
    %2512 = vmatpush1.msra.mxu0 %v365
    %2513 = vmatprep.subr.mxu0 0.0
    %2514 = vmatpush1.msra.mxu0 %v366
    %2515 = vmatprep.subr.mxu0 0.0
    %2516 = vmatpush1.msra.mxu0 %v367
    %2517 = vmatprep.subr.mxu0 0.0
    %2518 = vmatpush1.msra.mxu0 %v368
    %2519 = vmatprep.subr.mxu0 0.0
    %2520 = vmatpush1.msra.mxu0 0.0
    %2521 = vmatprep.subr.mxu0 0.0
    %2522 = vmatpush1.msra.mxu0 0.0
    %2523 = vmatprep.subr.mxu0 0.0
    %2524 = vmatpush1.msra.mxu0 0.0
    %2525 = vmatprep.subr.mxu0 0.0
    %2526 = vmatpush1.msra.mxu0 0.0
    %2527 = vmatprep.subr.mxu0 0.0
    %2528 = vmatpush1.msra.mxu0 0.0
    %2529 = vmatprep.subr.mxu0 0.0
    %2530 = vmatpush1.msra.mxu0 0.0
    %2531 = vmatprep.subr.mxu0 0.0
    %2532 = vmatpush1.msra.mxu0 0.0
    %2533 = vmatprep.subr.mxu0 0.0
    %2534 = vmatpush1.msra.mxu0 0.0
    %2535 = vmatprep.subr.mxu0 0.0
    %2536 = vmatpush1.msra.mxu0 0.0
    %2537 = vmatprep.subr.mxu0 0.0
    %2538 = vmatpush1.msra.mxu0 0.0
    %2539 = vmatprep.subr.mxu0 0.0
    %2540 = vmatpush1.msra.mxu0 0.0
    %2541 = vmatprep.subr.mxu0 0.0
    %2542 = vmatpush1.msra.mxu0 0.0
    %2543 = vmatprep.subr.mxu0 0.0
    %2544 = vmatpush1.msra.mxu0 0.0
    %2545 = vmatprep.subr.mxu0 0.0
    %2546 = vmatpush1.msra.mxu0 0.0
    %2547 = vmatprep.subr.mxu0 0.0
    %2548 = vmatpush1.msra.mxu0 0.0
    %2549 = vmatprep.subr.mxu0 0.0
    %2550 = vmatpush1.msra.mxu0 0.0
    %2551 = vmatprep.subr.mxu0 0.0
    %2552 = vmatpush1.msra.mxu0 0.0
    %2553 = vmatprep.subr.mxu0 0.0
    %2554 = vmatpush1.msra.mxu0 0.0
    %2555 = vmatprep.subr.mxu0 0.0
    %2556 = vmatpush1.msra.mxu0 0.0
    %2557 = vmatprep.subr.mxu0 0.0
    %2558 = vmatpush1.msra.mxu0 0.0
    %2559 = vmatprep.subr.mxu0 0.0
    %2560 = vmatpush1.msra.mxu0 0.0
    %2561 = vmatprep.subr.mxu0 0.0
    %2562 = vmatpush1.msra.mxu0 0.0
    %2563 = vmatprep.subr.mxu0 0.0
    %2564 = vmatpush1.msra.mxu0 0.0
    %2565 = vmatprep.subr.mxu0 0.0
    %2566 = vmatpush1.msra.mxu0 0.0
    %2567 = vmatprep.subr.mxu0 0.0
    %2568 = vmatpush1.msra.mxu0 0.0
    %2569 = vmatprep.subr.mxu0 0.0
    %2570 = vmatpush1.msra.mxu0 0.0
    %2571 = vmatprep.subr.mxu0 0.0
    %2572 = vmatpush1.msra.mxu0 0.0
    %2573 = vmatprep.subr.mxu0 0.0
    %2574 = vmatpush1.msra.mxu0 0.0
    %2575 = vmatprep.mubr.f32.mxu0 0.0
    %2576 = vmatmul.mubr.f32.gmra.mrb[0].mxu0 %v2509
    %v2577 = vpop.f32.mrb[0].mxu0
    %v2578 = vadd.f32 %v2502, %v2577
    %v2579 = vpop.f32.mrb[0].mxu0
    %2580 = vdwg.mxu0
    %v2581 = vadd.f32 %v2578, %v625
    %v2582 = vxor.u32 %v2581, 2147483648
    %v2583 = vmul.f32 %v2582, 1.442695
    %v2584 = vpow.pop %v2583
    %v2585 = vadd.f32 %v2584, 1.0
    %v2586 = vrcp.pop %v2585
    %v2587 = vmul.f32 1.0, %v2586
    %v2588 = vtanh.pop %v2581
    %v2589 = vmul.f32 %v2587, %v2320
    %2591 = vrot.lane.b32.xlu0 %v2588, 64
    %v2592 = vpop.permute.xlu0 %2591
    %v2594 = vmul.f32 %v2587, %v2592
    %2596 = vrot.lane.b32.xlu0 %v2594, 32
    %v2597 = vpop.permute.xlu0 %2596
    %v2599 = vadd.f32 %v2589, %v2597
    %v2600 = vtanh.pop %v2599
    %2602 = vrot.lane.b32.xlu0 %v2600, 64
    %v2603 = vpop.permute.xlu0 %2602
    %v2605 = vmul.f32 %v2587, %v2603
    %2607 = vrot.lane.b32.xlu0 %v2605, 32
    %v2608 = vpop.permute.xlu0 %2607
    %2610 = vst.msk [vmem:[#allocation2 + $0xe] sm:$0x3] %vm660, %v2608
    %v2611 = vld [vmem:[%s11] sm:$0xff]
    %v2612 = vld [vmem:[%s11 + $0x8] sm:$0xff]
    %v2613 = vld [vmem:[%s11 + $0x10] sm:$0xff]
    %v2614 = vld [vmem:[%s11 + $0x18] sm:$0xff]
    %v2615 = vld [vmem:[#allocation2] sm:$0xff]
    %v2616 = vld [vmem:[#allocation2 + $0x8] sm:$0xff]
    %v2617 = vld [vmem:[%s12] sm:$0xff]
    %v2618 = vld [vmem:[%s12 + $0x8] sm:$0xff]
    %v2619 = vld [vmem:[%s12 + $0x10] sm:$0xff]
    %v2620 = vld [vmem:[%s12 + $0x18] sm:$0xff]
    %v2622 = vsel %vm267, %v2615, 0
    %v2625 = vsel %vm267, %v2616, 0
    %2627 = vmatprep.subr.mxu0 0.0
    %2628 = vmatpush1.msra.mxu0 %v2617
    %2629 = vmatprep.subr.mxu0 0.0
    %2630 = vmatpush1.msra.mxu0 %v2618
    %2631 = vmatprep.subr.mxu0 0.0
    %2632 = vmatpush1.msra.mxu0 %v2619
    %2633 = vmatprep.subr.mxu0 0.0
    %2634 = vmatpush1.msra.mxu0 %v2620
    %2635 = vmatprep.subr.mxu0 0.0
    %2636 = vmatpush1.msra.mxu0 0.0
    %2637 = vmatprep.subr.mxu0 0.0
    %2638 = vmatpush1.msra.mxu0 0.0
    %2639 = vmatprep.subr.mxu0 0.0
    %2640 = vmatpush1.msra.mxu0 0.0
    %2641 = vmatprep.subr.mxu0 0.0
    %2642 = vmatpush1.msra.mxu0 0.0
    %2643 = vmatprep.subr.mxu0 0.0
    %2644 = vmatpush1.msra.mxu0 0.0
    %2645 = vmatprep.subr.mxu0 0.0
    %2646 = vmatpush1.msra.mxu0 0.0
    %2647 = vmatprep.subr.mxu0 0.0
    %2648 = vmatpush1.msra.mxu0 0.0
    %2649 = vmatprep.subr.mxu0 0.0
    %2650 = vmatpush1.msra.mxu0 0.0
    %2651 = vmatprep.subr.mxu0 0.0
    %2652 = vmatpush1.msra.mxu0 0.0
    %2653 = vmatprep.subr.mxu0 0.0
    %2654 = vmatpush1.msra.mxu0 0.0
    %2655 = vmatprep.subr.mxu0 0.0
    %2656 = vmatpush1.msra.mxu0 0.0
    %2657 = vmatprep.subr.mxu0 0.0
    %2658 = vmatpush1.msra.mxu0 0.0
    %2659 = vmatprep.subr.mxu0 0.0
    %2660 = vmatpush1.msra.mxu0 0.0
    %2661 = vmatprep.subr.mxu0 0.0
    %2662 = vmatpush1.msra.mxu0 0.0
    %2663 = vmatprep.subr.mxu0 0.0
    %2664 = vmatpush1.msra.mxu0 0.0
    %2665 = vmatprep.subr.mxu0 0.0
    %2666 = vmatpush1.msra.mxu0 0.0
    %2667 = vmatprep.subr.mxu0 0.0
    %2668 = vmatpush1.msra.mxu0 0.0
    %2669 = vmatprep.subr.mxu0 0.0
    %2670 = vmatpush1.msra.mxu0 0.0
    %2671 = vmatprep.subr.mxu0 0.0
    %2672 = vmatpush1.msra.mxu0 0.0
    %2673 = vmatprep.subr.mxu0 0.0
    %2674 = vmatpush1.msra.mxu0 0.0
    %2675 = vmatprep.subr.mxu0 0.0
    %2676 = vmatpush1.msra.mxu0 0.0
    %2677 = vmatprep.subr.mxu0 0.0
    %2678 = vmatpush1.msra.mxu0 0.0
    %2679 = vmatprep.subr.mxu0 0.0
    %2680 = vmatpush1.msra.mxu0 0.0
    %2681 = vmatprep.subr.mxu0 0.0
    %2682 = vmatpush1.msra.mxu0 0.0
    %2683 = vmatprep.subr.mxu0 0.0
    %2684 = vmatpush1.msra.mxu0 0.0
    %2685 = vmatprep.subr.mxu0 0.0
    %2686 = vmatpush1.msra.mxu0 0.0
    %2687 = vmatprep.subr.mxu0 0.0
    %2688 = vmatpush1.msra.mxu0 0.0
    %2689 = vmatprep.subr.mxu0 0.0
    %2690 = vmatpush1.msra.mxu0 0.0
    %2691 = vmatprep.mubr.f32.mxu0 0.0
    %2692 = vmatmul.mubr.f32.gmra.mrb[0].mxu0 %v2622
    %v2693 = vpop.f32.mrb[0].mxu0
    %v2694 = vadd.f32 0.0, %v2693
    %v2695 = vpop.f32.mrb[0].mxu0
    %2696 = vmatprep.mubr.f32.mxu0 0.0
    %2697 = vmatmul.mubr.f32.gmra.mrb[0].mxu0 %v2625
    %v2698 = vpop.f32.mrb[0].mxu0
    %v2699 = vadd.f32 0.0, %v2698
    %v2700 = vpop.f32.mrb[0].mxu0
    %2701 = vdwg.mxu0
    %v2703 = vsel %vm267, %v157, 0
    %v2706 = vsel %vm267, %v158, 0
    %2708 = vmatprep.subr.mxu0 0.0
    %2709 = vmatpush1.msra.mxu0 %v2611
    %2710 = vmatprep.subr.mxu0 0.0
    %2711 = vmatpush1.msra.mxu0 %v2612
    %2712 = vmatprep.subr.mxu0 0.0
    %2713 = vmatpush1.msra.mxu0 %v2613
    %2714 = vmatprep.subr.mxu0 0.0
    %2715 = vmatpush1.msra.mxu0 %v2614
    %2716 = vmatprep.subr.mxu0 0.0
    %2717 = vmatpush1.msra.mxu0 0.0
    %2718 = vmatprep.subr.mxu0 0.0
    %2719 = vmatpush1.msra.mxu0 0.0
    %2720 = vmatprep.subr.mxu0 0.0
    %2721 = vmatpush1.msra.mxu0 0.0
    %2722 = vmatprep.subr.mxu0 0.0
    %2723 = vmatpush1.msra.mxu0 0.0
    %2724 = vmatprep.subr.mxu0 0.0
    %2725 = vmatpush1.msra.mxu0 0.0
    %2726 = vmatprep.subr.mxu0 0.0
    %2727 = vmatpush1.msra.mxu0 0.0
    %2728 = vmatprep.subr.mxu0 0.0
    %2729 = vmatpush1.msra.mxu0 0.0
    %2730 = vmatprep.subr.mxu0 0.0
    %2731 = vmatpush1.msra.mxu0 0.0
    %2732 = vmatprep.subr.mxu0 0.0
    %2733 = vmatpush1.msra.mxu0 0.0
    %2734 = vmatprep.subr.mxu0 0.0
    %2735 = vmatpush1.msra.mxu0 0.0
    %2736 = vmatprep.subr.mxu0 0.0
    %2737 = vmatpush1.msra.mxu0 0.0
    %2738 = vmatprep.subr.mxu0 0.0
    %2739 = vmatpush1.msra.mxu0 0.0
    %2740 = vmatprep.subr.mxu0 0.0
    %2741 = vmatpush1.msra.mxu0 0.0
    %2742 = vmatprep.subr.mxu0 0.0
    %2743 = vmatpush1.msra.mxu0 0.0
    %2744 = vmatprep.subr.mxu0 0.0
    %2745 = vmatpush1.msra.mxu0 0.0
    %2746 = vmatprep.subr.mxu0 0.0
    %2747 = vmatpush1.msra.mxu0 0.0
    %2748 = vmatprep.subr.mxu0 0.0
    %2749 = vmatpush1.msra.mxu0 0.0
    %2750 = vmatprep.subr.mxu0 0.0
    %2751 = vmatpush1.msra.mxu0 0.0
    %2752 = vmatprep.subr.mxu0 0.0
    %2753 = vmatpush1.msra.mxu0 0.0
    %2754 = vmatprep.subr.mxu0 0.0
    %2755 = vmatpush1.msra.mxu0 0.0
    %2756 = vmatprep.subr.mxu0 0.0
    %2757 = vmatpush1.msra.mxu0 0.0
    %2758 = vmatprep.subr.mxu0 0.0
    %2759 = vmatpush1.msra.mxu0 0.0
    %2760 = vmatprep.subr.mxu0 0.0
    %2761 = vmatpush1.msra.mxu0 0.0
    %2762 = vmatprep.subr.mxu0 0.0
    %2763 = vmatpush1.msra.mxu0 0.0
    %2764 = vmatprep.subr.mxu0 0.0
    %2765 = vmatpush1.msra.mxu0 0.0
    %2766 = vmatprep.subr.mxu0 0.0
    %2767 = vmatpush1.msra.mxu0 0.0
    %2768 = vmatprep.subr.mxu0 0.0
    %2769 = vmatpush1.msra.mxu0 0.0
    %2770 = vmatprep.subr.mxu0 0.0
    %2771 = vmatpush1.msra.mxu0 0.0
    %2772 = vmatprep.mubr.f32.mxu0 0.0
    %2773 = vmatmul.mubr.f32.gmra.mrb[0].mxu0 %v2703
    %v2774 = vpop.f32.mrb[0].mxu0
    %v2775 = vadd.f32 %v2694, %v2774
    %v2776 = vpop.f32.mrb[0].mxu0
    %2777 = vmatprep.mubr.f32.mxu0 0.0
    %2778 = vmatmul.mubr.f32.gmra.mrb[0].mxu0 %v2706
    %v2779 = vpop.f32.mrb[0].mxu0
    %v2780 = vadd.f32 %v2699, %v2779
    %v2781 = vpop.f32.mrb[0].mxu0
    %2782 = vdwg.mxu0
    %v2783 = vld [vmem:[%s13] sm:$0x1]
    %v2785 = vlaneseq
    %v2786 = vshrl.u32 %v2785, 7
    %v2787 = vsub.s32 0, %v2786
    %v2788 = vrot.slane %v2783, %v2787
    %v2790 = vadd.f32 %v2775, %v2788
    %v2791 = vadd.f32 %v2780, %v2788
    %v2792 = vmax.f32 %v2790, 0.0
    %v2793 = vmax.f32 %v2791, 0.0
    %v2794 = vld [vmem:[%s14] sm:$0xff]
    %v2795 = vld [vmem:[%s14 + $0x8] sm:$0xff]
    %v2796 = vld [vmem:[%s14 + $0x10] sm:$0xff]
    %v2797 = vld [vmem:[%s14 + $0x18] sm:$0xff]
    %v2798 = vld [vmem:[#allocation3] sm:$0x1]
    %v2800 = vlaneseq
    %v2801 = vshrl.u32 %v2800, 7
    %v2802 = vsub.s32 0, %v2801
    %v2803 = vrot.slane %v2798, %v2802
    %v2806 = vsel %vm267, %v2792, 0
    %v2809 = vsel %vm267, %v2793, 0
    %2811 = vmatprep.subr.mxu0 0.0
    %2812 = vmatpush1.msra.mxu0 %v2794
    %2813 = vmatprep.subr.mxu0 0.0
    %2814 = vmatpush1.msra.mxu0 %v2795
    %2815 = vmatprep.subr.mxu0 0.0
    %2816 = vmatpush1.msra.mxu0 %v2796
    %2817 = vmatprep.subr.mxu0 0.0
    %2818 = vmatpush1.msra.mxu0 %v2797
    %2819 = vmatprep.subr.mxu0 0.0
    %2820 = vmatpush1.msra.mxu0 0.0
    %2821 = vmatprep.subr.mxu0 0.0
    %2822 = vmatpush1.msra.mxu0 0.0
    %2823 = vmatprep.subr.mxu0 0.0
    %2824 = vmatpush1.msra.mxu0 0.0
    %2825 = vmatprep.subr.mxu0 0.0
    %2826 = vmatpush1.msra.mxu0 0.0
    %2827 = vmatprep.subr.mxu0 0.0
    %2828 = vmatpush1.msra.mxu0 0.0
    %2829 = vmatprep.subr.mxu0 0.0
    %2830 = vmatpush1.msra.mxu0 0.0
    %2831 = vmatprep.subr.mxu0 0.0
    %2832 = vmatpush1.msra.mxu0 0.0
    %2833 = vmatprep.subr.mxu0 0.0
    %2834 = vmatpush1.msra.mxu0 0.0
    %2835 = vmatprep.subr.mxu0 0.0
    %2836 = vmatpush1.msra.mxu0 0.0
    %2837 = vmatprep.subr.mxu0 0.0
    %2838 = vmatpush1.msra.mxu0 0.0
    %2839 = vmatprep.subr.mxu0 0.0
    %2840 = vmatpush1.msra.mxu0 0.0
    %2841 = vmatprep.subr.mxu0 0.0
    %2842 = vmatpush1.msra.mxu0 0.0
    %2843 = vmatprep.subr.mxu0 0.0
    %2844 = vmatpush1.msra.mxu0 0.0
    %2845 = vmatprep.subr.mxu0 0.0
    %2846 = vmatpush1.msra.mxu0 0.0
    %2847 = vmatprep.subr.mxu0 0.0
    %2848 = vmatpush1.msra.mxu0 0.0
    %2849 = vmatprep.subr.mxu0 0.0
    %2850 = vmatpush1.msra.mxu0 0.0
    %2851 = vmatprep.subr.mxu0 0.0
    %2852 = vmatpush1.msra.mxu0 0.0
    %2853 = vmatprep.subr.mxu0 0.0
    %2854 = vmatpush1.msra.mxu0 0.0
    %2855 = vmatprep.subr.mxu0 0.0
    %2856 = vmatpush1.msra.mxu0 0.0
    %2857 = vmatprep.subr.mxu0 0.0
    %2858 = vmatpush1.msra.mxu0 0.0
    %2859 = vmatprep.subr.mxu0 0.0
    %2860 = vmatpush1.msra.mxu0 0.0
    %2861 = vmatprep.subr.mxu0 0.0
    %2862 = vmatpush1.msra.mxu0 0.0
    %2863 = vmatprep.subr.mxu0 0.0
    %2864 = vmatpush1.msra.mxu0 0.0
    %2865 = vmatprep.subr.mxu0 0.0
    %2866 = vmatpush1.msra.mxu0 0.0
    %2867 = vmatprep.subr.mxu0 0.0
    %2868 = vmatpush1.msra.mxu0 0.0
    %2869 = vmatprep.subr.mxu0 0.0
    %2870 = vmatpush1.msra.mxu0 0.0
    %2871 = vmatprep.subr.mxu0 0.0
    %2872 = vmatpush1.msra.mxu0 0.0
    %2873 = vmatprep.subr.mxu0 0.0
    %2874 = vmatpush1.msra.mxu0 0.0
    %2875 = vmatprep.mubr.f32.mxu0 0.0
    %2876 = vmatmul.mubr.f32.gmra.mrb[0].mxu0 %v2806
    %v2877 = vpop.f32.mrb[0].mxu0
    %v2878 = vadd.f32 %v2803, %v2877
    %v2879 = vpop.f32.mrb[0].mxu0
    %2880 = vmatprep.mubr.f32.mxu0 0.0
    %2881 = vmatmul.mubr.f32.gmra.mrb[0].mxu0 %v2809
    %v2882 = vpop.f32.mrb[0].mxu0
    %v2883 = vadd.f32 %v2803, %v2882
    %v2884 = vpop.f32.mrb[0].mxu0
    %2885 = vdwg.mxu0
    %vm2886 = vcmask 7168
    %2887 = vst.msk [vmem:[%s16] sm:$0xff] %vm2886, %v2878
    %2888 = vst.msk [vmem:[%s16 + $0x8] sm:$0xff] %vm2886, %v2883
    %2889 = vrot.lane.b32.xlu0 %v2432, 32
    %v2890 = vpop.permute.xlu0 %2889
    %vm2892 = vcmask 261126
    %2893 = vst.msk [vmem:[#allocation4 - $0x6] sm:$0xc0] %vm2892, %v2890
    %2895 = vrot.lane.b32.xlu0 %v2426, 96
    %v2896 = vpop.permute.xlu0 %2895
    %2898 = vst.msk [vmem:[#allocation6 - $0x6] sm:$0xc0] %vm2892, %v2896
    %s2899 = scalar_lea.vmem [#allocation4], 2
    %2900 = vst.msk [vmem:[%s2899] sm:$0x3] %vm660, %v2608
    %2902 = vrot.lane.b32.xlu0 %v2599, 96
    %v2903 = vpop.permute.xlu0 %2902
    %s2905 = scalar_lea.vmem [#allocation6], 2
    %2906 = vst.msk [vmem:[%s2905] sm:$0x3] %vm660, %v2903
    // Predicated region
    $region66: #{critic_forward.1} parent=1 // pred_check
      _
    $region67: #{critic_forward.1} parent=1 // pred_check_branch
      %2908 = sbr.rel (0) target = $region69
    $region68: #{critic_forward.1} parent=1 // pred_region
      _
    $region69: #{critic_forward.1} parent=1 // pred_fallthru
      _
    // Predicated region
    $region70: #{critic_forward.1} parent=1 // pred_check
      _
    $region71: #{critic_forward.1} parent=1 // pred_check_branch
      %2910 = sbr.rel (0) target = $region73
    $region72: #{critic_forward.1} parent=1 // pred_region
      %s2912 = ssub.s32 64, 64
      %2913 = vsyncadd [#allocation5], %s2912
      %s2914 = sshll.u32 [#allocation4], 4
      %s2915 = int_to_ptr.vmem [resolvable:$true] %s2914
      %2920 = dma.vmem_to_hbm [thread:$0]  %s2915, 64, %s17, [#allocation5], 32, 32, 2
    $region73: #{critic_forward.1} parent=1 // pred_fallthru
      _
    // Predicated region
    $region74: #{critic_forward.1} parent=1 // pred_check
      _
    $region75: #{critic_forward.1} parent=1 // pred_check_branch
      %2922 = sbr.rel (0) target = $region77
    $region76: #{critic_forward.1} parent=1 // pred_region
      %s2924 = ssub.s32 64, 64
      %2925 = vsyncadd [#allocation7], %s2924
      %s2926 = sshll.u32 [#allocation6], 4
      %s2927 = int_to_ptr.vmem [resolvable:$true] %s2926
      %2932 = dma.vmem_to_hbm [thread:$0]  %s2927, 64, %s18, [#allocation7], 32, 32, 2
    $region77: #{critic_forward.1} parent=1 // pred_fallthru
      _
    // Predicated region
    $region78: #{critic_forward.1} parent=1 // pred_check
      _
    $region79: #{critic_forward.1} parent=1 // pred_check_branch
      %2934 = sbr.rel (0) target = $region81
    $region80: #{critic_forward.1} parent=1 // pred_region
      _
    $region81: #{critic_forward.1} parent=1 // pred_fallthru
      _
    // Predicated region
    $region82: #{critic_forward.1} parent=1 // pred_check
      _
    $region83: #{critic_forward.1} parent=1 // pred_check_branch
      %2936 = sbr.rel (0) target = $region85
    $region84: #{critic_forward.1} parent=1 // pred_region
      %2937 = dma.done [#allocation5], 64
    $region85: #{critic_forward.1} parent=1 // pred_fallthru
      _
    // Predicated region
    $region86: #{critic_forward.1} parent=1 // pred_check
      _
    $region87: #{critic_forward.1} parent=1 // pred_check_branch
      %2939 = sbr.rel (0) target = $region89
    $region88: #{critic_forward.1} parent=1 // pred_region
      %2940 = dma.done [#allocation7], 64
    $region89: #{critic_forward.1} parent=1 // pred_fallthru
      _
    %2941 = vsyncpa [#allocation5], 1
    %2942 = vsyncpa [#allocation7], 1

</llo_original>
